<compile_context>
chip_gen: v5e
topology: v5e:2x2
jax: 0.10.0
libtpu: 0.0.40
codegen_flags: <defaults>
</compile_context>

<pallas_src>
import jax
import jax.numpy as jnp
import numpy as np
from jax.experimental import pallas as pl
from jax.experimental.pallas import tpu as pltpu

# ---- model hyper-parameters (config.action_space is not provided upstream; use 3) ----
INPUT_SIZE = 15
HIDDEN_SIZE = 80
NUM_LAYERS = 2          # hard-coded as two explicit LSTM layers in the kernel
ACTION_SPACE = 3
BATCH = 2
SEQ_LEN = 8

HP = 128                # lane-padded hidden size (each gate block is one 128-lane group)
G4 = 4 * HP             # fused-gate width
D_PAD = 16              # sublane-padded input feature dim (15 -> 16)
OUT_PAD = 128           # lane-padded action-head width (sliced back to 3 in the wrapper)

# Packed-slab row/lane offsets (static).
_W_IH0_ROWS = D_PAD                       # rows [0, 16)        : wih0 (16, 512)
_W_HH0_ROWS = _W_IH0_ROWS + HP            # rows [16, 144)      : whh0 (128, 512)
_W_L1_ROWS = _W_HH0_ROWS + 2 * HP         # rows [144, 400)     : [wih1; whh1] (256, 512)
_B_TOTAL = 2 * G4 + 3 * HP                # 512 + 512 + 3*128 = 1408 bias lanes


# ------------------------------------ kernel ------------------------------------
def qsteering_kernel(x_ref, wl_ref, wfc_ref, b_ref, out_ref):
    BP = out_ref.shape[0]                 # padded batch (8)
    TB = x_ref.shape[0]
    T = TB // BP
    f32 = jnp.float32

    # Static, sublane/lane-aligned unpacking of the weight slabs.
    wih0 = wl_ref[0:_W_IH0_ROWS, :]                      # (16, 512)
    whh0 = wl_ref[_W_IH0_ROWS:_W_HH0_ROWS, :]            # (128, 512)
    w1cat = wl_ref[_W_HH0_ROWS:_W_L1_ROWS, :]            # (256, 512) = [wih1; whh1]

    fc1w = wfc_ref[:, 0:HP]                              # (128, 128)
    fc2w = wfc_ref[:, HP:2 * HP]
    fc3w = wfc_ref[:, 2 * HP:3 * HP]

    b0 = b_ref[:, 0:G4]                                  # (1, 512)
    b1 = b_ref[:, G4:2 * G4]                             # (1, 512)
    fc1b = b_ref[:, 2 * G4:2 * G4 + HP]                  # (1, 128)
    fc2b = b_ref[:, 2 * G4 + HP:2 * G4 + 2 * HP]
    fc3b = b_ref[:, 2 * G4 + 2 * HP:2 * G4 + 3 * HP]

    # Hoisted layer-0 input projection: one (T*BP, 16) @ (16, 512) matmul + bias add.
    xw0 = jnp.dot(x_ref[...], wih0, preferred_element_type=f32) + b0      # (T*BP, 512)
    b1b = jnp.broadcast_to(b1, (BP, G4))                 # hoisted bias broadcast

    def cell(gates, c):
        # Fused gate order (i, f, o, g): one sigmoid over 3*HP lanes, one tanh over HP.
        sig = jax.nn.sigmoid(gates[:, :3 * HP])
        i = sig[:, :HP]
        f = sig[:, HP:2 * HP]
        o = sig[:, 2 * HP:3 * HP]
        g = jnp.tanh(gates[:, 3 * HP:])
        c_new = f * c + i * g
        h_new = o * jnp.tanh(c_new)
        return h_new, c_new

    h1 = jnp.zeros((BP, HP), f32)
    c1 = jnp.zeros((BP, HP), f32)
    h2 = jnp.zeros((BP, HP), f32)
    c2 = jnp.zeros((BP, HP), f32)

    # Fully unrolled recurrence (T small & static). All xw0 slices are aligned (8, 512)
    # sublane tiles; layer 1 is a single fused K=256 dot per step.
    for t in range(T):
        g0 = xw0[t * BP:(t + 1) * BP, :] + jnp.dot(h1, whh0, preferred_element_type=f32)
        h1, c1 = cell(g0, c1)
        h12 = jnp.concatenate([h1, h2], axis=-1)          # (BP, 256)
        g1 = jnp.dot(h12, w1cat, preferred_element_type=f32) + b1b
        h2, c2 = cell(g1, c2)

    # lstm_out[:, -1, :] == h2 at the last step (top layer). FC head, lane-padded.
    z = jnp.maximum(jnp.dot(h2, fc1w, preferred_element_type=f32) + fc1b, 0.0)
    z = jnp.maximum(jnp.dot(z, fc2w, preferred_element_type=f32) + fc2b, 0.0)
    q = jnp.dot(z, fc3w, preferred_element_type=f32) + fc3b
    out_ref[...] = q.astype(out_ref.dtype)                # unmasked (8, 128) store


# ------------------------------------ wrapper ------------------------------------
@jax.jit
def qsteering_forward(x, packed):
    """x: (B, T, INPUT_SIZE) float32 (PyTorch batch_first convention)."""
    B, T, D = x.shape
    BP = ((B + 7) // 8) * 8                               # sublane-pad the batch
    # Pad batch and feature dims, then time-major flatten so each time step is an
    # aligned (BP, D_PAD) sublane slab of the hoisted projection input.
    x_pad = jnp.pad(x, ((0, BP - B), (0, 0), (0, D_PAD - D)))
    x_flat = jnp.transpose(x_pad, (1, 0, 2)).reshape(T * BP, D_PAD)

    args = (x_flat, packed["w_lstm"], packed["w_fc"], packed["b"])
    vmem = pl.BlockSpec(memory_space=pltpu.MemorySpace.VMEM)
    out = pl.pallas_call(
        qsteering_kernel,
        out_shape=jax.ShapeDtypeStruct((BP, OUT_PAD), jnp.float32),
        in_specs=[vmem] * len(args),
        out_specs=vmem,
    )(*args)
    return out[:B, :ACTION_SPACE]


# -------------------- deterministic parameters (PyTorch layout) --------------------
def _xavier_uniform(key, shape):
    fan_out, fan_in = shape
    bound = float(np.sqrt(6.0 / (fan_in + fan_out)))
    return jax.random.uniform(key, shape, jnp.float32, -bound, bound)


def _orthogonal(key, rows, cols):
    a = jax.random.normal(key, (max(rows, cols), min(rows, cols)), jnp.float32)
    q, _ = jnp.linalg.qr(a)
    q = q[:rows, :cols] if rows >= cols else q.T[:rows, :cols]
    return q


def make_raw_params(key):
    """Parameters in native torch.nn.LSTM / nn.Linear layout (gate order i, f, g, o)."""
    H, D, A = HIDDEN_SIZE, INPUT_SIZE, ACTION_SPACE
    ks = jax.random.split(key, 8)
    return {
        "w_ih0": _xavier_uniform(ks[0], (4 * H, D)),
        "w_hh0": _orthogonal(ks[1], 4 * H, H),
        "b_ih0": jnp.zeros((4 * H,), jnp.float32),
        "b_hh0": jnp.zeros((4 * H,), jnp.float32),
        "w_ih1": _xavier_uniform(ks[2], (4 * H, H)),
        "w_hh1": _orthogonal(ks[3], 4 * H, H),
        "b_ih1": jnp.zeros((4 * H,), jnp.float32),
        "b_hh1": jnp.zeros((4 * H,), jnp.float32),
        "fc1w": _xavier_uniform(ks[4], (H, H)),
        "fc1b": jnp.zeros((H,), jnp.float32),
        "fc2w": _xavier_uniform(ks[5], (H, H)),
        "fc2b": jnp.zeros((H,), jnp.float32),
        "fc3w": _xavier_uniform(ks[6], (A, H)),
        "fc3b": jnp.zeros((A,), jnp.float32),
    }


# ---------------- one-time packing: fuse / transpose / lane-pad / slab weights ----------------
def _fuse_gate_weight(w, in_pad, H, Hp):
    """torch (4H, in_dim) in (i,f,g,o) row blocks -> fused (in_pad, 4*Hp) in (i,f,o,g).

    Padding is strictly zero-filled: the padded-lane invariant of the recurrence
    (c_pad = 0.5*c_pad stays 0, h_pad = 0.5*tanh(0) = 0) depends on it.
    """
    in_dim = w.shape[1]
    w4 = w.reshape(4, H, in_dim)
    w4 = jnp.stack([w4[0], w4[1], w4[3], w4[2]], axis=0)      # reorder to (i, f, o, g)
    w4 = jnp.transpose(w4, (0, 2, 1))                          # (4, in_dim, H)
    w4 = jnp.pad(w4, ((0, 0), (0, in_pad - in_dim), (0, Hp - H)))
    return jnp.transpose(w4, (1, 0, 2)).reshape(in_pad, 4 * Hp)


def _fuse_gate_bias(b_ih, b_hh, H, Hp):
    b = (b_ih + b_hh).reshape(4, H)
    b = jnp.stack([b[0], b[1], b[3], b[2]], axis=0)
    b = jnp.pad(b, ((0, 0), (0, Hp - H)))
    return b.reshape(1, 4 * Hp)


def _pack_fc(w, b, in_pad, out_pad):
    wt = jnp.transpose(w)                                      # (in, out)
    wt = jnp.pad(wt, ((0, in_pad - wt.shape[0]), (0, out_pad - wt.shape[1])))
    bb = jnp.pad(b, (0, out_pad - b.shape[0])).reshape(1, out_pad)
    return wt, bb


def pack_params(raw):
    H, D = HIDDEN_SIZE, INPUT_SIZE

    wih0 = _fuse_gate_weight(raw["w_ih0"], D_PAD, H, HP)       # (16, 512)
    whh0 = _fuse_gate_weight(raw["w_hh0"], HP, H, HP)          # (128, 512)
    wih1 = _fuse_gate_weight(raw["w_ih1"], HP, H, HP)          # (128, 512)
    whh1 = _fuse_gate_weight(raw["w_hh1"], HP, H, HP)          # (128, 512)
    w1cat = jnp.concatenate([wih1, whh1], axis=0)              # (256, 512): rows for [h1; h2]
    w_lstm = jnp.concatenate([wih0, whh0, w1cat], axis=0)      # (400, 512)

    b0 = _fuse_gate_bias(raw["b_ih0"], raw["b_hh0"], H, HP)    # (1, 512)
    b1 = _fuse_gate_bias(raw["b_ih1"], raw["b_hh1"], H, HP)    # (1, 512)

    fc1w, fc1b = _pack_fc(raw["fc1w"], raw["fc1b"], HP, HP)
    fc2w, fc2b = _pack_fc(raw["fc2w"], raw["fc2b"], HP, HP)
    fc3w, fc3b = _pack_fc(raw["fc3w"], raw["fc3b"], HP, OUT_PAD)
    w_fc = jnp.concatenate([fc1w, fc2w, fc3w], axis=1)         # (128, 384)

    b_all = jnp.concatenate([b0, b1, fc1b, fc2b, fc3b], axis=1)  # (1, 1408)
    assert b_all.shape == (1, _B_TOTAL)

    return {"w_lstm": w_lstm, "w_fc": w_fc, "b": b_all}


# ------------------------------ pure-JAX reference ------------------------------
def reference_forward(x, raw):
    """Straight port of the PyTorch forward using raw torch-layout parameters."""
    B, T, _ = x.shape
    H = HIDDEN_SIZE

    def cell(x_t, h, c, w_ih, w_hh, b_ih, b_hh):
        gates = x_t @ w_ih.T + h @ w_hh.T + b_ih + b_hh        # (B, 4H), order (i,f,g,o)
        i, f, g, o = jnp.split(gates, 4, axis=-1)
        i = jax.nn.sigmoid(i)
        f = jax.nn.sigmoid(f)
        g = jnp.tanh(g)
        o = jax.nn.sigmoid(o)
        c = f * c + i * g
        return o * jnp.tanh(c), c

    h1 = c1 = h2 = c2 = jnp.zeros((B, H), jnp.float32)
    for t in range(T):
        h1, c1 = cell(x[:, t, :], h1, c1, raw["w_ih0"], raw["w_hh0"],
                      raw["b_ih0"], raw["b_hh0"])
        h2, c2 = cell(h1, h2, c2, raw["w_ih1"], raw["w_hh1"],
                      raw["b_ih1"], raw["b_hh1"])
    z = jnp.maximum(h2 @ raw["fc1w"].T + raw["fc1b"], 0.0)
    z = jnp.maximum(z @ raw["fc2w"].T + raw["fc2b"], 0.0)
    return z @ raw["fc3w"].T + raw["fc3b"]


if __name__ == "__main__":
    key = jax.random.PRNGKey(0)
    pkey, xkey = jax.random.split(key)
    raw = make_raw_params(pkey)
    packed = pack_params(raw)
    x = jax.random.normal(xkey, (BATCH, SEQ_LEN, INPUT_SIZE), jnp.float32)

    q = qsteering_forward(x, packed)
    jax.block_until_ready(q)

    q_ref = reference_forward(x, raw)
    np.testing.assert_allclose(np.asarray(q), np.asarray(q_ref), rtol=1e-5, atol=1e-5)
    assert q.shape == (BATCH, ACTION_SPACE)
    print("KERNEL_OK")
</pallas_src>

<mosaic_0001>
module attributes {stable_mosaic.version = 11 : i64} {
  func.func @qsteering_kernel(%arg0: memref<64x16xf32, #tpu.memory_space<vmem>>, %arg1: memref<400x512xf32, #tpu.memory_space<vmem>>, %arg2: memref<128x384xf32, #tpu.memory_space<vmem>>, %arg3: memref<1x1408xf32, #tpu.memory_space<vmem>>, %arg4: memref<8x128xf32, #tpu.memory_space<vmem>>) attributes {dimension_semantics = [], scalar_prefetch = 0 : i64, scratch_operands = 0 : i64, tpu.core_type = #tpu.core_type<tc>} {
    %c0 = arith.constant 0 : index
    %c0_0 = arith.constant 0 : index
    %0 = vector.load %arg1[%c0, %c0_0] : memref<400x512xf32, #tpu.memory_space<vmem>>, vector<16x512xf32>
    %c16 = arith.constant 16 : index
    %c0_1 = arith.constant 0 : index
    %1 = vector.load %arg1[%c16, %c0_1] : memref<400x512xf32, #tpu.memory_space<vmem>>, vector<128x512xf32>
    %c144 = arith.constant 144 : index
    %c0_2 = arith.constant 0 : index
    %2 = vector.load %arg1[%c144, %c0_2] : memref<400x512xf32, #tpu.memory_space<vmem>>, vector<256x512xf32>
    %c0_3 = arith.constant 0 : index
    %c0_4 = arith.constant 0 : index
    %3 = vector.load %arg2[%c0_3, %c0_4] : memref<128x384xf32, #tpu.memory_space<vmem>>, vector<128x128xf32>
    %c0_5 = arith.constant 0 : index
    %c128 = arith.constant 128 : index
    %4 = vector.load %arg2[%c0_5, %c128] : memref<128x384xf32, #tpu.memory_space<vmem>>, vector<128x128xf32>
    %c0_6 = arith.constant 0 : index
    %c256 = arith.constant 256 : index
    %5 = vector.load %arg2[%c0_6, %c256] : memref<128x384xf32, #tpu.memory_space<vmem>>, vector<128x128xf32>
    %c0_7 = arith.constant 0 : index
    %c0_8 = arith.constant 0 : index
    %6 = vector.load %arg3[%c0_7, %c0_8] : memref<1x1408xf32, #tpu.memory_space<vmem>>, vector<1x512xf32>
    %c0_9 = arith.constant 0 : index
    %c512 = arith.constant 512 : index
    %7 = vector.load %arg3[%c0_9, %c512] : memref<1x1408xf32, #tpu.memory_space<vmem>>, vector<1x512xf32>
    %c0_10 = arith.constant 0 : index
    %c1024 = arith.constant 1024 : index
    %8 = vector.load %arg3[%c0_10, %c1024] : memref<1x1408xf32, #tpu.memory_space<vmem>>, vector<1x128xf32>
    %c0_11 = arith.constant 0 : index
    %c1152 = arith.constant 1152 : index
    %9 = vector.load %arg3[%c0_11, %c1152] : memref<1x1408xf32, #tpu.memory_space<vmem>>, vector<1x128xf32>
    %c0_12 = arith.constant 0 : index
    %c1280 = arith.constant 1280 : index
    %10 = vector.load %arg3[%c0_12, %c1280] : memref<1x1408xf32, #tpu.memory_space<vmem>>, vector<1x128xf32>
    %c0_13 = arith.constant 0 : index
    %c0_14 = arith.constant 0 : index
    %11 = vector.load %arg0[%c0_13, %c0_14] : memref<64x16xf32, #tpu.memory_space<vmem>>, vector<64x16xf32>
    %cst = arith.constant dense<0.000000e+00> : vector<64x512xf32>
    %12 = tpu.matmul %11, %0, %cst {dimension_numbers = #tpu.dot_dimension_numbers<[1], [0], [0], [1], [0, 0, 1, 1], [], []>} : vector<64x16xf32>, vector<16x512xf32>, vector<64x512xf32> -> vector<64x512xf32>
    %13 = vector.broadcast %6 : vector<1x512xf32> to vector<64x512xf32>
    %14 = arith.addf %12, %13 : vector<64x512xf32>
    %15 = vector.shape_cast %7 : vector<1x512xf32> to vector<1x512xf32>
    %16 = vector.broadcast %15 : vector<1x512xf32> to vector<8x512xf32>
    %cst_15 = arith.constant 0.000000e+00 : f32
    %17 = vector.broadcast %cst_15 : f32 to vector<8x128xf32>
    %cst_16 = arith.constant 0.000000e+00 : f32
    %18 = vector.broadcast %cst_16 : f32 to vector<8x128xf32>
    %cst_17 = arith.constant 0.000000e+00 : f32
    %19 = vector.broadcast %cst_17 : f32 to vector<8x128xf32>
    %cst_18 = arith.constant 0.000000e+00 : f32
    %20 = vector.broadcast %cst_18 : f32 to vector<8x128xf32>
    %21 = vector.extract_strided_slice %14 {offsets = [0, 0], sizes = [8, 512], strides = [1, 1]} : vector<64x512xf32> to vector<8x512xf32>
    %cst_19 = arith.constant dense<0.000000e+00> : vector<8x512xf32>
    %22 = tpu.matmul %17, %1, %cst_19 {dimension_numbers = #tpu.dot_dimension_numbers<[1], [0], [0], [1], [0, 0, 1, 1], [], []>} : vector<8x128xf32>, vector<128x512xf32>, vector<8x512xf32> -> vector<8x512xf32>
    %23 = arith.addf %21, %22 : vector<8x512xf32>
    %24 = vector.extract_strided_slice %23 {offsets = [0, 0], sizes = [8, 384], strides = [1, 1]} : vector<8x512xf32> to vector<8x384xf32>
    %25 = arith.negf %24 : vector<8x384xf32>
    %26 = math.exp %25 : vector<8x384xf32>
    %cst_20 = arith.constant 1.000000e+00 : f32
    %27 = vector.broadcast %cst_20 : f32 to vector<8x384xf32>
    %28 = arith.addf %27, %26 : vector<8x384xf32>
    %29 = arith.divf %27, %28 : vector<8x384xf32>
    %30 = vector.extract_strided_slice %29 {offsets = [0, 0], sizes = [8, 128], strides = [1, 1]} : vector<8x384xf32> to vector<8x128xf32>
    %31 = vector.extract_strided_slice %29 {offsets = [0, 128], sizes = [8, 128], strides = [1, 1]} : vector<8x384xf32> to vector<8x128xf32>
    %32 = vector.extract_strided_slice %29 {offsets = [0, 256], sizes = [8, 128], strides = [1, 1]} : vector<8x384xf32> to vector<8x128xf32>
    %33 = vector.extract_strided_slice %23 {offsets = [0, 384], sizes = [8, 128], strides = [1, 1]} : vector<8x512xf32> to vector<8x128xf32>
    %34 = math.tanh %33 : vector<8x128xf32>
    %35 = arith.mulf %31, %18 : vector<8x128xf32>
    %36 = arith.mulf %30, %34 : vector<8x128xf32>
    %37 = arith.addf %35, %36 : vector<8x128xf32>
    %38 = math.tanh %37 : vector<8x128xf32>
    %39 = arith.mulf %32, %38 : vector<8x128xf32>
    %40 = tpu.concatenate %39, %19 in 1 : vector<8x128xf32>, vector<8x128xf32> -> vector<8x256xf32>
    %cst_21 = arith.constant dense<0.000000e+00> : vector<8x512xf32>
    %41 = tpu.matmul %40, %2, %cst_21 {dimension_numbers = #tpu.dot_dimension_numbers<[1], [0], [0], [1], [0, 0, 1, 1], [], []>} : vector<8x256xf32>, vector<256x512xf32>, vector<8x512xf32> -> vector<8x512xf32>
    %42 = arith.addf %41, %16 : vector<8x512xf32>
    %43 = vector.extract_strided_slice %42 {offsets = [0, 0], sizes = [8, 384], strides = [1, 1]} : vector<8x512xf32> to vector<8x384xf32>
    %44 = arith.negf %43 : vector<8x384xf32>
    %45 = math.exp %44 : vector<8x384xf32>
    %cst_22 = arith.constant 1.000000e+00 : f32
    %46 = vector.broadcast %cst_22 : f32 to vector<8x384xf32>
    %47 = arith.addf %46, %45 : vector<8x384xf32>
    %48 = arith.divf %46, %47 : vector<8x384xf32>
    %49 = vector.extract_strided_slice %48 {offsets = [0, 0], sizes = [8, 128], strides = [1, 1]} : vector<8x384xf32> to vector<8x128xf32>
    %50 = vector.extract_strided_slice %48 {offsets = [0, 128], sizes = [8, 128], strides = [1, 1]} : vector<8x384xf32> to vector<8x128xf32>
    %51 = vector.extract_strided_slice %48 {offsets = [0, 256], sizes = [8, 128], strides = [1, 1]} : vector<8x384xf32> to vector<8x128xf32>
    %52 = vector.extract_strided_slice %42 {offsets = [0, 384], sizes = [8, 128], strides = [1, 1]} : vector<8x512xf32> to vector<8x128xf32>
    %53 = math.tanh %52 : vector<8x128xf32>
    %54 = arith.mulf %50, %20 : vector<8x128xf32>
    %55 = arith.mulf %49, %53 : vector<8x128xf32>
    %56 = arith.addf %54, %55 : vector<8x128xf32>
    %57 = math.tanh %56 : vector<8x128xf32>
    %58 = arith.mulf %51, %57 : vector<8x128xf32>
    %59 = vector.extract_strided_slice %14 {offsets = [8, 0], sizes = [8, 512], strides = [1, 1]} : vector<64x512xf32> to vector<8x512xf32>
    %cst_23 = arith.constant dense<0.000000e+00> : vector<8x512xf32>
    %60 = tpu.matmul %39, %1, %cst_23 {dimension_numbers = #tpu.dot_dimension_numbers<[1], [0], [0], [1], [0, 0, 1, 1], [], []>} : vector<8x128xf32>, vector<128x512xf32>, vector<8x512xf32> -> vector<8x512xf32>
    %61 = arith.addf %59, %60 : vector<8x512xf32>
    %62 = vector.extract_strided_slice %61 {offsets = [0, 0], sizes = [8, 384], strides = [1, 1]} : vector<8x512xf32> to vector<8x384xf32>
    %63 = arith.negf %62 : vector<8x384xf32>
    %64 = math.exp %63 : vector<8x384xf32>
    %cst_24 = arith.constant 1.000000e+00 : f32
    %65 = vector.broadcast %cst_24 : f32 to vector<8x384xf32>
    %66 = arith.addf %65, %64 : vector<8x384xf32>
    %67 = arith.divf %65, %66 : vector<8x384xf32>
    %68 = vector.extract_strided_slice %67 {offsets = [0, 0], sizes = [8, 128], strides = [1, 1]} : vector<8x384xf32> to vector<8x128xf32>
    %69 = vector.extract_strided_slice %67 {offsets = [0, 128], sizes = [8, 128], strides = [1, 1]} : vector<8x384xf32> to vector<8x128xf32>
    %70 = vector.extract_strided_slice %67 {offsets = [0, 256], sizes = [8, 128], strides = [1, 1]} : vector<8x384xf32> to vector<8x128xf32>
    %71 = vector.extract_strided_slice %61 {offsets = [0, 384], sizes = [8, 128], strides = [1, 1]} : vector<8x512xf32> to vector<8x128xf32>
    %72 = math.tanh %71 : vector<8x128xf32>
    %73 = arith.mulf %69, %37 : vector<8x128xf32>
    %74 = arith.mulf %68, %72 : vector<8x128xf32>
    %75 = arith.addf %73, %74 : vector<8x128xf32>
    %76 = math.tanh %75 : vector<8x128xf32>
    %77 = arith.mulf %70, %76 : vector<8x128xf32>
    %78 = tpu.concatenate %77, %58 in 1 : vector<8x128xf32>, vector<8x128xf32> -> vector<8x256xf32>
    %cst_25 = arith.constant dense<0.000000e+00> : vector<8x512xf32>
    %79 = tpu.matmul %78, %2, %cst_25 {dimension_numbers = #tpu.dot_dimension_numbers<[1], [0], [0], [1], [0, 0, 1, 1], [], []>} : vector<8x256xf32>, vector<256x512xf32>, vector<8x512xf32> -> vector<8x512xf32>
    %80 = arith.addf %79, %16 : vector<8x512xf32>
    %81 = vector.extract_strided_slice %80 {offsets = [0, 0], sizes = [8, 384], strides = [1, 1]} : vector<8x512xf32> to vector<8x384xf32>
    %82 = arith.negf %81 : vector<8x384xf32>
    %83 = math.exp %82 : vector<8x384xf32>
    %cst_26 = arith.constant 1.000000e+00 : f32
    %84 = vector.broadcast %cst_26 : f32 to vector<8x384xf32>
    %85 = arith.addf %84, %83 : vector<8x384xf32>
    %86 = arith.divf %84, %85 : vector<8x384xf32>
    %87 = vector.extract_strided_slice %86 {offsets = [0, 0], sizes = [8, 128], strides = [1, 1]} : vector<8x384xf32> to vector<8x128xf32>
    %88 = vector.extract_strided_slice %86 {offsets = [0, 128], sizes = [8, 128], strides = [1, 1]} : vector<8x384xf32> to vector<8x128xf32>
    %89 = vector.extract_strided_slice %86 {offsets = [0, 256], sizes = [8, 128], strides = [1, 1]} : vector<8x384xf32> to vector<8x128xf32>
    %90 = vector.extract_strided_slice %80 {offsets = [0, 384], sizes = [8, 128], strides = [1, 1]} : vector<8x512xf32> to vector<8x128xf32>
    %91 = math.tanh %90 : vector<8x128xf32>
    %92 = arith.mulf %88, %56 : vector<8x128xf32>
    %93 = arith.mulf %87, %91 : vector<8x128xf32>
    %94 = arith.addf %92, %93 : vector<8x128xf32>
    %95 = math.tanh %94 : vector<8x128xf32>
    %96 = arith.mulf %89, %95 : vector<8x128xf32>
    %97 = vector.extract_strided_slice %14 {offsets = [16, 0], sizes = [8, 512], strides = [1, 1]} : vector<64x512xf32> to vector<8x512xf32>
    %cst_27 = arith.constant dense<0.000000e+00> : vector<8x512xf32>
    %98 = tpu.matmul %77, %1, %cst_27 {dimension_numbers = #tpu.dot_dimension_numbers<[1], [0], [0], [1], [0, 0, 1, 1], [], []>} : vector<8x128xf32>, vector<128x512xf32>, vector<8x512xf32> -> vector<8x512xf32>
    %99 = arith.addf %97, %98 : vector<8x512xf32>
    %100 = vector.extract_strided_slice %99 {offsets = [0, 0], sizes = [8, 384], strides = [1, 1]} : vector<8x512xf32> to vector<8x384xf32>
    %101 = arith.negf %100 : vector<8x384xf32>
    %102 = math.exp %101 : vector<8x384xf32>
    %cst_28 = arith.constant 1.000000e+00 : f32
    %103 = vector.broadcast %cst_28 : f32 to vector<8x384xf32>
    %104 = arith.addf %103, %102 : vector<8x384xf32>
    %105 = arith.divf %103, %104 : vector<8x384xf32>
    %106 = vector.extract_strided_slice %105 {offsets = [0, 0], sizes = [8, 128], strides = [1, 1]} : vector<8x384xf32> to vector<8x128xf32>
    %107 = vector.extract_strided_slice %105 {offsets = [0, 128], sizes = [8, 128], strides = [1, 1]} : vector<8x384xf32> to vector<8x128xf32>
    %108 = vector.extract_strided_slice %105 {offsets = [0, 256], sizes = [8, 128], strides = [1, 1]} : vector<8x384xf32> to vector<8x128xf32>
    %109 = vector.extract_strided_slice %99 {offsets = [0, 384], sizes = [8, 128], strides = [1, 1]} : vector<8x512xf32> to vector<8x128xf32>
    %110 = math.tanh %109 : vector<8x128xf32>
    %111 = arith.mulf %107, %75 : vector<8x128xf32>
    %112 = arith.mulf %106, %110 : vector<8x128xf32>
    %113 = arith.addf %111, %112 : vector<8x128xf32>
    %114 = math.tanh %113 : vector<8x128xf32>
    %115 = arith.mulf %108, %114 : vector<8x128xf32>
    %116 = tpu.concatenate %115, %96 in 1 : vector<8x128xf32>, vector<8x128xf32> -> vector<8x256xf32>
    %cst_29 = arith.constant dense<0.000000e+00> : vector<8x512xf32>
    %117 = tpu.matmul %116, %2, %cst_29 {dimension_numbers = #tpu.dot_dimension_numbers<[1], [0], [0], [1], [0, 0, 1, 1], [], []>} : vector<8x256xf32>, vector<256x512xf32>, vector<8x512xf32> -> vector<8x512xf32>
    %118 = arith.addf %117, %16 : vector<8x512xf32>
    %119 = vector.extract_strided_slice %118 {offsets = [0, 0], sizes = [8, 384], strides = [1, 1]} : vector<8x512xf32> to vector<8x384xf32>
    %120 = arith.negf %119 : vector<8x384xf32>
    %121 = math.exp %120 : vector<8x384xf32>
    %cst_30 = arith.constant 1.000000e+00 : f32
    %122 = vector.broadcast %cst_30 : f32 to vector<8x384xf32>
    %123 = arith.addf %122, %121 : vector<8x384xf32>
    %124 = arith.divf %122, %123 : vector<8x384xf32>
    %125 = vector.extract_strided_slice %124 {offsets = [0, 0], sizes = [8, 128], strides = [1, 1]} : vector<8x384xf32> to vector<8x128xf32>
    %126 = vector.extract_strided_slice %124 {offsets = [0, 128], sizes = [8, 128], strides = [1, 1]} : vector<8x384xf32> to vector<8x128xf32>
    %127 = vector.extract_strided_slice %124 {offsets = [0, 256], sizes = [8, 128], strides = [1, 1]} : vector<8x384xf32> to vector<8x128xf32>
    %128 = vector.extract_strided_slice %118 {offsets = [0, 384], sizes = [8, 128], strides = [1, 1]} : vector<8x512xf32> to vector<8x128xf32>
    %129 = math.tanh %128 : vector<8x128xf32>
    %130 = arith.mulf %126, %94 : vector<8x128xf32>
    %131 = arith.mulf %125, %129 : vector<8x128xf32>
    %132 = arith.addf %130, %131 : vector<8x128xf32>
    %133 = math.tanh %132 : vector<8x128xf32>
    %134 = arith.mulf %127, %133 : vector<8x128xf32>
    %135 = vector.extract_strided_slice %14 {offsets = [24, 0], sizes = [8, 512], strides = [1, 1]} : vector<64x512xf32> to vector<8x512xf32>
    %cst_31 = arith.constant dense<0.000000e+00> : vector<8x512xf32>
    %136 = tpu.matmul %115, %1, %cst_31 {dimension_numbers = #tpu.dot_dimension_numbers<[1], [0], [0], [1], [0, 0, 1, 1], [], []>} : vector<8x128xf32>, vector<128x512xf32>, vector<8x512xf32> -> vector<8x512xf32>
    %137 = arith.addf %135, %136 : vector<8x512xf32>
    %138 = vector.extract_strided_slice %137 {offsets = [0, 0], sizes = [8, 384], strides = [1, 1]} : vector<8x512xf32> to vector<8x384xf32>
    %139 = arith.negf %138 : vector<8x384xf32>
    %140 = math.exp %139 : vector<8x384xf32>
    %cst_32 = arith.constant 1.000000e+00 : f32
    %141 = vector.broadcast %cst_32 : f32 to vector<8x384xf32>
    %142 = arith.addf %141, %140 : vector<8x384xf32>
    %143 = arith.divf %141, %142 : vector<8x384xf32>
    %144 = vector.extract_strided_slice %143 {offsets = [0, 0], sizes = [8, 128], strides = [1, 1]} : vector<8x384xf32> to vector<8x128xf32>
    %145 = vector.extract_strided_slice %143 {offsets = [0, 128], sizes = [8, 128], strides = [1, 1]} : vector<8x384xf32> to vector<8x128xf32>
    %146 = vector.extract_strided_slice %143 {offsets = [0, 256], sizes = [8, 128], strides = [1, 1]} : vector<8x384xf32> to vector<8x128xf32>
    %147 = vector.extract_strided_slice %137 {offsets = [0, 384], sizes = [8, 128], strides = [1, 1]} : vector<8x512xf32> to vector<8x128xf32>
    %148 = math.tanh %147 : vector<8x128xf32>
    %149 = arith.mulf %145, %113 : vector<8x128xf32>
    %150 = arith.mulf %144, %148 : vector<8x128xf32>
    %151 = arith.addf %149, %150 : vector<8x128xf32>
    %152 = math.tanh %151 : vector<8x128xf32>
    %153 = arith.mulf %146, %152 : vector<8x128xf32>
    %154 = tpu.concatenate %153, %134 in 1 : vector<8x128xf32>, vector<8x128xf32> -> vector<8x256xf32>
    %cst_33 = arith.constant dense<0.000000e+00> : vector<8x512xf32>
    %155 = tpu.matmul %154, %2, %cst_33 {dimension_numbers = #tpu.dot_dimension_numbers<[1], [0], [0], [1], [0, 0, 1, 1], [], []>} : vector<8x256xf32>, vector<256x512xf32>, vector<8x512xf32> -> vector<8x512xf32>
    %156 = arith.addf %155, %16 : vector<8x512xf32>
    %157 = vector.extract_strided_slice %156 {offsets = [0, 0], sizes = [8, 384], strides = [1, 1]} : vector<8x512xf32> to vector<8x384xf32>
    %158 = arith.negf %157 : vector<8x384xf32>
    %159 = math.exp %158 : vector<8x384xf32>
    %cst_34 = arith.constant 1.000000e+00 : f32
    %160 = vector.broadcast %cst_34 : f32 to vector<8x384xf32>
    %161 = arith.addf %160, %159 : vector<8x384xf32>
    %162 = arith.divf %160, %161 : vector<8x384xf32>
    %163 = vector.extract_strided_slice %162 {offsets = [0, 0], sizes = [8, 128], strides = [1, 1]} : vector<8x384xf32> to vector<8x128xf32>
    %164 = vector.extract_strided_slice %162 {offsets = [0, 128], sizes = [8, 128], strides = [1, 1]} : vector<8x384xf32> to vector<8x128xf32>
    %165 = vector.extract_strided_slice %162 {offsets = [0, 256], sizes = [8, 128], strides = [1, 1]} : vector<8x384xf32> to vector<8x128xf32>
    %166 = vector.extract_strided_slice %156 {offsets = [0, 384], sizes = [8, 128], strides = [1, 1]} : vector<8x512xf32> to vector<8x128xf32>
    %167 = math.tanh %166 : vector<8x128xf32>
    %168 = arith.mulf %164, %132 : vector<8x128xf32>
    %169 = arith.mulf %163, %167 : vector<8x128xf32>
    %170 = arith.addf %168, %169 : vector<8x128xf32>
    %171 = math.tanh %170 : vector<8x128xf32>
    %172 = arith.mulf %165, %171 : vector<8x128xf32>
    %173 = vector.extract_strided_slice %14 {offsets = [32, 0], sizes = [8, 512], strides = [1, 1]} : vector<64x512xf32> to vector<8x512xf32>
    %cst_35 = arith.constant dense<0.000000e+00> : vector<8x512xf32>
    %174 = tpu.matmul %153, %1, %cst_35 {dimension_numbers = #tpu.dot_dimension_numbers<[1], [0], [0], [1], [0, 0, 1, 1], [], []>} : vector<8x128xf32>, vector<128x512xf32>, vector<8x512xf32> -> vector<8x512xf32>
    %175 = arith.addf %173, %174 : vector<8x512xf32>
    %176 = vector.extract_strided_slice %175 {offsets = [0, 0], sizes = [8, 384], strides = [1, 1]} : vector<8x512xf32> to vector<8x384xf32>
    %177 = arith.negf %176 : vector<8x384xf32>
    %178 = math.exp %177 : vector<8x384xf32>
    %cst_36 = arith.constant 1.000000e+00 : f32
    %179 = vector.broadcast %cst_36 : f32 to vector<8x384xf32>
    %180 = arith.addf %179, %178 : vector<8x384xf32>
    %181 = arith.divf %179, %180 : vector<8x384xf32>
    %182 = vector.extract_strided_slice %181 {offsets = [0, 0], sizes = [8, 128], strides = [1, 1]} : vector<8x384xf32> to vector<8x128xf32>
    %183 = vector.extract_strided_slice %181 {offsets = [0, 128], sizes = [8, 128], strides = [1, 1]} : vector<8x384xf32> to vector<8x128xf32>
    %184 = vector.extract_strided_slice %181 {offsets = [0, 256], sizes = [8, 128], strides = [1, 1]} : vector<8x384xf32> to vector<8x128xf32>
    %185 = vector.extract_strided_slice %175 {offsets = [0, 384], sizes = [8, 128], strides = [1, 1]} : vector<8x512xf32> to vector<8x128xf32>
    %186 = math.tanh %185 : vector<8x128xf32>
    %187 = arith.mulf %183, %151 : vector<8x128xf32>
    %188 = arith.mulf %182, %186 : vector<8x128xf32>
    %189 = arith.addf %187, %188 : vector<8x128xf32>
    %190 = math.tanh %189 : vector<8x128xf32>
    %191 = arith.mulf %184, %190 : vector<8x128xf32>
    %192 = tpu.concatenate %191, %172 in 1 : vector<8x128xf32>, vector<8x128xf32> -> vector<8x256xf32>
    %cst_37 = arith.constant dense<0.000000e+00> : vector<8x512xf32>
    %193 = tpu.matmul %192, %2, %cst_37 {dimension_numbers = #tpu.dot_dimension_numbers<[1], [0], [0], [1], [0, 0, 1, 1], [], []>} : vector<8x256xf32>, vector<256x512xf32>, vector<8x512xf32> -> vector<8x512xf32>
    %194 = arith.addf %193, %16 : vector<8x512xf32>
    %195 = vector.extract_strided_slice %194 {offsets = [0, 0], sizes = [8, 384], strides = [1, 1]} : vector<8x512xf32> to vector<8x384xf32>
    %196 = arith.negf %195 : vector<8x384xf32>
    %197 = math.exp %196 : vector<8x384xf32>
    %cst_38 = arith.constant 1.000000e+00 : f32
    %198 = vector.broadcast %cst_38 : f32 to vector<8x384xf32>
    %199 = arith.addf %198, %197 : vector<8x384xf32>
    %200 = arith.divf %198, %199 : vector<8x384xf32>
    %201 = vector.extract_strided_slice %200 {offsets = [0, 0], sizes = [8, 128], strides = [1, 1]} : vector<8x384xf32> to vector<8x128xf32>
    %202 = vector.extract_strided_slice %200 {offsets = [0, 128], sizes = [8, 128], strides = [1, 1]} : vector<8x384xf32> to vector<8x128xf32>
    %203 = vector.extract_strided_slice %200 {offsets = [0, 256], sizes = [8, 128], strides = [1, 1]} : vector<8x384xf32> to vector<8x128xf32>
    %204 = vector.extract_strided_slice %194 {offsets = [0, 384], sizes = [8, 128], strides = [1, 1]} : vector<8x512xf32> to vector<8x128xf32>
    %205 = math.tanh %204 : vector<8x128xf32>
    %206 = arith.mulf %202, %170 : vector<8x128xf32>
    %207 = arith.mulf %201, %205 : vector<8x128xf32>
    %208 = arith.addf %206, %207 : vector<8x128xf32>
    %209 = math.tanh %208 : vector<8x128xf32>
    %210 = arith.mulf %203, %209 : vector<8x128xf32>
    %211 = vector.extract_strided_slice %14 {offsets = [40, 0], sizes = [8, 512], strides = [1, 1]} : vector<64x512xf32> to vector<8x512xf32>
    %cst_39 = arith.constant dense<0.000000e+00> : vector<8x512xf32>
    %212 = tpu.matmul %191, %1, %cst_39 {dimension_numbers = #tpu.dot_dimension_numbers<[1], [0], [0], [1], [0, 0, 1, 1], [], []>} : vector<8x128xf32>, vector<128x512xf32>, vector<8x512xf32> -> vector<8x512xf32>
    %213 = arith.addf %211, %212 : vector<8x512xf32>
    %214 = vector.extract_strided_slice %213 {offsets = [0, 0], sizes = [8, 384], strides = [1, 1]} : vector<8x512xf32> to vector<8x384xf32>
    %215 = arith.negf %214 : vector<8x384xf32>
    %216 = math.exp %215 : vector<8x384xf32>
    %cst_40 = arith.constant 1.000000e+00 : f32
    %217 = vector.broadcast %cst_40 : f32 to vector<8x384xf32>
    %218 = arith.addf %217, %216 : vector<8x384xf32>
    %219 = arith.divf %217, %218 : vector<8x384xf32>
    %220 = vector.extract_strided_slice %219 {offsets = [0, 0], sizes = [8, 128], strides = [1, 1]} : vector<8x384xf32> to vector<8x128xf32>
    %221 = vector.extract_strided_slice %219 {offsets = [0, 128], sizes = [8, 128], strides = [1, 1]} : vector<8x384xf32> to vector<8x128xf32>
    %222 = vector.extract_strided_slice %219 {offsets = [0, 256], sizes = [8, 128], strides = [1, 1]} : vector<8x384xf32> to vector<8x128xf32>
    %223 = vector.extract_strided_slice %213 {offsets = [0, 384], sizes = [8, 128], strides = [1, 1]} : vector<8x512xf32> to vector<8x128xf32>
    %224 = math.tanh %223 : vector<8x128xf32>
    %225 = arith.mulf %221, %189 : vector<8x128xf32>
    %226 = arith.mulf %220, %224 : vector<8x128xf32>
    %227 = arith.addf %225, %226 : vector<8x128xf32>
    %228 = math.tanh %227 : vector<8x128xf32>
    %229 = arith.mulf %222, %228 : vector<8x128xf32>
    %230 = tpu.concatenate %229, %210 in 1 : vector<8x128xf32>, vector<8x128xf32> -> vector<8x256xf32>
    %cst_41 = arith.constant dense<0.000000e+00> : vector<8x512xf32>
    %231 = tpu.matmul %230, %2, %cst_41 {dimension_numbers = #tpu.dot_dimension_numbers<[1], [0], [0], [1], [0, 0, 1, 1], [], []>} : vector<8x256xf32>, vector<256x512xf32>, vector<8x512xf32> -> vector<8x512xf32>
    %232 = arith.addf %231, %16 : vector<8x512xf32>
    %233 = vector.extract_strided_slice %232 {offsets = [0, 0], sizes = [8, 384], strides = [1, 1]} : vector<8x512xf32> to vector<8x384xf32>
    %234 = arith.negf %233 : vector<8x384xf32>
    %235 = math.exp %234 : vector<8x384xf32>
    %cst_42 = arith.constant 1.000000e+00 : f32
    %236 = vector.broadcast %cst_42 : f32 to vector<8x384xf32>
    %237 = arith.addf %236, %235 : vector<8x384xf32>
    %238 = arith.divf %236, %237 : vector<8x384xf32>
    %239 = vector.extract_strided_slice %238 {offsets = [0, 0], sizes = [8, 128], strides = [1, 1]} : vector<8x384xf32> to vector<8x128xf32>
    %240 = vector.extract_strided_slice %238 {offsets = [0, 128], sizes = [8, 128], strides = [1, 1]} : vector<8x384xf32> to vector<8x128xf32>
    %241 = vector.extract_strided_slice %238 {offsets = [0, 256], sizes = [8, 128], strides = [1, 1]} : vector<8x384xf32> to vector<8x128xf32>
    %242 = vector.extract_strided_slice %232 {offsets = [0, 384], sizes = [8, 128], strides = [1, 1]} : vector<8x512xf32> to vector<8x128xf32>
    %243 = math.tanh %242 : vector<8x128xf32>
    %244 = arith.mulf %240, %208 : vector<8x128xf32>
    %245 = arith.mulf %239, %243 : vector<8x128xf32>
    %246 = arith.addf %244, %245 : vector<8x128xf32>
    %247 = math.tanh %246 : vector<8x128xf32>
    %248 = arith.mulf %241, %247 : vector<8x128xf32>
    %249 = vector.extract_strided_slice %14 {offsets = [48, 0], sizes = [8, 512], strides = [1, 1]} : vector<64x512xf32> to vector<8x512xf32>
    %cst_43 = arith.constant dense<0.000000e+00> : vector<8x512xf32>
    %250 = tpu.matmul %229, %1, %cst_43 {dimension_numbers = #tpu.dot_dimension_numbers<[1], [0], [0], [1], [0, 0, 1, 1], [], []>} : vector<8x128xf32>, vector<128x512xf32>, vector<8x512xf32> -> vector<8x512xf32>
    %251 = arith.addf %249, %250 : vector<8x512xf32>
    %252 = vector.extract_strided_slice %251 {offsets = [0, 0], sizes = [8, 384], strides = [1, 1]} : vector<8x512xf32> to vector<8x384xf32>
    %253 = arith.negf %252 : vector<8x384xf32>
    %254 = math.exp %253 : vector<8x384xf32>
    %cst_44 = arith.constant 1.000000e+00 : f32
    %255 = vector.broadcast %cst_44 : f32 to vector<8x384xf32>
    %256 = arith.addf %255, %254 : vector<8x384xf32>
    %257 = arith.divf %255, %256 : vector<8x384xf32>
    %258 = vector.extract_strided_slice %257 {offsets = [0, 0], sizes = [8, 128], strides = [1, 1]} : vector<8x384xf32> to vector<8x128xf32>
    %259 = vector.extract_strided_slice %257 {offsets = [0, 128], sizes = [8, 128], strides = [1, 1]} : vector<8x384xf32> to vector<8x128xf32>
    %260 = vector.extract_strided_slice %257 {offsets = [0, 256], sizes = [8, 128], strides = [1, 1]} : vector<8x384xf32> to vector<8x128xf32>
    %261 = vector.extract_strided_slice %251 {offsets = [0, 384], sizes = [8, 128], strides = [1, 1]} : vector<8x512xf32> to vector<8x128xf32>
    %262 = math.tanh %261 : vector<8x128xf32>
    %263 = arith.mulf %259, %227 : vector<8x128xf32>
    %264 = arith.mulf %258, %262 : vector<8x128xf32>
    %265 = arith.addf %263, %264 : vector<8x128xf32>
    %266 = math.tanh %265 : vector<8x128xf32>
    %267 = arith.mulf %260, %266 : vector<8x128xf32>
    %268 = tpu.concatenate %267, %248 in 1 : vector<8x128xf32>, vector<8x128xf32> -> vector<8x256xf32>
    %cst_45 = arith.constant dense<0.000000e+00> : vector<8x512xf32>
    %269 = tpu.matmul %268, %2, %cst_45 {dimension_numbers = #tpu.dot_dimension_numbers<[1], [0], [0], [1], [0, 0, 1, 1], [], []>} : vector<8x256xf32>, vector<256x512xf32>, vector<8x512xf32> -> vector<8x512xf32>
    %270 = arith.addf %269, %16 : vector<8x512xf32>
    %271 = vector.extract_strided_slice %270 {offsets = [0, 0], sizes = [8, 384], strides = [1, 1]} : vector<8x512xf32> to vector<8x384xf32>
    %272 = arith.negf %271 : vector<8x384xf32>
    %273 = math.exp %272 : vector<8x384xf32>
    %cst_46 = arith.constant 1.000000e+00 : f32
    %274 = vector.broadcast %cst_46 : f32 to vector<8x384xf32>
    %275 = arith.addf %274, %273 : vector<8x384xf32>
    %276 = arith.divf %274, %275 : vector<8x384xf32>
    %277 = vector.extract_strided_slice %276 {offsets = [0, 0], sizes = [8, 128], strides = [1, 1]} : vector<8x384xf32> to vector<8x128xf32>
    %278 = vector.extract_strided_slice %276 {offsets = [0, 128], sizes = [8, 128], strides = [1, 1]} : vector<8x384xf32> to vector<8x128xf32>
    %279 = vector.extract_strided_slice %276 {offsets = [0, 256], sizes = [8, 128], strides = [1, 1]} : vector<8x384xf32> to vector<8x128xf32>
    %280 = vector.extract_strided_slice %270 {offsets = [0, 384], sizes = [8, 128], strides = [1, 1]} : vector<8x512xf32> to vector<8x128xf32>
    %281 = math.tanh %280 : vector<8x128xf32>
    %282 = arith.mulf %278, %246 : vector<8x128xf32>
    %283 = arith.mulf %277, %281 : vector<8x128xf32>
    %284 = arith.addf %282, %283 : vector<8x128xf32>
    %285 = math.tanh %284 : vector<8x128xf32>
    %286 = arith.mulf %279, %285 : vector<8x128xf32>
    %287 = vector.extract_strided_slice %14 {offsets = [56, 0], sizes = [8, 512], strides = [1, 1]} : vector<64x512xf32> to vector<8x512xf32>
    %cst_47 = arith.constant dense<0.000000e+00> : vector<8x512xf32>
    %288 = tpu.matmul %267, %1, %cst_47 {dimension_numbers = #tpu.dot_dimension_numbers<[1], [0], [0], [1], [0, 0, 1, 1], [], []>} : vector<8x128xf32>, vector<128x512xf32>, vector<8x512xf32> -> vector<8x512xf32>
    %289 = arith.addf %287, %288 : vector<8x512xf32>
    %290 = vector.extract_strided_slice %289 {offsets = [0, 0], sizes = [8, 384], strides = [1, 1]} : vector<8x512xf32> to vector<8x384xf32>
    %291 = arith.negf %290 : vector<8x384xf32>
    %292 = math.exp %291 : vector<8x384xf32>
    %cst_48 = arith.constant 1.000000e+00 : f32
    %293 = vector.broadcast %cst_48 : f32 to vector<8x384xf32>
    %294 = arith.addf %293, %292 : vector<8x384xf32>
    %295 = arith.divf %293, %294 : vector<8x384xf32>
    %296 = vector.extract_strided_slice %295 {offsets = [0, 0], sizes = [8, 128], strides = [1, 1]} : vector<8x384xf32> to vector<8x128xf32>
    %297 = vector.extract_strided_slice %295 {offsets = [0, 128], sizes = [8, 128], strides = [1, 1]} : vector<8x384xf32> to vector<8x128xf32>
    %298 = vector.extract_strided_slice %295 {offsets = [0, 256], sizes = [8, 128], strides = [1, 1]} : vector<8x384xf32> to vector<8x128xf32>
    %299 = vector.extract_strided_slice %289 {offsets = [0, 384], sizes = [8, 128], strides = [1, 1]} : vector<8x512xf32> to vector<8x128xf32>
    %300 = math.tanh %299 : vector<8x128xf32>
    %301 = arith.mulf %297, %265 : vector<8x128xf32>
    %302 = arith.mulf %296, %300 : vector<8x128xf32>
    %303 = arith.addf %301, %302 : vector<8x128xf32>
    %304 = math.tanh %303 : vector<8x128xf32>
    %305 = arith.mulf %298, %304 : vector<8x128xf32>
    %306 = tpu.concatenate %305, %286 in 1 : vector<8x128xf32>, vector<8x128xf32> -> vector<8x256xf32>
    %cst_49 = arith.constant dense<0.000000e+00> : vector<8x512xf32>
    %307 = tpu.matmul %306, %2, %cst_49 {dimension_numbers = #tpu.dot_dimension_numbers<[1], [0], [0], [1], [0, 0, 1, 1], [], []>} : vector<8x256xf32>, vector<256x512xf32>, vector<8x512xf32> -> vector<8x512xf32>
    %308 = arith.addf %307, %16 : vector<8x512xf32>
    %309 = vector.extract_strided_slice %308 {offsets = [0, 0], sizes = [8, 384], strides = [1, 1]} : vector<8x512xf32> to vector<8x384xf32>
    %310 = arith.negf %309 : vector<8x384xf32>
    %311 = math.exp %310 : vector<8x384xf32>
    %cst_50 = arith.constant 1.000000e+00 : f32
    %312 = vector.broadcast %cst_50 : f32 to vector<8x384xf32>
    %313 = arith.addf %312, %311 : vector<8x384xf32>
    %314 = arith.divf %312, %313 : vector<8x384xf32>
    %315 = vector.extract_strided_slice %314 {offsets = [0, 0], sizes = [8, 128], strides = [1, 1]} : vector<8x384xf32> to vector<8x128xf32>
    %316 = vector.extract_strided_slice %314 {offsets = [0, 128], sizes = [8, 128], strides = [1, 1]} : vector<8x384xf32> to vector<8x128xf32>
    %317 = vector.extract_strided_slice %314 {offsets = [0, 256], sizes = [8, 128], strides = [1, 1]} : vector<8x384xf32> to vector<8x128xf32>
    %318 = vector.extract_strided_slice %308 {offsets = [0, 384], sizes = [8, 128], strides = [1, 1]} : vector<8x512xf32> to vector<8x128xf32>
    %319 = math.tanh %318 : vector<8x128xf32>
    %320 = arith.mulf %316, %284 : vector<8x128xf32>
    %321 = arith.mulf %315, %319 : vector<8x128xf32>
    %322 = arith.addf %320, %321 : vector<8x128xf32>
    %323 = math.tanh %322 : vector<8x128xf32>
    %324 = arith.mulf %317, %323 : vector<8x128xf32>
    %cst_51 = arith.constant dense<0.000000e+00> : vector<8x128xf32>
    %325 = tpu.matmul %324, %3, %cst_51 {dimension_numbers = #tpu.dot_dimension_numbers<[1], [0], [0], [1], [0, 0, 1, 1], [], []>} : vector<8x128xf32>, vector<128x128xf32>, vector<8x128xf32> -> vector<8x128xf32>
    %326 = vector.broadcast %8 : vector<1x128xf32> to vector<8x128xf32>
    %327 = arith.addf %325, %326 : vector<8x128xf32>
    %cst_52 = arith.constant 0.000000e+00 : f32
    %328 = vector.broadcast %cst_52 : f32 to vector<8x128xf32>
    %329 = arith.maximumf %327, %328 : vector<8x128xf32>
    %cst_53 = arith.constant dense<0.000000e+00> : vector<8x128xf32>
    %330 = tpu.matmul %329, %4, %cst_53 {dimension_numbers = #tpu.dot_dimension_numbers<[1], [0], [0], [1], [0, 0, 1, 1], [], []>} : vector<8x128xf32>, vector<128x128xf32>, vector<8x128xf32> -> vector<8x128xf32>
    %331 = vector.broadcast %9 : vector<1x128xf32> to vector<8x128xf32>
    %332 = arith.addf %330, %331 : vector<8x128xf32>
    %cst_54 = arith.constant 0.000000e+00 : f32
    %333 = vector.broadcast %cst_54 : f32 to vector<8x128xf32>
    %334 = arith.maximumf %332, %333 : vector<8x128xf32>
    %cst_55 = arith.constant dense<0.000000e+00> : vector<8x128xf32>
    %335 = tpu.matmul %334, %5, %cst_55 {dimension_numbers = #tpu.dot_dimension_numbers<[1], [0], [0], [1], [0, 0, 1, 1], [], []>} : vector<8x128xf32>, vector<128x128xf32>, vector<8x128xf32> -> vector<8x128xf32>
    %336 = vector.broadcast %10 : vector<1x128xf32> to vector<8x128xf32>
    %337 = arith.addf %335, %336 : vector<8x128xf32>
    %c0_56 = arith.constant 0 : index
    %c0_57 = arith.constant 0 : index
    %338 = vector.load %arg4[%c0_56, %c0_57] : memref<8x128xf32, #tpu.memory_space<vmem>>, vector<8x128xf32>
    tpu.vector_store %arg4[%c0_56, %c0_57], %337 {strides = array<i32>} : memref<8x128xf32, #tpu.memory_space<vmem>>, vector<8x128xf32>,
    return
  }
}

</mosaic_0001>

<llo_original>
// kernel: qsteering_forward.1
$region0: #{qsteering_forward.1}
  #allocation0 [shape = 'u32[]', space=smem, size = 0x4, offset = 0x4, fixed_abs, tag = 'smem constant byte address 0x4 - core index']
  #allocation1 [shape = 'u32[72,128]{1,0:T(1,128)}', space=vmem, size = 0x9000, scoped, tag = 'internal scratch']
  %s0 = inlined_call_operand.vmem [shape: f32[64,16], index: 0, kind: input, shape index: {}]
  %s1 = inlined_call_operand.hbm [shape: f32[400,512], index: 1, kind: input, shape index: {}]
  %s2 = inlined_call_operand.hbm [shape: f32[128,384], index: 2, kind: input, shape index: {}]
  %s3 = inlined_call_operand.vmem [shape: f32[1,1408], index: 3, kind: input, shape index: {}]
  %s4 = inlined_call_operand.vmem [shape: f32[8,128], index: 4, kind: output, shape index: {}]
  %s5 = sld [smem:[#allocation0]]
  $region34: #{qsteering_forward.1} parent=0
    _
  %s7 = ssub.s32 1, %s5
  %s8 = scalar_select 0, %s7, %s5
  $region1: #{qsteering_forward.1} parent=0
    #allocation2 [shape = 'u8[819200]{0}', space=vmem, size = 0xc8000, scoped, tag = 'input window, operand 1, single buffered']
    #allocation3 [shape = 's32[1]{0}', space=sflag, size = 0x4, scoped, tag = 'scoped memory for qsteering_forward.1']
    #allocation4 [shape = 'u8[196608]{0}', space=vmem, size = 0x30000, scoped, tag = 'input window, operand 2, single buffered']
    #allocation5 [shape = 's32[1]{0}', space=sflag, size = 0x4, scoped, tag = 'scoped memory for qsteering_forward.1']
    %9 = vsyncpa [#allocation3], 0
    %10 = vsyncpa [#allocation5], 0
    // Predicated region
    $region2: #{qsteering_forward.1} parent=1 // pred_check
      _
    $region3: #{qsteering_forward.1} parent=1 // pred_check_branch
      %12 = sbr.rel (0) target = $region5
    $region4: #{qsteering_forward.1} parent=1 // pred_region
      _
    $region5: #{qsteering_forward.1} parent=1 // pred_fallthru
      _
    // Predicated region
    $region6: #{qsteering_forward.1} parent=1 // pred_check
      _
    $region7: #{qsteering_forward.1} parent=1 // pred_check_branch
      %14 = sbr.rel (0) target = $region9
    $region8: #{qsteering_forward.1} parent=1 // pred_region
      %16 = vsyncadd [#allocation3], 0
      %s17 = sshll.u32 %s1, 4
      %s18 = int_to_ptr.hbm [resolvable:$true] %s17
      %s19 = sshll.u32 [#allocation2], 4
      %s20 = int_to_ptr.vmem [resolvable:$true] %s19
      %25 = dma.hbm_to_vmem [thread:$0]  %s18, 25600, %s20, [#allocation3], 512, 512, 32
    $region9: #{qsteering_forward.1} parent=1 // pred_fallthru
      _
    // Predicated region
    $region10: #{qsteering_forward.1} parent=1 // pred_check
      _
    $region11: #{qsteering_forward.1} parent=1 // pred_check_branch
      %27 = sbr.rel (0) target = $region13
    $region12: #{qsteering_forward.1} parent=1 // pred_region
      %29 = vsyncadd [#allocation5], 0
      %s30 = sshll.u32 %s2, 4
      %s31 = int_to_ptr.hbm [resolvable:$true] %s30
      %s32 = sshll.u32 [#allocation4], 4
      %s33 = int_to_ptr.vmem [resolvable:$true] %s32
      %38 = dma.hbm_to_vmem [thread:$0]  %s31, 6144, %s33, [#allocation5], 384, 384, 24
    $region13: #{qsteering_forward.1} parent=1 // pred_fallthru
      _
    // Predicated region
    $region14: #{qsteering_forward.1} parent=1 // pred_check
      _
    $region15: #{qsteering_forward.1} parent=1 // pred_check_branch
      %40 = sbr.rel (0) target = $region17
    $region16: #{qsteering_forward.1} parent=1 // pred_region
      _
    $region17: #{qsteering_forward.1} parent=1 // pred_fallthru
      _
    // Predicated region
    $region18: #{qsteering_forward.1} parent=1 // pred_check
      _
    $region19: #{qsteering_forward.1} parent=1 // pred_check_branch
      %42 = sbr.rel (0) target = $region21
    $region20: #{qsteering_forward.1} parent=1 // pred_region
      %44 = dma.done [#allocation3], 25600
    $region21: #{qsteering_forward.1} parent=1 // pred_fallthru
      _
    // Predicated region
    $region22: #{qsteering_forward.1} parent=1 // pred_check
      _
    $region23: #{qsteering_forward.1} parent=1 // pred_check_branch
      %46 = sbr.rel (0) target = $region25
    $region24: #{qsteering_forward.1} parent=1 // pred_region
      %48 = dma.done [#allocation5], 6144
    $region25: #{qsteering_forward.1} parent=1 // pred_fallthru
      _
    %v49 = vld [vmem:[#allocation2] sm:$0xff]
    %v50 = vld [vmem:[#allocation2 + $0x8] sm:$0xff]
    %v51 = vld [vmem:[#allocation2 + $0x10] sm:$0xff]
    %v52 = vld [vmem:[#allocation2 + $0x18] sm:$0xff]
    %v53 = vld [vmem:[#allocation2 + $0x20] sm:$0xff]
    %v54 = vld [vmem:[#allocation2 + $0x28] sm:$0xff]
    %v55 = vld [vmem:[#allocation2 + $0x30] sm:$0xff]
    %v56 = vld [vmem:[#allocation2 + $0x38] sm:$0xff]
    %v57 = vld [vmem:[#allocation2 + $0x40] sm:$0xff]
    %v58 = vld [vmem:[#allocation2 + $0x48] sm:$0xff]
    %v59 = vld [vmem:[#allocation2 + $0x50] sm:$0xff]
    %v60 = vld [vmem:[#allocation2 + $0x58] sm:$0xff]
    %v61 = vld [vmem:[#allocation2 + $0x60] sm:$0xff]
    %v62 = vld [vmem:[#allocation2 + $0x68] sm:$0xff]
    %v63 = vld [vmem:[#allocation2 + $0x70] sm:$0xff]
    %v64 = vld [vmem:[#allocation2 + $0x78] sm:$0xff]
    %v65 = vld [vmem:[#allocation2 + $0x80] sm:$0xff]
    %v66 = vld [vmem:[#allocation2 + $0x88] sm:$0xff]
    %v67 = vld [vmem:[#allocation2 + $0x90] sm:$0xff]
    %v68 = vld [vmem:[#allocation2 + $0x98] sm:$0xff]
    %v69 = vld [vmem:[#allocation2 + $0xa0] sm:$0xff]
    %v70 = vld [vmem:[#allocation2 + $0xa8] sm:$0xff]
    %v71 = vld [vmem:[#allocation2 + $0xb0] sm:$0xff]
    %v72 = vld [vmem:[#allocation2 + $0xb8] sm:$0xff]
    %v73 = vld [vmem:[#allocation2 + $0xc0] sm:$0xff]
    %v74 = vld [vmem:[#allocation2 + $0xc8] sm:$0xff]
    %v75 = vld [vmem:[#allocation2 + $0xd0] sm:$0xff]
    %v76 = vld [vmem:[#allocation2 + $0xd8] sm:$0xff]
    %v77 = vld [vmem:[#allocation2 + $0xe0] sm:$0xff]
    %v78 = vld [vmem:[#allocation2 + $0xe8] sm:$0xff]
    %v79 = vld [vmem:[#allocation2 + $0xf0] sm:$0xff]
    %v80 = vld [vmem:[#allocation2 + $0xf8] sm:$0xff]
    %v81 = vld [vmem:[#allocation2 + $0x100] sm:$0xff]
    %v82 = vld [vmem:[#allocation2 + $0x108] sm:$0xff]
    %v83 = vld [vmem:[#allocation2 + $0x110] sm:$0xff]
    %v84 = vld [vmem:[#allocation2 + $0x118] sm:$0xff]
    %v85 = vld [vmem:[#allocation2 + $0x120] sm:$0xff]
    %v86 = vld [vmem:[#allocation2 + $0x128] sm:$0xff]
    %v87 = vld [vmem:[#allocation2 + $0x130] sm:$0xff]
    %v88 = vld [vmem:[#allocation2 + $0x138] sm:$0xff]
    %v89 = vld [vmem:[#allocation2 + $0x140] sm:$0xff]
    %v90 = vld [vmem:[#allocation2 + $0x148] sm:$0xff]
    %v91 = vld [vmem:[#allocation2 + $0x150] sm:$0xff]
    %v92 = vld [vmem:[#allocation2 + $0x158] sm:$0xff]
    %v93 = vld [vmem:[#allocation2 + $0x160] sm:$0xff]
    %v94 = vld [vmem:[#allocation2 + $0x168] sm:$0xff]
    %v95 = vld [vmem:[#allocation2 + $0x170] sm:$0xff]
    %v96 = vld [vmem:[#allocation2 + $0x178] sm:$0xff]
    %v97 = vld [vmem:[#allocation2 + $0x180] sm:$0xff]
    %v98 = vld [vmem:[#allocation2 + $0x188] sm:$0xff]
    %v99 = vld [vmem:[#allocation2 + $0x190] sm:$0xff]
    %v100 = vld [vmem:[#allocation2 + $0x198] sm:$0xff]
    %v101 = vld [vmem:[#allocation2 + $0x1a0] sm:$0xff]
    %v102 = vld [vmem:[#allocation2 + $0x1a8] sm:$0xff]
    %v103 = vld [vmem:[#allocation2 + $0x1b0] sm:$0xff]
    %v104 = vld [vmem:[#allocation2 + $0x1b8] sm:$0xff]
    %v105 = vld [vmem:[#allocation2 + $0x1c0] sm:$0xff]
    %v106 = vld [vmem:[#allocation2 + $0x1c8] sm:$0xff]
    %v107 = vld [vmem:[#allocation2 + $0x1d0] sm:$0xff]
    %v108 = vld [vmem:[#allocation2 + $0x1d8] sm:$0xff]
    %v109 = vld [vmem:[#allocation2 + $0x1e0] sm:$0xff]
    %v110 = vld [vmem:[#allocation2 + $0x1e8] sm:$0xff]
    %v111 = vld [vmem:[#allocation2 + $0x1f0] sm:$0xff]
    %v112 = vld [vmem:[#allocation2 + $0x1f8] sm:$0xff]
    %v113 = vld [vmem:[#allocation2 + $0x200] sm:$0xff]
    %v114 = vld [vmem:[#allocation2 + $0x208] sm:$0xff]
    %v115 = vld [vmem:[#allocation2 + $0x210] sm:$0xff]
    %v116 = vld [vmem:[#allocation2 + $0x218] sm:$0xff]
    %v117 = vld [vmem:[#allocation2 + $0x220] sm:$0xff]
    %v118 = vld [vmem:[#allocation2 + $0x228] sm:$0xff]
    %v119 = vld [vmem:[#allocation2 + $0x230] sm:$0xff]
    %v120 = vld [vmem:[#allocation2 + $0x238] sm:$0xff]
    %v121 = vld [vmem:[#allocation2 + $0x240] sm:$0xff]
    %v122 = vld [vmem:[#allocation2 + $0x248] sm:$0xff]
    %v123 = vld [vmem:[#allocation2 + $0x250] sm:$0xff]
    %v124 = vld [vmem:[#allocation2 + $0x258] sm:$0xff]
    %v125 = vld [vmem:[#allocation2 + $0x260] sm:$0xff]
    %v126 = vld [vmem:[#allocation2 + $0x268] sm:$0xff]
    %v127 = vld [vmem:[#allocation2 + $0x270] sm:$0xff]
    %v128 = vld [vmem:[#allocation2 + $0x278] sm:$0xff]
    %v129 = vld [vmem:[#allocation2 + $0x280] sm:$0xff]
    %v130 = vld [vmem:[#allocation2 + $0x288] sm:$0xff]
    %v131 = vld [vmem:[#allocation2 + $0x290] sm:$0xff]
    %v132 = vld [vmem:[#allocation2 + $0x298] sm:$0xff]
    %v133 = vld [vmem:[#allocation2 + $0x2a0] sm:$0xff]
    %v134 = vld [vmem:[#allocation2 + $0x2a8] sm:$0xff]
    %v135 = vld [vmem:[#allocation2 + $0x2b0] sm:$0xff]
    %v136 = vld [vmem:[#allocation2 + $0x2b8] sm:$0xff]
    %v137 = vld [vmem:[#allocation2 + $0x2c0] sm:$0xff]
    %v138 = vld [vmem:[#allocation2 + $0x2c8] sm:$0xff]
    %v139 = vld [vmem:[#allocation2 + $0x2d0] sm:$0xff]
    %v140 = vld [vmem:[#allocation2 + $0x2d8] sm:$0xff]
    %v141 = vld [vmem:[#allocation2 + $0x2e0] sm:$0xff]
    %v142 = vld [vmem:[#allocation2 + $0x2e8] sm:$0xff]
    %v143 = vld [vmem:[#allocation2 + $0x2f0] sm:$0xff]
    %v144 = vld [vmem:[#allocation2 + $0x2f8] sm:$0xff]
    %v145 = vld [vmem:[#allocation2 + $0x300] sm:$0xff]
    %v146 = vld [vmem:[#allocation2 + $0x308] sm:$0xff]
    %v147 = vld [vmem:[#allocation2 + $0x310] sm:$0xff]
    %v148 = vld [vmem:[#allocation2 + $0x318] sm:$0xff]
    %v149 = vld [vmem:[#allocation2 + $0x320] sm:$0xff]
    %v150 = vld [vmem:[#allocation2 + $0x328] sm:$0xff]
    %v151 = vld [vmem:[#allocation2 + $0x330] sm:$0xff]
    %v152 = vld [vmem:[#allocation2 + $0x338] sm:$0xff]
    %v153 = vld [vmem:[#allocation2 + $0x340] sm:$0xff]
    %v154 = vld [vmem:[#allocation2 + $0x348] sm:$0xff]
    %v155 = vld [vmem:[#allocation2 + $0x350] sm:$0xff]
    %v156 = vld [vmem:[#allocation2 + $0x358] sm:$0xff]
    %v157 = vld [vmem:[#allocation2 + $0x360] sm:$0xff]
    %v158 = vld [vmem:[#allocation2 + $0x368] sm:$0xff]
    %v159 = vld [vmem:[#allocation2 + $0x370] sm:$0xff]
    %v160 = vld [vmem:[#allocation2 + $0x378] sm:$0xff]
    %v161 = vld [vmem:[#allocation2 + $0x380] sm:$0xff]
    %v162 = vld [vmem:[#allocation2 + $0x388] sm:$0xff]
    %v163 = vld [vmem:[#allocation2 + $0x390] sm:$0xff]
    %v164 = vld [vmem:[#allocation2 + $0x398] sm:$0xff]
    %v165 = vld [vmem:[#allocation2 + $0x3a0] sm:$0xff]
    %v166 = vld [vmem:[#allocation2 + $0x3a8] sm:$0xff]
    %v167 = vld [vmem:[#allocation2 + $0x3b0] sm:$0xff]
    %v168 = vld [vmem:[#allocation2 + $0x3b8] sm:$0xff]
    %v169 = vld [vmem:[#allocation2 + $0x3c0] sm:$0xff]
    %v170 = vld [vmem:[#allocation2 + $0x3c8] sm:$0xff]
    %v171 = vld [vmem:[#allocation2 + $0x3d0] sm:$0xff]
    %v172 = vld [vmem:[#allocation2 + $0x3d8] sm:$0xff]
    %v173 = vld [vmem:[#allocation2 + $0x3e0] sm:$0xff]
    %v174 = vld [vmem:[#allocation2 + $0x3e8] sm:$0xff]
    %v175 = vld [vmem:[#allocation2 + $0x3f0] sm:$0xff]
    %v176 = vld [vmem:[#allocation2 + $0x3f8] sm:$0xff]
    %v177 = vld [vmem:[#allocation2 + $0x400] sm:$0xff]
    %v178 = vld [vmem:[#allocation2 + $0x408] sm:$0xff]
    %v179 = vld [vmem:[#allocation2 + $0x410] sm:$0xff]
    %v180 = vld [vmem:[#allocation2 + $0x418] sm:$0xff]
    %v181 = vld [vmem:[#allocation2 + $0x420] sm:$0xff]
    %v182 = vld [vmem:[#allocation2 + $0x428] sm:$0xff]
    %v183 = vld [vmem:[#allocation2 + $0x430] sm:$0xff]
    %v184 = vld [vmem:[#allocation2 + $0x438] sm:$0xff]
    %v185 = vld [vmem:[#allocation2 + $0x440] sm:$0xff]
    %v186 = vld [vmem:[#allocation2 + $0x448] sm:$0xff]
    %v187 = vld [vmem:[#allocation2 + $0x450] sm:$0xff]
    %v188 = vld [vmem:[#allocation2 + $0x458] sm:$0xff]
    %v189 = vld [vmem:[#allocation2 + $0x460] sm:$0xff]
    %v190 = vld [vmem:[#allocation2 + $0x468] sm:$0xff]
    %v191 = vld [vmem:[#allocation2 + $0x470] sm:$0xff]
    %v192 = vld [vmem:[#allocation2 + $0x478] sm:$0xff]
    %v193 = vld [vmem:[#allocation2 + $0x480] sm:$0xff]
    %v194 = vld [vmem:[#allocation2 + $0x488] sm:$0xff]
    %v195 = vld [vmem:[#allocation2 + $0x490] sm:$0xff]
    %v196 = vld [vmem:[#allocation2 + $0x498] sm:$0xff]
    %v197 = vld [vmem:[#allocation2 + $0x4a0] sm:$0xff]
    %v198 = vld [vmem:[#allocation2 + $0x4a8] sm:$0xff]
    %v199 = vld [vmem:[#allocation2 + $0x4b0] sm:$0xff]
    %v200 = vld [vmem:[#allocation2 + $0x4b8] sm:$0xff]
    %v201 = vld [vmem:[#allocation2 + $0x4c0] sm:$0xff]
    %v202 = vld [vmem:[#allocation2 + $0x4c8] sm:$0xff]
    %v203 = vld [vmem:[#allocation2 + $0x4d0] sm:$0xff]
    %v204 = vld [vmem:[#allocation2 + $0x4d8] sm:$0xff]
    %v205 = vld [vmem:[#allocation2 + $0x4e0] sm:$0xff]
    %v206 = vld [vmem:[#allocation2 + $0x4e8] sm:$0xff]
    %v207 = vld [vmem:[#allocation2 + $0x4f0] sm:$0xff]
    %v208 = vld [vmem:[#allocation2 + $0x4f8] sm:$0xff]
    %v209 = vld [vmem:[#allocation2 + $0x500] sm:$0xff]
    %v210 = vld [vmem:[#allocation2 + $0x508] sm:$0xff]
    %v211 = vld [vmem:[#allocation2 + $0x510] sm:$0xff]
    %v212 = vld [vmem:[#allocation2 + $0x518] sm:$0xff]
    %v213 = vld [vmem:[#allocation2 + $0x520] sm:$0xff]
    %v214 = vld [vmem:[#allocation2 + $0x528] sm:$0xff]
    %v215 = vld [vmem:[#allocation2 + $0x530] sm:$0xff]
    %v216 = vld [vmem:[#allocation2 + $0x538] sm:$0xff]
    %v217 = vld [vmem:[#allocation2 + $0x540] sm:$0xff]
    %v218 = vld [vmem:[#allocation2 + $0x548] sm:$0xff]
    %v219 = vld [vmem:[#allocation2 + $0x550] sm:$0xff]
    %v220 = vld [vmem:[#allocation2 + $0x558] sm:$0xff]
    %v221 = vld [vmem:[#allocation2 + $0x560] sm:$0xff]
    %v222 = vld [vmem:[#allocation2 + $0x568] sm:$0xff]
    %v223 = vld [vmem:[#allocation2 + $0x570] sm:$0xff]
    %v224 = vld [vmem:[#allocation2 + $0x578] sm:$0xff]
    %v225 = vld [vmem:[#allocation2 + $0x580] sm:$0xff]
    %v226 = vld [vmem:[#allocation2 + $0x588] sm:$0xff]
    %v227 = vld [vmem:[#allocation2 + $0x590] sm:$0xff]
    %v228 = vld [vmem:[#allocation2 + $0x598] sm:$0xff]
    %v229 = vld [vmem:[#allocation2 + $0x5a0] sm:$0xff]
    %v230 = vld [vmem:[#allocation2 + $0x5a8] sm:$0xff]
    %v231 = vld [vmem:[#allocation2 + $0x5b0] sm:$0xff]
    %v232 = vld [vmem:[#allocation2 + $0x5b8] sm:$0xff]
    %v233 = vld [vmem:[#allocation2 + $0x5c0] sm:$0xff]
    %v234 = vld [vmem:[#allocation2 + $0x5c8] sm:$0xff]
    %v235 = vld [vmem:[#allocation2 + $0x5d0] sm:$0xff]
    %v236 = vld [vmem:[#allocation2 + $0x5d8] sm:$0xff]
    %v237 = vld [vmem:[#allocation2 + $0x5e0] sm:$0xff]
    %v238 = vld [vmem:[#allocation2 + $0x5e8] sm:$0xff]
    %v239 = vld [vmem:[#allocation2 + $0x5f0] sm:$0xff]
    %v240 = vld [vmem:[#allocation2 + $0x5f8] sm:$0xff]
    %v241 = vld [vmem:[#allocation2 + $0x600] sm:$0xff]
    %v242 = vld [vmem:[#allocation2 + $0x608] sm:$0xff]
    %v243 = vld [vmem:[#allocation2 + $0x610] sm:$0xff]
    %v244 = vld [vmem:[#allocation2 + $0x618] sm:$0xff]
    %v245 = vld [vmem:[#allocation2 + $0x620] sm:$0xff]
    %v246 = vld [vmem:[#allocation2 + $0x628] sm:$0xff]
    %v247 = vld [vmem:[#allocation2 + $0x630] sm:$0xff]
    %v248 = vld [vmem:[#allocation2 + $0x638] sm:$0xff]
    %v249 = vld [vmem:[#allocation4] sm:$0xff]
    %v250 = vld [vmem:[#allocation4 + $0x18] sm:$0xff]
    %v251 = vld [vmem:[#allocation4 + $0x30] sm:$0xff]
    %v252 = vld [vmem:[#allocation4 + $0x48] sm:$0xff]
    %v253 = vld [vmem:[#allocation4 + $0x60] sm:$0xff]
    %v254 = vld [vmem:[#allocation4 + $0x78] sm:$0xff]
    %v255 = vld [vmem:[#allocation4 + $0x90] sm:$0xff]
    %v256 = vld [vmem:[#allocation4 + $0xa8] sm:$0xff]
    %v257 = vld [vmem:[#allocation4 + $0xc0] sm:$0xff]
    %v258 = vld [vmem:[#allocation4 + $0xd8] sm:$0xff]
    %v259 = vld [vmem:[#allocation4 + $0xf0] sm:$0xff]
    %v260 = vld [vmem:[#allocation4 + $0x108] sm:$0xff]
    %v261 = vld [vmem:[#allocation4 + $0x120] sm:$0xff]
    %v262 = vld [vmem:[#allocation4 + $0x138] sm:$0xff]
    %v263 = vld [vmem:[#allocation4 + $0x150] sm:$0xff]
    %v264 = vld [vmem:[#allocation4 + $0x168] sm:$0xff]
    %v265 = vld [vmem:[#allocation4 + $0x8] sm:$0xff]
    %v266 = vld [vmem:[#allocation4 + $0x20] sm:$0xff]
    %v267 = vld [vmem:[#allocation4 + $0x38] sm:$0xff]
    %v268 = vld [vmem:[#allocation4 + $0x50] sm:$0xff]
    %v269 = vld [vmem:[#allocation4 + $0x68] sm:$0xff]
    %v270 = vld [vmem:[#allocation4 + $0x80] sm:$0xff]
    %v271 = vld [vmem:[#allocation4 + $0x98] sm:$0xff]
    %v272 = vld [vmem:[#allocation4 + $0xb0] sm:$0xff]
    %v273 = vld [vmem:[#allocation4 + $0xc8] sm:$0xff]
    %v274 = vld [vmem:[#allocation4 + $0xe0] sm:$0xff]
    %v275 = vld [vmem:[#allocation4 + $0xf8] sm:$0xff]
    %v276 = vld [vmem:[#allocation4 + $0x110] sm:$0xff]
    %v277 = vld [vmem:[#allocation4 + $0x128] sm:$0xff]
    %v278 = vld [vmem:[#allocation4 + $0x140] sm:$0xff]
    %v279 = vld [vmem:[#allocation4 + $0x158] sm:$0xff]
    %v280 = vld [vmem:[#allocation4 + $0x170] sm:$0xff]
    %v281 = vld [vmem:[#allocation4 + $0x10] sm:$0xff]
    %v282 = vld [vmem:[#allocation4 + $0x28] sm:$0xff]
    %v283 = vld [vmem:[#allocation4 + $0x40] sm:$0xff]
    %v284 = vld [vmem:[#allocation4 + $0x58] sm:$0xff]
    %v285 = vld [vmem:[#allocation4 + $0x70] sm:$0xff]
    %v286 = vld [vmem:[#allocation4 + $0x88] sm:$0xff]
    %v287 = vld [vmem:[#allocation4 + $0xa0] sm:$0xff]
    %v288 = vld [vmem:[#allocation4 + $0xb8] sm:$0xff]
    %v289 = vld [vmem:[#allocation4 + $0xd0] sm:$0xff]
    %v290 = vld [vmem:[#allocation4 + $0xe8] sm:$0xff]
    %v291 = vld [vmem:[#allocation4 + $0x100] sm:$0xff]
    %v292 = vld [vmem:[#allocation4 + $0x118] sm:$0xff]
    %v293 = vld [vmem:[#allocation4 + $0x130] sm:$0xff]
    %v294 = vld [vmem:[#allocation4 + $0x148] sm:$0xff]
    %v295 = vld [vmem:[#allocation4 + $0x160] sm:$0xff]
    %v296 = vld [vmem:[#allocation4 + $0x178] sm:$0xff]
    %v297 = vld [vmem:[%s3] sm:$0xf]
    %v298 = vld [vmem:[%s3 + $0x4] sm:$0xf]
    %v299 = vld [vmem:[%s3 + $0x8] sm:$0x1]
    %v300 = vld [vmem:[%s3 + $0x9] sm:$0x1]
    %v301 = vld [vmem:[%s3 + $0xa] sm:$0x1]
    %v302 = vld [vmem:[%s0] sm:$0xff]
    %v303 = vld [vmem:[%s0 + $0x8] sm:$0xff]
    %v304 = vld [vmem:[%s0 + $0x10] sm:$0xff]
    %v305 = vld [vmem:[%s0 + $0x18] sm:$0xff]
    %v306 = vld [vmem:[%s0 + $0x20] sm:$0xff]
    %v307 = vld [vmem:[%s0 + $0x28] sm:$0xff]
    %v308 = vld [vmem:[%s0 + $0x30] sm:$0xff]
    %v309 = vld [vmem:[%s0 + $0x38] sm:$0xff]
    %v311 = vperm.slane %v297, 0
    %v312 = vperm.slane %v297, 1
    %v313 = vperm.slane %v297, 2
    %v314 = vperm.slane %v297, 3
    %vm319 = vcmask 130048
    %v321 = vsel %vm319, %v302, 0
    %v324 = vsel %vm319, %v303, 0
    %v327 = vsel %vm319, %v304, 0
    %v330 = vsel %vm319, %v305, 0
    %v333 = vsel %vm319, %v306, 0
    %v336 = vsel %vm319, %v307, 0
    %v339 = vsel %vm319, %v308, 0
    %v342 = vsel %vm319, %v309, 0
    %344 = vmatpush.msra.mxu0 0.0
    %345 = vmatpush.msra.mxu0 0.0
    %346 = vmatpush.msra.mxu0 0.0
    %347 = vmatpush.msra.mxu0 0.0
    %348 = vmatpush.msra.mxu0 0.0
    %349 = vmatpush.msra.mxu0 0.0
    %350 = vmatpush.msra.mxu0 0.0
    %351 = vmatpush.msra.mxu0 0.0
    %352 = vmatpush.msra.mxu0 0.0
    %353 = vmatpush.msra.mxu0 0.0
    %354 = vmatpush.msra.mxu0 0.0
    %355 = vmatpush.msra.mxu0 0.0
    %356 = vmatpush.msra.mxu0 0.0
    %357 = vmatpush.msra.mxu0 0.0
    %358 = vmatpush.msra.mxu0 %v53
    %359 = vmatpush.msra.mxu0 %v49
    %360 = vmatmul.f32.gmra.mxu0 %v321
    %v361 = vpop.f32.mrf.mxu0
    %v362 = vadd.f32 %v311, %v361
    %363 = vmatmul.f32.gmra.mxu0 %v324
    %v364 = vpop.f32.mrf.mxu0
    %v365 = vadd.f32 %v311, %v364
    %366 = vmatmul.f32.gmra.mxu0 %v327
    %v367 = vpop.f32.mrf.mxu0
    %v368 = vadd.f32 %v311, %v367
    %369 = vmatmul.f32.gmra.mxu0 %v330
    %v370 = vpop.f32.mrf.mxu0
    %v371 = vadd.f32 %v311, %v370
    %372 = vmatmul.f32.gmra.mxu0 %v333
    %v373 = vpop.f32.mrf.mxu0
    %v374 = vadd.f32 %v311, %v373
    %375 = vmatmul.f32.gmra.mxu0 %v336
    %v376 = vpop.f32.mrf.mxu0
    %v377 = vadd.f32 %v311, %v376
    %378 = vmatmul.f32.gmra.mxu0 %v339
    %v379 = vpop.f32.mrf.mxu0
    %v380 = vadd.f32 %v311, %v379
    %381 = vmatmul.f32.gmra.mxu0 %v342
    %v382 = vpop.f32.mrf.mxu0
    %v383 = vadd.f32 %v311, %v382
    %384 = vdwg.mxu0
    %385 = vmatpush.msra.mxu0 0.0
    %386 = vmatpush.msra.mxu0 0.0
    %387 = vmatpush.msra.mxu0 0.0
    %388 = vmatpush.msra.mxu0 0.0
    %389 = vmatpush.msra.mxu0 0.0
    %390 = vmatpush.msra.mxu0 0.0
    %391 = vmatpush.msra.mxu0 0.0
    %392 = vmatpush.msra.mxu0 0.0
    %393 = vmatpush.msra.mxu0 0.0
    %394 = vmatpush.msra.mxu0 0.0
    %395 = vmatpush.msra.mxu0 0.0
    %396 = vmatpush.msra.mxu0 0.0
    %397 = vmatpush.msra.mxu0 0.0
    %398 = vmatpush.msra.mxu0 0.0
    %399 = vmatpush.msra.mxu0 %v54
    %400 = vmatpush.msra.mxu0 %v50
    %401 = vmatmul.f32.gmra.mxu0 %v321
    %v402 = vpop.f32.mrf.mxu0
    %v403 = vadd.f32 %v312, %v402
    %404 = vmatmul.f32.gmra.mxu0 %v324
    %v405 = vpop.f32.mrf.mxu0
    %v406 = vadd.f32 %v312, %v405
    %407 = vmatmul.f32.gmra.mxu0 %v327
    %v408 = vpop.f32.mrf.mxu0
    %v409 = vadd.f32 %v312, %v408
    %410 = vmatmul.f32.gmra.mxu0 %v330
    %v411 = vpop.f32.mrf.mxu0
    %v412 = vadd.f32 %v312, %v411
    %413 = vmatmul.f32.gmra.mxu0 %v333
    %v414 = vpop.f32.mrf.mxu0
    %v415 = vadd.f32 %v312, %v414
    %416 = vmatmul.f32.gmra.mxu0 %v336
    %v417 = vpop.f32.mrf.mxu0
    %v418 = vadd.f32 %v312, %v417
    %419 = vmatmul.f32.gmra.mxu0 %v339
    %v420 = vpop.f32.mrf.mxu0
    %v421 = vadd.f32 %v312, %v420
    %422 = vmatmul.f32.gmra.mxu0 %v342
    %v423 = vpop.f32.mrf.mxu0
    %v424 = vadd.f32 %v312, %v423
    %425 = vdwg.mxu0
    %426 = vmatpush.msra.mxu0 0.0
    %427 = vmatpush.msra.mxu0 0.0
    %428 = vmatpush.msra.mxu0 0.0
    %429 = vmatpush.msra.mxu0 0.0
    %430 = vmatpush.msra.mxu0 0.0
    %431 = vmatpush.msra.mxu0 0.0
    %432 = vmatpush.msra.mxu0 0.0
    %433 = vmatpush.msra.mxu0 0.0
    %434 = vmatpush.msra.mxu0 0.0
    %435 = vmatpush.msra.mxu0 0.0
    %436 = vmatpush.msra.mxu0 0.0
    %437 = vmatpush.msra.mxu0 0.0
    %438 = vmatpush.msra.mxu0 0.0
    %439 = vmatpush.msra.mxu0 0.0
    %440 = vmatpush.msra.mxu0 %v55
    %441 = vmatpush.msra.mxu0 %v51
    %442 = vmatmul.f32.gmra.mxu0 %v321
    %v443 = vpop.f32.mrf.mxu0
    %v444 = vadd.f32 %v313, %v443
    %445 = vmatmul.f32.gmra.mxu0 %v324
    %v446 = vpop.f32.mrf.mxu0
    %v447 = vadd.f32 %v313, %v446
    %448 = vmatmul.f32.gmra.mxu0 %v327
    %v449 = vpop.f32.mrf.mxu0
    %v450 = vadd.f32 %v313, %v449
    %451 = vmatmul.f32.gmra.mxu0 %v330
    %v452 = vpop.f32.mrf.mxu0
    %v453 = vadd.f32 %v313, %v452
    %454 = vmatmul.f32.gmra.mxu0 %v333
    %v455 = vpop.f32.mrf.mxu0
    %v456 = vadd.f32 %v313, %v455
    %457 = vmatmul.f32.gmra.mxu0 %v336
    %v458 = vpop.f32.mrf.mxu0
    %v459 = vadd.f32 %v313, %v458
    %460 = vmatmul.f32.gmra.mxu0 %v339
    %v461 = vpop.f32.mrf.mxu0
    %v462 = vadd.f32 %v313, %v461
    %463 = vmatmul.f32.gmra.mxu0 %v342
    %v464 = vpop.f32.mrf.mxu0
    %v465 = vadd.f32 %v313, %v464
    %466 = vdwg.mxu0
    %467 = vmatpush.msra.mxu0 0.0
    %468 = vmatpush.msra.mxu0 0.0
    %469 = vmatpush.msra.mxu0 0.0
    %470 = vmatpush.msra.mxu0 0.0
    %471 = vmatpush.msra.mxu0 0.0
    %472 = vmatpush.msra.mxu0 0.0
    %473 = vmatpush.msra.mxu0 0.0
    %474 = vmatpush.msra.mxu0 0.0
    %475 = vmatpush.msra.mxu0 0.0
    %476 = vmatpush.msra.mxu0 0.0
    %477 = vmatpush.msra.mxu0 0.0
    %478 = vmatpush.msra.mxu0 0.0
    %479 = vmatpush.msra.mxu0 0.0
    %480 = vmatpush.msra.mxu0 0.0
    %481 = vmatpush.msra.mxu0 %v56
    %482 = vmatpush.msra.mxu0 %v52
    %483 = vmatmul.f32.gmra.mxu0 %v321
    %v484 = vpop.f32.mrf.mxu0
    %v485 = vadd.f32 %v314, %v484
    %486 = vmatmul.f32.gmra.mxu0 %v324
    %v487 = vpop.f32.mrf.mxu0
    %v488 = vadd.f32 %v314, %v487
    %489 = vmatmul.f32.gmra.mxu0 %v327
    %v490 = vpop.f32.mrf.mxu0
    %v491 = vadd.f32 %v314, %v490
    %492 = vmatmul.f32.gmra.mxu0 %v330
    %v493 = vpop.f32.mrf.mxu0
    %v494 = vadd.f32 %v314, %v493
    %495 = vmatmul.f32.gmra.mxu0 %v333
    %v496 = vpop.f32.mrf.mxu0
    %v497 = vadd.f32 %v314, %v496
    %498 = vmatmul.f32.gmra.mxu0 %v336
    %v499 = vpop.f32.mrf.mxu0
    %v500 = vadd.f32 %v314, %v499
    %501 = vmatmul.f32.gmra.mxu0 %v339
    %v502 = vpop.f32.mrf.mxu0
    %v503 = vadd.f32 %v314, %v502
    %504 = vmatmul.f32.gmra.mxu0 %v342
    %v505 = vpop.f32.mrf.mxu0
    %v506 = vadd.f32 %v314, %v505
    %507 = vdwg.mxu0
    %v509 = vperm.slane %v298, 0
    %v510 = vperm.slane %v298, 1
    %v511 = vperm.slane %v298, 2
    %v512 = vperm.slane %v298, 3
    %517 = vmatpush.msra.mxu0 %v117
    %518 = vmatpush.msra.mxu0 %v113
    %519 = vmatpush.msra.mxu0 %v109
    %520 = vmatpush.msra.mxu0 %v105
    %521 = vmatpush.msra.mxu0 %v101
    %522 = vmatpush.msra.mxu0 %v97
    %523 = vmatpush.msra.mxu0 %v93
    %524 = vmatpush.msra.mxu0 %v89
    %525 = vmatpush.msra.mxu0 %v85
    %526 = vmatpush.msra.mxu0 %v81
    %527 = vmatpush.msra.mxu0 %v77
    %528 = vmatpush.msra.mxu0 %v73
    %529 = vmatpush.msra.mxu0 %v69
    %530 = vmatpush.msra.mxu0 %v65
    %531 = vmatpush.msra.mxu0 %v61
    %532 = vmatpush.msra.mxu0 %v57
    %533 = vmatmul.f32.gmra.mxu0 0.0
    %v534 = vpop.f32.mrf.mxu0
    %v535 = vadd.f32 0.0, %v534
    %536 = vdwg.mxu0
    %537 = vmatpush.msra.mxu0 %v118
    %538 = vmatpush.msra.mxu0 %v114
    %539 = vmatpush.msra.mxu0 %v110
    %540 = vmatpush.msra.mxu0 %v106
    %541 = vmatpush.msra.mxu0 %v102
    %542 = vmatpush.msra.mxu0 %v98
    %543 = vmatpush.msra.mxu0 %v94
    %544 = vmatpush.msra.mxu0 %v90
    %545 = vmatpush.msra.mxu0 %v86
    %546 = vmatpush.msra.mxu0 %v82
    %547 = vmatpush.msra.mxu0 %v78
    %548 = vmatpush.msra.mxu0 %v74
    %549 = vmatpush.msra.mxu0 %v70
    %550 = vmatpush.msra.mxu0 %v66
    %551 = vmatpush.msra.mxu0 %v62
    %552 = vmatpush.msra.mxu0 %v58
    %553 = vmatmul.f32.gmra.mxu0 0.0
    %v554 = vpop.f32.mrf.mxu0
    %v555 = vadd.f32 0.0, %v554
    %556 = vdwg.mxu0
    %557 = vmatpush.msra.mxu0 %v119
    %558 = vmatpush.msra.mxu0 %v115
    %559 = vmatpush.msra.mxu0 %v111
    %560 = vmatpush.msra.mxu0 %v107
    %561 = vmatpush.msra.mxu0 %v103
    %562 = vmatpush.msra.mxu0 %v99
    %563 = vmatpush.msra.mxu0 %v95
    %564 = vmatpush.msra.mxu0 %v91
    %565 = vmatpush.msra.mxu0 %v87
    %566 = vmatpush.msra.mxu0 %v83
    %567 = vmatpush.msra.mxu0 %v79
    %568 = vmatpush.msra.mxu0 %v75
    %569 = vmatpush.msra.mxu0 %v71
    %570 = vmatpush.msra.mxu0 %v67
    %571 = vmatpush.msra.mxu0 %v63
    %572 = vmatpush.msra.mxu0 %v59
    %573 = vmatmul.f32.gmra.mxu0 0.0
    %v574 = vpop.f32.mrf.mxu0
    %v575 = vadd.f32 0.0, %v574
    %576 = vdwg.mxu0
    %577 = vmatpush.msra.mxu0 %v120
    %578 = vmatpush.msra.mxu0 %v116
    %579 = vmatpush.msra.mxu0 %v112
    %580 = vmatpush.msra.mxu0 %v108
    %581 = vmatpush.msra.mxu0 %v104
    %582 = vmatpush.msra.mxu0 %v100
    %583 = vmatpush.msra.mxu0 %v96
    %584 = vmatpush.msra.mxu0 %v92
    %585 = vmatpush.msra.mxu0 %v88
    %586 = vmatpush.msra.mxu0 %v84
    %587 = vmatpush.msra.mxu0 %v80
    %588 = vmatpush.msra.mxu0 %v76
    %589 = vmatpush.msra.mxu0 %v72
    %590 = vmatpush.msra.mxu0 %v68
    %591 = vmatpush.msra.mxu0 %v64
    %592 = vmatpush.msra.mxu0 %v60
    %593 = vmatmul.f32.gmra.mxu0 0.0
    %v594 = vpop.f32.mrf.mxu0
    %v595 = vadd.f32 0.0, %v594
    %596 = vdwg.mxu0
    %v597 = vadd.f32 %v362, %v535
    %v598 = vadd.f32 %v403, %v555
    %v599 = vadd.f32 %v444, %v575
    %v600 = vadd.f32 %v485, %v595
    %v601 = vxor.u32 %v597, 2147483648
    %v602 = vxor.u32 %v598, 2147483648
    %v603 = vxor.u32 %v599, 2147483648
    %v604 = vmul.f32 %v601, 1.442695
    %v605 = vpow.pop %v604
    %v606 = vmul.f32 %v602, 1.442695
    %v607 = vpow.pop %v606
    %v608 = vmul.f32 %v603, 1.442695
    %v609 = vpow.pop %v608
    %v610 = vadd.f32 %v605, 1.0
    %v611 = vadd.f32 %v607, 1.0
    %v612 = vadd.f32 %v609, 1.0
    %v613 = vrcp.pop %v610
    %v614 = vmul.f32 %v610, %v613
    %v615 = vsub.f32 1.0, %v614
    %v616 = vmul.f32 %v613, %v615
    %v617 = vadd.f32 %v613, %v616
    %vm618 = vweird.f32 %v610
    %vm619 = vweird.f32 %v613
    %vm620 = vmor %vm618, %vm619
    %v621 = vsel %vm620, %v613, %v617
    %v622 = vand.u32 2147483647, %v610
    %vm623 = vcmp.eq.f32.partialorder %v622, 8.507059e+37
    %v624 = vand.u32 %v610, 2147483648
    %v625 = vor.u32 1.1754944e-38, %v624
    %v626 = vsel %vm623, %v625, %v621
    %v627 = vmul.f32 1.0, %v626
    %v628 = vrcp.pop %v611
    %v629 = vmul.f32 %v611, %v628
    %v630 = vsub.f32 1.0, %v629
    %v631 = vmul.f32 %v628, %v630
    %v632 = vadd.f32 %v628, %v631
    %vm633 = vweird.f32 %v611
    %vm634 = vweird.f32 %v628
    %vm635 = vmor %vm633, %vm634
    %v636 = vsel %vm635, %v628, %v632
    %v637 = vand.u32 2147483647, %v611
    %vm638 = vcmp.eq.f32.partialorder %v637, 8.507059e+37
    %v639 = vand.u32 %v611, 2147483648
    %v640 = vor.u32 1.1754944e-38, %v639
    %v641 = vsel %vm638, %v640, %v636
    %v642 = vmul.f32 1.0, %v641
    %v643 = vrcp.pop %v612
    %v644 = vmul.f32 %v612, %v643
    %v645 = vsub.f32 1.0, %v644
    %v646 = vmul.f32 %v643, %v645
    %v647 = vadd.f32 %v643, %v646
    %vm648 = vweird.f32 %v612
    %vm649 = vweird.f32 %v643
    %vm650 = vmor %vm648, %vm649
    %v651 = vsel %vm650, %v643, %v647
    %v652 = vand.u32 2147483647, %v612
    %vm653 = vcmp.eq.f32.partialorder %v652, 8.507059e+37
    %v654 = vand.u32 %v612, 2147483648
    %v655 = vor.u32 1.1754944e-38, %v654
    %v656 = vsel %vm653, %v655, %v651
    %v657 = vmul.f32 1.0, %v656
    %v658 = vtanh.pop %v600
    %v659 = vmul.f32 %v642, 0.0
    %v660 = vmul.f32 %v627, %v658
    %v661 = vadd.f32 %v659, %v660
    %v662 = vtanh.pop %v661
    %v663 = vmul.f32 %v657, %v662
    %664 = vmatpush.msra.mxu0 %v181
    %665 = vmatpush.msra.mxu0 %v177
    %666 = vmatpush.msra.mxu0 %v173
    %667 = vmatpush.msra.mxu0 %v169
    %668 = vmatpush.msra.mxu0 %v165
    %669 = vmatpush.msra.mxu0 %v161
    %670 = vmatpush.msra.mxu0 %v157
    %671 = vmatpush.msra.mxu0 %v153
    %672 = vmatpush.msra.mxu0 %v149
    %673 = vmatpush.msra.mxu0 %v145
    %674 = vmatpush.msra.mxu0 %v141
    %675 = vmatpush.msra.mxu0 %v137
    %676 = vmatpush.msra.mxu0 %v133
    %677 = vmatpush.msra.mxu0 %v129
    %678 = vmatpush.msra.mxu0 %v125
    %679 = vmatpush.msra.mxu0 %v121
    %680 = vmatmul.f32.gmra.mxu0 %v663
    %v681 = vpop.f32.mrf.mxu0
    %v682 = vadd.f32 %v509, %v681
    %683 = vdwg.mxu0
    %684 = vmatpush.msra.mxu0 %v245
    %685 = vmatpush.msra.mxu0 %v241
    %686 = vmatpush.msra.mxu0 %v237
    %687 = vmatpush.msra.mxu0 %v233
    %688 = vmatpush.msra.mxu0 %v229
    %689 = vmatpush.msra.mxu0 %v225
    %690 = vmatpush.msra.mxu0 %v221
    %691 = vmatpush.msra.mxu0 %v217
    %692 = vmatpush.msra.mxu0 %v213
    %693 = vmatpush.msra.mxu0 %v209
    %694 = vmatpush.msra.mxu0 %v205
    %695 = vmatpush.msra.mxu0 %v201
    %696 = vmatpush.msra.mxu0 %v197
    %697 = vmatpush.msra.mxu0 %v193
    %698 = vmatpush.msra.mxu0 %v189
    %699 = vmatpush.msra.mxu0 %v185
    %700 = vmatmul.f32.gmra.mxu0 0.0
    %v701 = vpop.f32.mrf.mxu0
    %v702 = vadd.f32 %v682, %v701
    %703 = vdwg.mxu0
    %704 = vmatpush.msra.mxu0 %v182
    %705 = vmatpush.msra.mxu0 %v178
    %706 = vmatpush.msra.mxu0 %v174
    %707 = vmatpush.msra.mxu0 %v170
    %708 = vmatpush.msra.mxu0 %v166
    %709 = vmatpush.msra.mxu0 %v162
    %710 = vmatpush.msra.mxu0 %v158
    %711 = vmatpush.msra.mxu0 %v154
    %712 = vmatpush.msra.mxu0 %v150
    %713 = vmatpush.msra.mxu0 %v146
    %714 = vmatpush.msra.mxu0 %v142
    %715 = vmatpush.msra.mxu0 %v138
    %716 = vmatpush.msra.mxu0 %v134
    %717 = vmatpush.msra.mxu0 %v130
    %718 = vmatpush.msra.mxu0 %v126
    %719 = vmatpush.msra.mxu0 %v122
    %720 = vmatmul.f32.gmra.mxu0 %v663
    %v721 = vpop.f32.mrf.mxu0
    %v722 = vadd.f32 %v510, %v721
    %723 = vdwg.mxu0
    %724 = vmatpush.msra.mxu0 %v246
    %725 = vmatpush.msra.mxu0 %v242
    %726 = vmatpush.msra.mxu0 %v238
    %727 = vmatpush.msra.mxu0 %v234
    %728 = vmatpush.msra.mxu0 %v230
    %729 = vmatpush.msra.mxu0 %v226
    %730 = vmatpush.msra.mxu0 %v222
    %731 = vmatpush.msra.mxu0 %v218
    %732 = vmatpush.msra.mxu0 %v214
    %733 = vmatpush.msra.mxu0 %v210
    %734 = vmatpush.msra.mxu0 %v206
    %735 = vmatpush.msra.mxu0 %v202
    %736 = vmatpush.msra.mxu0 %v198
    %737 = vmatpush.msra.mxu0 %v194
    %738 = vmatpush.msra.mxu0 %v190
    %739 = vmatpush.msra.mxu0 %v186
    %740 = vmatmul.f32.gmra.mxu0 0.0
    %v741 = vpop.f32.mrf.mxu0
    %v742 = vadd.f32 %v722, %v741
    %743 = vdwg.mxu0
    %744 = vmatpush.msra.mxu0 %v183
    %745 = vmatpush.msra.mxu0 %v179
    %746 = vmatpush.msra.mxu0 %v175
    %747 = vmatpush.msra.mxu0 %v171
    %748 = vmatpush.msra.mxu0 %v167
    %749 = vmatpush.msra.mxu0 %v163
    %750 = vmatpush.msra.mxu0 %v159
    %751 = vmatpush.msra.mxu0 %v155
    %752 = vmatpush.msra.mxu0 %v151
    %753 = vmatpush.msra.mxu0 %v147
    %754 = vmatpush.msra.mxu0 %v143
    %755 = vmatpush.msra.mxu0 %v139
    %756 = vmatpush.msra.mxu0 %v135
    %757 = vmatpush.msra.mxu0 %v131
    %758 = vmatpush.msra.mxu0 %v127
    %759 = vmatpush.msra.mxu0 %v123
    %760 = vmatmul.f32.gmra.mxu0 %v663
    %v761 = vpop.f32.mrf.mxu0
    %v762 = vadd.f32 %v511, %v761
    %763 = vdwg.mxu0
    %764 = vmatpush.msra.mxu0 %v247
    %765 = vmatpush.msra.mxu0 %v243
    %766 = vmatpush.msra.mxu0 %v239
    %767 = vmatpush.msra.mxu0 %v235
    %768 = vmatpush.msra.mxu0 %v231
    %769 = vmatpush.msra.mxu0 %v227
    %770 = vmatpush.msra.mxu0 %v223
    %771 = vmatpush.msra.mxu0 %v219
    %772 = vmatpush.msra.mxu0 %v215
    %773 = vmatpush.msra.mxu0 %v211
    %774 = vmatpush.msra.mxu0 %v207
    %775 = vmatpush.msra.mxu0 %v203
    %776 = vmatpush.msra.mxu0 %v199
    %777 = vmatpush.msra.mxu0 %v195
    %778 = vmatpush.msra.mxu0 %v191
    %779 = vmatpush.msra.mxu0 %v187
    %780 = vmatmul.f32.gmra.mxu0 0.0
    %v781 = vpop.f32.mrf.mxu0
    %v782 = vadd.f32 %v762, %v781
    %783 = vdwg.mxu0
    %784 = vmatpush.msra.mxu0 %v184
    %785 = vmatpush.msra.mxu0 %v180
    %786 = vmatpush.msra.mxu0 %v176
    %787 = vmatpush.msra.mxu0 %v172
    %788 = vmatpush.msra.mxu0 %v168
    %789 = vmatpush.msra.mxu0 %v164
    %790 = vmatpush.msra.mxu0 %v160
    %791 = vmatpush.msra.mxu0 %v156
    %792 = vmatpush.msra.mxu0 %v152
    %793 = vmatpush.msra.mxu0 %v148
    %794 = vmatpush.msra.mxu0 %v144
    %795 = vmatpush.msra.mxu0 %v140
    %796 = vmatpush.msra.mxu0 %v136
    %797 = vmatpush.msra.mxu0 %v132
    %798 = vmatpush.msra.mxu0 %v128
    %799 = vmatpush.msra.mxu0 %v124
    %800 = vmatmul.f32.gmra.mxu0 %v663
    %v801 = vpop.f32.mrf.mxu0
    %v802 = vadd.f32 %v512, %v801
    %803 = vdwg.mxu0
    %804 = vmatpush.msra.mxu0 %v248
    %805 = vmatpush.msra.mxu0 %v244
    %806 = vmatpush.msra.mxu0 %v240
    %807 = vmatpush.msra.mxu0 %v236
    %808 = vmatpush.msra.mxu0 %v232
    %809 = vmatpush.msra.mxu0 %v228
    %810 = vmatpush.msra.mxu0 %v224
    %811 = vmatpush.msra.mxu0 %v220
    %812 = vmatpush.msra.mxu0 %v216
    %813 = vmatpush.msra.mxu0 %v212
    %814 = vmatpush.msra.mxu0 %v208
    %815 = vmatpush.msra.mxu0 %v204
    %816 = vmatpush.msra.mxu0 %v200
    %817 = vmatpush.msra.mxu0 %v196
    %818 = vmatpush.msra.mxu0 %v192
    %819 = vmatpush.msra.mxu0 %v188
    %820 = vmatmul.f32.gmra.mxu0 0.0
    %v821 = vpop.f32.mrf.mxu0
    %v822 = vadd.f32 %v802, %v821
    %823 = vdwg.mxu0
    %v824 = vxor.u32 %v702, 2147483648
    %v825 = vxor.u32 %v742, 2147483648
    %v826 = vxor.u32 %v782, 2147483648
    %v827 = vmul.f32 %v824, 1.442695
    %v828 = vpow.pop %v827
    %v829 = vmul.f32 %v825, 1.442695
    %v830 = vpow.pop %v829
    %v831 = vmul.f32 %v826, 1.442695
    %v832 = vpow.pop %v831
    %v833 = vadd.f32 %v828, 1.0
    %v834 = vadd.f32 %v830, 1.0
    %v835 = vadd.f32 %v832, 1.0
    %v836 = vrcp.pop %v833
    %v837 = vmul.f32 %v833, %v836
    %v838 = vsub.f32 1.0, %v837
    %v839 = vmul.f32 %v836, %v838
    %v840 = vadd.f32 %v836, %v839
    %vm841 = vweird.f32 %v833
    %vm842 = vweird.f32 %v836
    %vm843 = vmor %vm841, %vm842
    %v844 = vsel %vm843, %v836, %v840
    %v845 = vand.u32 2147483647, %v833
    %vm846 = vcmp.eq.f32.partialorder %v845, 8.507059e+37
    %v847 = vand.u32 %v833, 2147483648
    %v848 = vor.u32 1.1754944e-38, %v847
    %v849 = vsel %vm846, %v848, %v844
    %v850 = vmul.f32 1.0, %v849
    %v851 = vrcp.pop %v834
    %v852 = vmul.f32 %v834, %v851
    %v853 = vsub.f32 1.0, %v852
    %v854 = vmul.f32 %v851, %v853
    %v855 = vadd.f32 %v851, %v854
    %vm856 = vweird.f32 %v834
    %vm857 = vweird.f32 %v851
    %vm858 = vmor %vm856, %vm857
    %v859 = vsel %vm858, %v851, %v855
    %v860 = vand.u32 2147483647, %v834
    %vm861 = vcmp.eq.f32.partialorder %v860, 8.507059e+37
    %v862 = vand.u32 %v834, 2147483648
    %v863 = vor.u32 1.1754944e-38, %v862
    %v864 = vsel %vm861, %v863, %v859
    %v865 = vmul.f32 1.0, %v864
    %v866 = vrcp.pop %v835
    %v867 = vmul.f32 %v835, %v866
    %v868 = vsub.f32 1.0, %v867
    %v869 = vmul.f32 %v866, %v868
    %v870 = vadd.f32 %v866, %v869
    %vm871 = vweird.f32 %v835
    %vm872 = vweird.f32 %v866
    %vm873 = vmor %vm871, %vm872
    %v874 = vsel %vm873, %v866, %v870
    %v875 = vand.u32 2147483647, %v835
    %vm876 = vcmp.eq.f32.partialorder %v875, 8.507059e+37
    %v877 = vand.u32 %v835, 2147483648
    %v878 = vor.u32 1.1754944e-38, %v877
    %v879 = vsel %vm876, %v878, %v874
    %v880 = vmul.f32 1.0, %v879
    %v881 = vtanh.pop %v822
    %v882 = vmul.f32 %v865, 0.0
    %v883 = vmul.f32 %v850, %v881
    %v884 = vadd.f32 %v882, %v883
    %v885 = vtanh.pop %v884
    %v886 = vmul.f32 %v880, %v885
    %887 = vmatpush.msra.mxu0 %v117
    %888 = vmatpush.msra.mxu0 %v113
    %889 = vmatpush.msra.mxu0 %v109
    %890 = vmatpush.msra.mxu0 %v105
    %891 = vmatpush.msra.mxu0 %v101
    %892 = vmatpush.msra.mxu0 %v97
    %893 = vmatpush.msra.mxu0 %v93
    %894 = vmatpush.msra.mxu0 %v89
    %895 = vmatpush.msra.mxu0 %v85
    %896 = vmatpush.msra.mxu0 %v81
    %897 = vmatpush.msra.mxu0 %v77
    %898 = vmatpush.msra.mxu0 %v73
    %899 = vmatpush.msra.mxu0 %v69
    %900 = vmatpush.msra.mxu0 %v65
    %901 = vmatpush.msra.mxu0 %v61
    %902 = vmatpush.msra.mxu0 %v57
    %903 = vmatmul.f32.gmra.mxu0 %v663
    %v904 = vpop.f32.mrf.mxu0
    %v905 = vadd.f32 0.0, %v904
    %906 = vdwg.mxu0
    %907 = vmatpush.msra.mxu0 %v118
    %908 = vmatpush.msra.mxu0 %v114
    %909 = vmatpush.msra.mxu0 %v110
    %910 = vmatpush.msra.mxu0 %v106
    %911 = vmatpush.msra.mxu0 %v102
    %912 = vmatpush.msra.mxu0 %v98
    %913 = vmatpush.msra.mxu0 %v94
    %914 = vmatpush.msra.mxu0 %v90
    %915 = vmatpush.msra.mxu0 %v86
    %916 = vmatpush.msra.mxu0 %v82
    %917 = vmatpush.msra.mxu0 %v78
    %918 = vmatpush.msra.mxu0 %v74
    %919 = vmatpush.msra.mxu0 %v70
    %920 = vmatpush.msra.mxu0 %v66
    %921 = vmatpush.msra.mxu0 %v62
    %922 = vmatpush.msra.mxu0 %v58
    %923 = vmatmul.f32.gmra.mxu0 %v663
    %v924 = vpop.f32.mrf.mxu0
    %v925 = vadd.f32 0.0, %v924
    %926 = vdwg.mxu0
    %927 = vmatpush.msra.mxu0 %v119
    %928 = vmatpush.msra.mxu0 %v115
    %929 = vmatpush.msra.mxu0 %v111
    %930 = vmatpush.msra.mxu0 %v107
    %931 = vmatpush.msra.mxu0 %v103
    %932 = vmatpush.msra.mxu0 %v99
    %933 = vmatpush.msra.mxu0 %v95
    %934 = vmatpush.msra.mxu0 %v91
    %935 = vmatpush.msra.mxu0 %v87
    %936 = vmatpush.msra.mxu0 %v83
    %937 = vmatpush.msra.mxu0 %v79
    %938 = vmatpush.msra.mxu0 %v75
    %939 = vmatpush.msra.mxu0 %v71
    %940 = vmatpush.msra.mxu0 %v67
    %941 = vmatpush.msra.mxu0 %v63
    %942 = vmatpush.msra.mxu0 %v59
    %943 = vmatmul.f32.gmra.mxu0 %v663
    %v944 = vpop.f32.mrf.mxu0
    %v945 = vadd.f32 0.0, %v944
    %946 = vdwg.mxu0
    %947 = vmatpush.msra.mxu0 %v120
    %948 = vmatpush.msra.mxu0 %v116
    %949 = vmatpush.msra.mxu0 %v112
    %950 = vmatpush.msra.mxu0 %v108
    %951 = vmatpush.msra.mxu0 %v104
    %952 = vmatpush.msra.mxu0 %v100
    %953 = vmatpush.msra.mxu0 %v96
    %954 = vmatpush.msra.mxu0 %v92
    %955 = vmatpush.msra.mxu0 %v88
    %956 = vmatpush.msra.mxu0 %v84
    %957 = vmatpush.msra.mxu0 %v80
    %958 = vmatpush.msra.mxu0 %v76
    %959 = vmatpush.msra.mxu0 %v72
    %960 = vmatpush.msra.mxu0 %v68
    %961 = vmatpush.msra.mxu0 %v64
    %962 = vmatpush.msra.mxu0 %v60
    %963 = vmatmul.f32.gmra.mxu0 %v663
    %v964 = vpop.f32.mrf.mxu0
    %v965 = vadd.f32 0.0, %v964
    %966 = vdwg.mxu0
    %v967 = vadd.f32 %v365, %v905
    %v968 = vadd.f32 %v406, %v925
    %v969 = vadd.f32 %v447, %v945
    %v970 = vadd.f32 %v488, %v965
    %v971 = vxor.u32 %v967, 2147483648
    %v972 = vxor.u32 %v968, 2147483648
    %v973 = vxor.u32 %v969, 2147483648
    %v974 = vmul.f32 %v971, 1.442695
    %v975 = vpow.pop %v974
    %v976 = vmul.f32 %v972, 1.442695
    %v977 = vpow.pop %v976
    %v978 = vmul.f32 %v973, 1.442695
    %v979 = vpow.pop %v978
    %v980 = vadd.f32 %v975, 1.0
    %v981 = vadd.f32 %v977, 1.0
    %v982 = vadd.f32 %v979, 1.0
    %v983 = vrcp.pop %v980
    %v984 = vmul.f32 %v980, %v983
    %v985 = vsub.f32 1.0, %v984
    %v986 = vmul.f32 %v983, %v985
    %v987 = vadd.f32 %v983, %v986
    %vm988 = vweird.f32 %v980
    %vm989 = vweird.f32 %v983
    %vm990 = vmor %vm988, %vm989
    %v991 = vsel %vm990, %v983, %v987
    %v992 = vand.u32 2147483647, %v980
    %vm993 = vcmp.eq.f32.partialorder %v992, 8.507059e+37
    %v994 = vand.u32 %v980, 2147483648
    %v995 = vor.u32 1.1754944e-38, %v994
    %v996 = vsel %vm993, %v995, %v991
    %v997 = vmul.f32 1.0, %v996
    %v998 = vrcp.pop %v981
    %v999 = vmul.f32 %v981, %v998
    %v1000 = vsub.f32 1.0, %v999
    %v1001 = vmul.f32 %v998, %v1000
    %v1002 = vadd.f32 %v998, %v1001
    %vm1003 = vweird.f32 %v981
    %vm1004 = vweird.f32 %v998
    %vm1005 = vmor %vm1003, %vm1004
    %v1006 = vsel %vm1005, %v998, %v1002
    %v1007 = vand.u32 2147483647, %v981
    %vm1008 = vcmp.eq.f32.partialorder %v1007, 8.507059e+37
    %v1009 = vand.u32 %v981, 2147483648
    %v1010 = vor.u32 1.1754944e-38, %v1009
    %v1011 = vsel %vm1008, %v1010, %v1006
    %v1012 = vmul.f32 1.0, %v1011
    %v1013 = vrcp.pop %v982
    %v1014 = vmul.f32 %v982, %v1013
    %v1015 = vsub.f32 1.0, %v1014
    %v1016 = vmul.f32 %v1013, %v1015
    %v1017 = vadd.f32 %v1013, %v1016
    %vm1018 = vweird.f32 %v982
    %vm1019 = vweird.f32 %v1013
    %vm1020 = vmor %vm1018, %vm1019
    %v1021 = vsel %vm1020, %v1013, %v1017
    %v1022 = vand.u32 2147483647, %v982
    %vm1023 = vcmp.eq.f32.partialorder %v1022, 8.507059e+37
    %v1024 = vand.u32 %v982, 2147483648
    %v1025 = vor.u32 1.1754944e-38, %v1024
    %v1026 = vsel %vm1023, %v1025, %v1021
    %v1027 = vmul.f32 1.0, %v1026
    %v1028 = vtanh.pop %v970
    %v1029 = vmul.f32 %v1012, %v661
    %v1030 = vmul.f32 %v997, %v1028
    %v1031 = vadd.f32 %v1029, %v1030
    %v1032 = vtanh.pop %v1031
    %v1033 = vmul.f32 %v1027, %v1032
    %1034 = vmatpush.msra.mxu0 %v181
    %1035 = vmatpush.msra.mxu0 %v177
    %1036 = vmatpush.msra.mxu0 %v173
    %1037 = vmatpush.msra.mxu0 %v169
    %1038 = vmatpush.msra.mxu0 %v165
    %1039 = vmatpush.msra.mxu0 %v161
    %1040 = vmatpush.msra.mxu0 %v157
    %1041 = vmatpush.msra.mxu0 %v153
    %1042 = vmatpush.msra.mxu0 %v149
    %1043 = vmatpush.msra.mxu0 %v145
    %1044 = vmatpush.msra.mxu0 %v141
    %1045 = vmatpush.msra.mxu0 %v137
    %1046 = vmatpush.msra.mxu0 %v133
    %1047 = vmatpush.msra.mxu0 %v129
    %1048 = vmatpush.msra.mxu0 %v125
    %1049 = vmatpush.msra.mxu0 %v121
    %1050 = vmatmul.f32.gmra.mxu0 %v1033
    %v1051 = vpop.f32.mrf.mxu0
    %v1052 = vadd.f32 %v509, %v1051
    %1053 = vdwg.mxu0
    %1054 = vmatpush.msra.mxu0 %v245
    %1055 = vmatpush.msra.mxu0 %v241
    %1056 = vmatpush.msra.mxu0 %v237
    %1057 = vmatpush.msra.mxu0 %v233
    %1058 = vmatpush.msra.mxu0 %v229
    %1059 = vmatpush.msra.mxu0 %v225
    %1060 = vmatpush.msra.mxu0 %v221
    %1061 = vmatpush.msra.mxu0 %v217
    %1062 = vmatpush.msra.mxu0 %v213
    %1063 = vmatpush.msra.mxu0 %v209
    %1064 = vmatpush.msra.mxu0 %v205
    %1065 = vmatpush.msra.mxu0 %v201
    %1066 = vmatpush.msra.mxu0 %v197
    %1067 = vmatpush.msra.mxu0 %v193
    %1068 = vmatpush.msra.mxu0 %v189
    %1069 = vmatpush.msra.mxu0 %v185
    %1070 = vmatmul.f32.gmra.mxu0 %v886
    %v1071 = vpop.f32.mrf.mxu0
    %v1072 = vadd.f32 %v1052, %v1071
    %1073 = vdwg.mxu0
    %1074 = vmatpush.msra.mxu0 %v182
    %1075 = vmatpush.msra.mxu0 %v178
    %1076 = vmatpush.msra.mxu0 %v174
    %1077 = vmatpush.msra.mxu0 %v170
    %1078 = vmatpush.msra.mxu0 %v166
    %1079 = vmatpush.msra.mxu0 %v162
    %1080 = vmatpush.msra.mxu0 %v158
    %1081 = vmatpush.msra.mxu0 %v154
    %1082 = vmatpush.msra.mxu0 %v150
    %1083 = vmatpush.msra.mxu0 %v146
    %1084 = vmatpush.msra.mxu0 %v142
    %1085 = vmatpush.msra.mxu0 %v138
    %1086 = vmatpush.msra.mxu0 %v134
    %1087 = vmatpush.msra.mxu0 %v130
    %1088 = vmatpush.msra.mxu0 %v126
    %1089 = vmatpush.msra.mxu0 %v122
    %1090 = vmatmul.f32.gmra.mxu0 %v1033
    %v1091 = vpop.f32.mrf.mxu0
    %v1092 = vadd.f32 %v510, %v1091
    %1093 = vdwg.mxu0
    %1094 = vmatpush.msra.mxu0 %v246
    %1095 = vmatpush.msra.mxu0 %v242
    %1096 = vmatpush.msra.mxu0 %v238
    %1097 = vmatpush.msra.mxu0 %v234
    %1098 = vmatpush.msra.mxu0 %v230
    %1099 = vmatpush.msra.mxu0 %v226
    %1100 = vmatpush.msra.mxu0 %v222
    %1101 = vmatpush.msra.mxu0 %v218
    %1102 = vmatpush.msra.mxu0 %v214
    %1103 = vmatpush.msra.mxu0 %v210
    %1104 = vmatpush.msra.mxu0 %v206
    %1105 = vmatpush.msra.mxu0 %v202
    %1106 = vmatpush.msra.mxu0 %v198
    %1107 = vmatpush.msra.mxu0 %v194
    %1108 = vmatpush.msra.mxu0 %v190
    %1109 = vmatpush.msra.mxu0 %v186
    %1110 = vmatmul.f32.gmra.mxu0 %v886
    %v1111 = vpop.f32.mrf.mxu0
    %v1112 = vadd.f32 %v1092, %v1111
    %1113 = vdwg.mxu0
    %1114 = vmatpush.msra.mxu0 %v183
    %1115 = vmatpush.msra.mxu0 %v179
    %1116 = vmatpush.msra.mxu0 %v175
    %1117 = vmatpush.msra.mxu0 %v171
    %1118 = vmatpush.msra.mxu0 %v167
    %1119 = vmatpush.msra.mxu0 %v163
    %1120 = vmatpush.msra.mxu0 %v159
    %1121 = vmatpush.msra.mxu0 %v155
    %1122 = vmatpush.msra.mxu0 %v151
    %1123 = vmatpush.msra.mxu0 %v147
    %1124 = vmatpush.msra.mxu0 %v143
    %1125 = vmatpush.msra.mxu0 %v139
    %1126 = vmatpush.msra.mxu0 %v135
    %1127 = vmatpush.msra.mxu0 %v131
    %1128 = vmatpush.msra.mxu0 %v127
    %1129 = vmatpush.msra.mxu0 %v123
    %1130 = vmatmul.f32.gmra.mxu0 %v1033
    %v1131 = vpop.f32.mrf.mxu0
    %v1132 = vadd.f32 %v511, %v1131
    %1133 = vdwg.mxu0
    %1134 = vmatpush.msra.mxu0 %v247
    %1135 = vmatpush.msra.mxu0 %v243
    %1136 = vmatpush.msra.mxu0 %v239
    %1137 = vmatpush.msra.mxu0 %v235
    %1138 = vmatpush.msra.mxu0 %v231
    %1139 = vmatpush.msra.mxu0 %v227
    %1140 = vmatpush.msra.mxu0 %v223
    %1141 = vmatpush.msra.mxu0 %v219
    %1142 = vmatpush.msra.mxu0 %v215
    %1143 = vmatpush.msra.mxu0 %v211
    %1144 = vmatpush.msra.mxu0 %v207
    %1145 = vmatpush.msra.mxu0 %v203
    %1146 = vmatpush.msra.mxu0 %v199
    %1147 = vmatpush.msra.mxu0 %v195
    %1148 = vmatpush.msra.mxu0 %v191
    %1149 = vmatpush.msra.mxu0 %v187
    %1150 = vmatmul.f32.gmra.mxu0 %v886
    %v1151 = vpop.f32.mrf.mxu0
    %v1152 = vadd.f32 %v1132, %v1151
    %1153 = vdwg.mxu0
    %1154 = vmatpush.msra.mxu0 %v184
    %1155 = vmatpush.msra.mxu0 %v180
    %1156 = vmatpush.msra.mxu0 %v176
    %1157 = vmatpush.msra.mxu0 %v172
    %1158 = vmatpush.msra.mxu0 %v168
    %1159 = vmatpush.msra.mxu0 %v164
    %1160 = vmatpush.msra.mxu0 %v160
    %1161 = vmatpush.msra.mxu0 %v156
    %1162 = vmatpush.msra.mxu0 %v152
    %1163 = vmatpush.msra.mxu0 %v148
    %1164 = vmatpush.msra.mxu0 %v144
    %1165 = vmatpush.msra.mxu0 %v140
    %1166 = vmatpush.msra.mxu0 %v136
    %1167 = vmatpush.msra.mxu0 %v132
    %1168 = vmatpush.msra.mxu0 %v128
    %1169 = vmatpush.msra.mxu0 %v124
    %1170 = vmatmul.f32.gmra.mxu0 %v1033
    %v1171 = vpop.f32.mrf.mxu0
    %v1172 = vadd.f32 %v512, %v1171
    %1173 = vdwg.mxu0
    %1174 = vmatpush.msra.mxu0 %v248
    %1175 = vmatpush.msra.mxu0 %v244
    %1176 = vmatpush.msra.mxu0 %v240
    %1177 = vmatpush.msra.mxu0 %v236
    %1178 = vmatpush.msra.mxu0 %v232
    %1179 = vmatpush.msra.mxu0 %v228
    %1180 = vmatpush.msra.mxu0 %v224
    %1181 = vmatpush.msra.mxu0 %v220
    %1182 = vmatpush.msra.mxu0 %v216
    %1183 = vmatpush.msra.mxu0 %v212
    %1184 = vmatpush.msra.mxu0 %v208
    %1185 = vmatpush.msra.mxu0 %v204
    %1186 = vmatpush.msra.mxu0 %v200
    %1187 = vmatpush.msra.mxu0 %v196
    %1188 = vmatpush.msra.mxu0 %v192
    %1189 = vmatpush.msra.mxu0 %v188
    %1190 = vmatmul.f32.gmra.mxu0 %v886
    %v1191 = vpop.f32.mrf.mxu0
    %v1192 = vadd.f32 %v1172, %v1191
    %1193 = vdwg.mxu0
    %v1194 = vxor.u32 %v1072, 2147483648
    %v1195 = vxor.u32 %v1112, 2147483648
    %v1196 = vxor.u32 %v1152, 2147483648
    %v1197 = vmul.f32 %v1194, 1.442695
    %v1198 = vpow.pop %v1197
    %v1199 = vmul.f32 %v1195, 1.442695
    %v1200 = vpow.pop %v1199
    %v1201 = vmul.f32 %v1196, 1.442695
    %v1202 = vpow.pop %v1201
    %v1203 = vadd.f32 %v1198, 1.0
    %v1204 = vadd.f32 %v1200, 1.0
    %v1205 = vadd.f32 %v1202, 1.0
    %v1206 = vrcp.pop %v1203
    %v1207 = vmul.f32 %v1203, %v1206
    %v1208 = vsub.f32 1.0, %v1207
    %v1209 = vmul.f32 %v1206, %v1208
    %v1210 = vadd.f32 %v1206, %v1209
    %vm1211 = vweird.f32 %v1203
    %vm1212 = vweird.f32 %v1206
    %vm1213 = vmor %vm1211, %vm1212
    %v1214 = vsel %vm1213, %v1206, %v1210
    %v1215 = vand.u32 2147483647, %v1203
    %vm1216 = vcmp.eq.f32.partialorder %v1215, 8.507059e+37
    %v1217 = vand.u32 %v1203, 2147483648
    %v1218 = vor.u32 1.1754944e-38, %v1217
    %v1219 = vsel %vm1216, %v1218, %v1214
    %v1220 = vmul.f32 1.0, %v1219
    %v1221 = vrcp.pop %v1204
    %v1222 = vmul.f32 %v1204, %v1221
    %v1223 = vsub.f32 1.0, %v1222
    %v1224 = vmul.f32 %v1221, %v1223
    %v1225 = vadd.f32 %v1221, %v1224
    %vm1226 = vweird.f32 %v1204
    %vm1227 = vweird.f32 %v1221
    %vm1228 = vmor %vm1226, %vm1227
    %v1229 = vsel %vm1228, %v1221, %v1225
    %v1230 = vand.u32 2147483647, %v1204
    %vm1231 = vcmp.eq.f32.partialorder %v1230, 8.507059e+37
    %v1232 = vand.u32 %v1204, 2147483648
    %v1233 = vor.u32 1.1754944e-38, %v1232
    %v1234 = vsel %vm1231, %v1233, %v1229
    %v1235 = vmul.f32 1.0, %v1234
    %v1236 = vrcp.pop %v1205
    %v1237 = vmul.f32 %v1205, %v1236
    %v1238 = vsub.f32 1.0, %v1237
    %v1239 = vmul.f32 %v1236, %v1238
    %v1240 = vadd.f32 %v1236, %v1239
    %vm1241 = vweird.f32 %v1205
    %vm1242 = vweird.f32 %v1236
    %vm1243 = vmor %vm1241, %vm1242
    %v1244 = vsel %vm1243, %v1236, %v1240
    %v1245 = vand.u32 2147483647, %v1205
    %vm1246 = vcmp.eq.f32.partialorder %v1245, 8.507059e+37
    %v1247 = vand.u32 %v1205, 2147483648
    %v1248 = vor.u32 1.1754944e-38, %v1247
    %v1249 = vsel %vm1246, %v1248, %v1244
    %v1250 = vmul.f32 1.0, %v1249
    %v1251 = vtanh.pop %v1192
    %v1252 = vmul.f32 %v1235, %v884
    %v1253 = vmul.f32 %v1220, %v1251
    %v1254 = vadd.f32 %v1252, %v1253
    %v1255 = vtanh.pop %v1254
    %v1256 = vmul.f32 %v1250, %v1255
    %1257 = vmatpush.msra.mxu0 %v117
    %1258 = vmatpush.msra.mxu0 %v113
    %1259 = vmatpush.msra.mxu0 %v109
    %1260 = vmatpush.msra.mxu0 %v105
    %1261 = vmatpush.msra.mxu0 %v101
    %1262 = vmatpush.msra.mxu0 %v97
    %1263 = vmatpush.msra.mxu0 %v93
    %1264 = vmatpush.msra.mxu0 %v89
    %1265 = vmatpush.msra.mxu0 %v85
    %1266 = vmatpush.msra.mxu0 %v81
    %1267 = vmatpush.msra.mxu0 %v77
    %1268 = vmatpush.msra.mxu0 %v73
    %1269 = vmatpush.msra.mxu0 %v69
    %1270 = vmatpush.msra.mxu0 %v65
    %1271 = vmatpush.msra.mxu0 %v61
    %1272 = vmatpush.msra.mxu0 %v57
    %1273 = vmatmul.f32.gmra.mxu0 %v1033
    %v1274 = vpop.f32.mrf.mxu0
    %v1275 = vadd.f32 0.0, %v1274
    %1276 = vdwg.mxu0
    %1277 = vmatpush.msra.mxu0 %v118
    %1278 = vmatpush.msra.mxu0 %v114
    %1279 = vmatpush.msra.mxu0 %v110
    %1280 = vmatpush.msra.mxu0 %v106
    %1281 = vmatpush.msra.mxu0 %v102
    %1282 = vmatpush.msra.mxu0 %v98
    %1283 = vmatpush.msra.mxu0 %v94
    %1284 = vmatpush.msra.mxu0 %v90
    %1285 = vmatpush.msra.mxu0 %v86
    %1286 = vmatpush.msra.mxu0 %v82
    %1287 = vmatpush.msra.mxu0 %v78
    %1288 = vmatpush.msra.mxu0 %v74
    %1289 = vmatpush.msra.mxu0 %v70
    %1290 = vmatpush.msra.mxu0 %v66
    %1291 = vmatpush.msra.mxu0 %v62
    %1292 = vmatpush.msra.mxu0 %v58
    %1293 = vmatmul.f32.gmra.mxu0 %v1033
    %v1294 = vpop.f32.mrf.mxu0
    %v1295 = vadd.f32 0.0, %v1294
    %1296 = vdwg.mxu0
    %1297 = vmatpush.msra.mxu0 %v119
    %1298 = vmatpush.msra.mxu0 %v115
    %1299 = vmatpush.msra.mxu0 %v111
    %1300 = vmatpush.msra.mxu0 %v107
    %1301 = vmatpush.msra.mxu0 %v103
    %1302 = vmatpush.msra.mxu0 %v99
    %1303 = vmatpush.msra.mxu0 %v95
    %1304 = vmatpush.msra.mxu0 %v91
    %1305 = vmatpush.msra.mxu0 %v87
    %1306 = vmatpush.msra.mxu0 %v83
    %1307 = vmatpush.msra.mxu0 %v79
    %1308 = vmatpush.msra.mxu0 %v75
    %1309 = vmatpush.msra.mxu0 %v71
    %1310 = vmatpush.msra.mxu0 %v67
    %1311 = vmatpush.msra.mxu0 %v63
    %1312 = vmatpush.msra.mxu0 %v59
    %1313 = vmatmul.f32.gmra.mxu0 %v1033
    %v1314 = vpop.f32.mrf.mxu0
    %v1315 = vadd.f32 0.0, %v1314
    %1316 = vdwg.mxu0
    %1317 = vmatpush.msra.mxu0 %v120
    %1318 = vmatpush.msra.mxu0 %v116
    %1319 = vmatpush.msra.mxu0 %v112
    %1320 = vmatpush.msra.mxu0 %v108
    %1321 = vmatpush.msra.mxu0 %v104
    %1322 = vmatpush.msra.mxu0 %v100
    %1323 = vmatpush.msra.mxu0 %v96
    %1324 = vmatpush.msra.mxu0 %v92
    %1325 = vmatpush.msra.mxu0 %v88
    %1326 = vmatpush.msra.mxu0 %v84
    %1327 = vmatpush.msra.mxu0 %v80
    %1328 = vmatpush.msra.mxu0 %v76
    %1329 = vmatpush.msra.mxu0 %v72
    %1330 = vmatpush.msra.mxu0 %v68
    %1331 = vmatpush.msra.mxu0 %v64
    %1332 = vmatpush.msra.mxu0 %v60
    %1333 = vmatmul.f32.gmra.mxu0 %v1033
    %v1334 = vpop.f32.mrf.mxu0
    %v1335 = vadd.f32 0.0, %v1334
    %1336 = vdwg.mxu0
    %v1337 = vadd.f32 %v368, %v1275
    %v1338 = vadd.f32 %v409, %v1295
    %v1339 = vadd.f32 %v450, %v1315
    %v1340 = vadd.f32 %v491, %v1335
    %v1341 = vxor.u32 %v1337, 2147483648
    %v1342 = vxor.u32 %v1338, 2147483648
    %v1343 = vxor.u32 %v1339, 2147483648
    %v1344 = vmul.f32 %v1341, 1.442695
    %v1345 = vpow.pop %v1344
    %v1346 = vmul.f32 %v1342, 1.442695
    %v1347 = vpow.pop %v1346
    %v1348 = vmul.f32 %v1343, 1.442695
    %v1349 = vpow.pop %v1348
    %v1350 = vadd.f32 %v1345, 1.0
    %v1351 = vadd.f32 %v1347, 1.0
    %v1352 = vadd.f32 %v1349, 1.0
    %v1353 = vrcp.pop %v1350
    %v1354 = vmul.f32 %v1350, %v1353
    %v1355 = vsub.f32 1.0, %v1354
    %v1356 = vmul.f32 %v1353, %v1355
    %v1357 = vadd.f32 %v1353, %v1356
    %vm1358 = vweird.f32 %v1350
    %vm1359 = vweird.f32 %v1353
    %vm1360 = vmor %vm1358, %vm1359
    %v1361 = vsel %vm1360, %v1353, %v1357
    %v1362 = vand.u32 2147483647, %v1350
    %vm1363 = vcmp.eq.f32.partialorder %v1362, 8.507059e+37
    %v1364 = vand.u32 %v1350, 2147483648
    %v1365 = vor.u32 1.1754944e-38, %v1364
    %v1366 = vsel %vm1363, %v1365, %v1361
    %v1367 = vmul.f32 1.0, %v1366
    %v1368 = vrcp.pop %v1351
    %v1369 = vmul.f32 %v1351, %v1368
    %v1370 = vsub.f32 1.0, %v1369
    %v1371 = vmul.f32 %v1368, %v1370
    %v1372 = vadd.f32 %v1368, %v1371
    %vm1373 = vweird.f32 %v1351
    %vm1374 = vweird.f32 %v1368
    %vm1375 = vmor %vm1373, %vm1374
    %v1376 = vsel %vm1375, %v1368, %v1372
    %v1377 = vand.u32 2147483647, %v1351
    %vm1378 = vcmp.eq.f32.partialorder %v1377, 8.507059e+37
    %v1379 = vand.u32 %v1351, 2147483648
    %v1380 = vor.u32 1.1754944e-38, %v1379
    %v1381 = vsel %vm1378, %v1380, %v1376
    %v1382 = vmul.f32 1.0, %v1381
    %v1383 = vrcp.pop %v1352
    %v1384 = vmul.f32 %v1352, %v1383
    %v1385 = vsub.f32 1.0, %v1384
    %v1386 = vmul.f32 %v1383, %v1385
    %v1387 = vadd.f32 %v1383, %v1386
    %vm1388 = vweird.f32 %v1352
    %vm1389 = vweird.f32 %v1383
    %vm1390 = vmor %vm1388, %vm1389
    %v1391 = vsel %vm1390, %v1383, %v1387
    %v1392 = vand.u32 2147483647, %v1352
    %vm1393 = vcmp.eq.f32.partialorder %v1392, 8.507059e+37
    %v1394 = vand.u32 %v1352, 2147483648
    %v1395 = vor.u32 1.1754944e-38, %v1394
    %v1396 = vsel %vm1393, %v1395, %v1391
    %v1397 = vmul.f32 1.0, %v1396
    %v1398 = vtanh.pop %v1340
    %v1399 = vmul.f32 %v1382, %v1031
    %v1400 = vmul.f32 %v1367, %v1398
    %v1401 = vadd.f32 %v1399, %v1400
    %v1402 = vtanh.pop %v1401
    %v1403 = vmul.f32 %v1397, %v1402
    %1404 = vmatpush.msra.mxu0 %v181
    %1405 = vmatpush.msra.mxu0 %v177
    %1406 = vmatpush.msra.mxu0 %v173
    %1407 = vmatpush.msra.mxu0 %v169
    %1408 = vmatpush.msra.mxu0 %v165
    %1409 = vmatpush.msra.mxu0 %v161
    %1410 = vmatpush.msra.mxu0 %v157
    %1411 = vmatpush.msra.mxu0 %v153
    %1412 = vmatpush.msra.mxu0 %v149
    %1413 = vmatpush.msra.mxu0 %v145
    %1414 = vmatpush.msra.mxu0 %v141
    %1415 = vmatpush.msra.mxu0 %v137
    %1416 = vmatpush.msra.mxu0 %v133
    %1417 = vmatpush.msra.mxu0 %v129
    %1418 = vmatpush.msra.mxu0 %v125
    %1419 = vmatpush.msra.mxu0 %v121
    %1420 = vmatmul.f32.gmra.mxu0 %v1403
    %v1421 = vpop.f32.mrf.mxu0
    %v1422 = vadd.f32 %v509, %v1421
    %1423 = vdwg.mxu0
    %1424 = vmatpush.msra.mxu0 %v245
    %1425 = vmatpush.msra.mxu0 %v241
    %1426 = vmatpush.msra.mxu0 %v237
    %1427 = vmatpush.msra.mxu0 %v233
    %1428 = vmatpush.msra.mxu0 %v229
    %1429 = vmatpush.msra.mxu0 %v225
    %1430 = vmatpush.msra.mxu0 %v221
    %1431 = vmatpush.msra.mxu0 %v217
    %1432 = vmatpush.msra.mxu0 %v213
    %1433 = vmatpush.msra.mxu0 %v209
    %1434 = vmatpush.msra.mxu0 %v205
    %1435 = vmatpush.msra.mxu0 %v201
    %1436 = vmatpush.msra.mxu0 %v197
    %1437 = vmatpush.msra.mxu0 %v193
    %1438 = vmatpush.msra.mxu0 %v189
    %1439 = vmatpush.msra.mxu0 %v185
    %1440 = vmatmul.f32.gmra.mxu0 %v1256
    %v1441 = vpop.f32.mrf.mxu0
    %v1442 = vadd.f32 %v1422, %v1441
    %1443 = vdwg.mxu0
    %1444 = vmatpush.msra.mxu0 %v182
    %1445 = vmatpush.msra.mxu0 %v178
    %1446 = vmatpush.msra.mxu0 %v174
    %1447 = vmatpush.msra.mxu0 %v170
    %1448 = vmatpush.msra.mxu0 %v166
    %1449 = vmatpush.msra.mxu0 %v162
    %1450 = vmatpush.msra.mxu0 %v158
    %1451 = vmatpush.msra.mxu0 %v154
    %1452 = vmatpush.msra.mxu0 %v150
    %1453 = vmatpush.msra.mxu0 %v146
    %1454 = vmatpush.msra.mxu0 %v142
    %1455 = vmatpush.msra.mxu0 %v138
    %1456 = vmatpush.msra.mxu0 %v134
    %1457 = vmatpush.msra.mxu0 %v130
    %1458 = vmatpush.msra.mxu0 %v126
    %1459 = vmatpush.msra.mxu0 %v122
    %1460 = vmatmul.f32.gmra.mxu0 %v1403
    %v1461 = vpop.f32.mrf.mxu0
    %v1462 = vadd.f32 %v510, %v1461
    %1463 = vdwg.mxu0
    %1464 = vmatpush.msra.mxu0 %v246
    %1465 = vmatpush.msra.mxu0 %v242
    %1466 = vmatpush.msra.mxu0 %v238
    %1467 = vmatpush.msra.mxu0 %v234
    %1468 = vmatpush.msra.mxu0 %v230
    %1469 = vmatpush.msra.mxu0 %v226
    %1470 = vmatpush.msra.mxu0 %v222
    %1471 = vmatpush.msra.mxu0 %v218
    %1472 = vmatpush.msra.mxu0 %v214
    %1473 = vmatpush.msra.mxu0 %v210
    %1474 = vmatpush.msra.mxu0 %v206
    %1475 = vmatpush.msra.mxu0 %v202
    %1476 = vmatpush.msra.mxu0 %v198
    %1477 = vmatpush.msra.mxu0 %v194
    %1478 = vmatpush.msra.mxu0 %v190
    %1479 = vmatpush.msra.mxu0 %v186
    %1480 = vmatmul.f32.gmra.mxu0 %v1256
    %v1481 = vpop.f32.mrf.mxu0
    %v1482 = vadd.f32 %v1462, %v1481
    %1483 = vdwg.mxu0
    %1484 = vmatpush.msra.mxu0 %v183
    %1485 = vmatpush.msra.mxu0 %v179
    %1486 = vmatpush.msra.mxu0 %v175
    %1487 = vmatpush.msra.mxu0 %v171
    %1488 = vmatpush.msra.mxu0 %v167
    %1489 = vmatpush.msra.mxu0 %v163
    %1490 = vmatpush.msra.mxu0 %v159
    %1491 = vmatpush.msra.mxu0 %v155
    %1492 = vmatpush.msra.mxu0 %v151
    %1493 = vmatpush.msra.mxu0 %v147
    %1494 = vmatpush.msra.mxu0 %v143
    %1495 = vmatpush.msra.mxu0 %v139
    %1496 = vmatpush.msra.mxu0 %v135
    %1497 = vmatpush.msra.mxu0 %v131
    %1498 = vmatpush.msra.mxu0 %v127
    %1499 = vmatpush.msra.mxu0 %v123
    %1500 = vmatmul.f32.gmra.mxu0 %v1403
    %v1501 = vpop.f32.mrf.mxu0
    %v1502 = vadd.f32 %v511, %v1501
    %1503 = vdwg.mxu0
    %1504 = vmatpush.msra.mxu0 %v247
    %1505 = vmatpush.msra.mxu0 %v243
    %1506 = vmatpush.msra.mxu0 %v239
    %1507 = vmatpush.msra.mxu0 %v235
    %1508 = vmatpush.msra.mxu0 %v231
    %1509 = vmatpush.msra.mxu0 %v227
    %1510 = vmatpush.msra.mxu0 %v223
    %1511 = vmatpush.msra.mxu0 %v219
    %1512 = vmatpush.msra.mxu0 %v215
    %1513 = vmatpush.msra.mxu0 %v211
    %1514 = vmatpush.msra.mxu0 %v207
    %1515 = vmatpush.msra.mxu0 %v203
    %1516 = vmatpush.msra.mxu0 %v199
    %1517 = vmatpush.msra.mxu0 %v195
    %1518 = vmatpush.msra.mxu0 %v191
    %1519 = vmatpush.msra.mxu0 %v187
    %1520 = vmatmul.f32.gmra.mxu0 %v1256
    %v1521 = vpop.f32.mrf.mxu0
    %v1522 = vadd.f32 %v1502, %v1521
    %1523 = vdwg.mxu0
    %1524 = vmatpush.msra.mxu0 %v184
    %1525 = vmatpush.msra.mxu0 %v180
    %1526 = vmatpush.msra.mxu0 %v176
    %1527 = vmatpush.msra.mxu0 %v172
    %1528 = vmatpush.msra.mxu0 %v168
    %1529 = vmatpush.msra.mxu0 %v164
    %1530 = vmatpush.msra.mxu0 %v160
    %1531 = vmatpush.msra.mxu0 %v156
    %1532 = vmatpush.msra.mxu0 %v152
    %1533 = vmatpush.msra.mxu0 %v148
    %1534 = vmatpush.msra.mxu0 %v144
    %1535 = vmatpush.msra.mxu0 %v140
    %1536 = vmatpush.msra.mxu0 %v136
    %1537 = vmatpush.msra.mxu0 %v132
    %1538 = vmatpush.msra.mxu0 %v128
    %1539 = vmatpush.msra.mxu0 %v124
    %1540 = vmatmul.f32.gmra.mxu0 %v1403
    %v1541 = vpop.f32.mrf.mxu0
    %v1542 = vadd.f32 %v512, %v1541
    %1543 = vdwg.mxu0
    %1544 = vmatpush.msra.mxu0 %v248
    %1545 = vmatpush.msra.mxu0 %v244
    %1546 = vmatpush.msra.mxu0 %v240
    %1547 = vmatpush.msra.mxu0 %v236
    %1548 = vmatpush.msra.mxu0 %v232
    %1549 = vmatpush.msra.mxu0 %v228
    %1550 = vmatpush.msra.mxu0 %v224
    %1551 = vmatpush.msra.mxu0 %v220
    %1552 = vmatpush.msra.mxu0 %v216
    %1553 = vmatpush.msra.mxu0 %v212
    %1554 = vmatpush.msra.mxu0 %v208
    %1555 = vmatpush.msra.mxu0 %v204
    %1556 = vmatpush.msra.mxu0 %v200
    %1557 = vmatpush.msra.mxu0 %v196
    %1558 = vmatpush.msra.mxu0 %v192
    %1559 = vmatpush.msra.mxu0 %v188
    %1560 = vmatmul.f32.gmra.mxu0 %v1256
    %v1561 = vpop.f32.mrf.mxu0
    %v1562 = vadd.f32 %v1542, %v1561
    %1563 = vdwg.mxu0
    %v1564 = vxor.u32 %v1442, 2147483648
    %v1565 = vxor.u32 %v1482, 2147483648
    %v1566 = vxor.u32 %v1522, 2147483648
    %v1567 = vmul.f32 %v1564, 1.442695
    %v1568 = vpow.pop %v1567
    %v1569 = vmul.f32 %v1565, 1.442695
    %v1570 = vpow.pop %v1569
    %v1571 = vmul.f32 %v1566, 1.442695
    %v1572 = vpow.pop %v1571
    %v1573 = vadd.f32 %v1568, 1.0
    %v1574 = vadd.f32 %v1570, 1.0
    %v1575 = vadd.f32 %v1572, 1.0
    %v1576 = vrcp.pop %v1573
    %v1577 = vmul.f32 %v1573, %v1576
    %v1578 = vsub.f32 1.0, %v1577
    %v1579 = vmul.f32 %v1576, %v1578
    %v1580 = vadd.f32 %v1576, %v1579
    %vm1581 = vweird.f32 %v1573
    %vm1582 = vweird.f32 %v1576
    %vm1583 = vmor %vm1581, %vm1582
    %v1584 = vsel %vm1583, %v1576, %v1580
    %v1585 = vand.u32 2147483647, %v1573
    %vm1586 = vcmp.eq.f32.partialorder %v1585, 8.507059e+37
    %v1587 = vand.u32 %v1573, 2147483648
    %v1588 = vor.u32 1.1754944e-38, %v1587
    %v1589 = vsel %vm1586, %v1588, %v1584
    %v1590 = vmul.f32 1.0, %v1589
    %v1591 = vrcp.pop %v1574
    %v1592 = vmul.f32 %v1574, %v1591
    %v1593 = vsub.f32 1.0, %v1592
    %v1594 = vmul.f32 %v1591, %v1593
    %v1595 = vadd.f32 %v1591, %v1594
    %vm1596 = vweird.f32 %v1574
    %vm1597 = vweird.f32 %v1591
    %vm1598 = vmor %vm1596, %vm1597
    %v1599 = vsel %vm1598, %v1591, %v1595
    %v1600 = vand.u32 2147483647, %v1574
    %vm1601 = vcmp.eq.f32.partialorder %v1600, 8.507059e+37
    %v1602 = vand.u32 %v1574, 2147483648
    %v1603 = vor.u32 1.1754944e-38, %v1602
    %v1604 = vsel %vm1601, %v1603, %v1599
    %v1605 = vmul.f32 1.0, %v1604
    %v1606 = vrcp.pop %v1575
    %v1607 = vmul.f32 %v1575, %v1606
    %v1608 = vsub.f32 1.0, %v1607
    %v1609 = vmul.f32 %v1606, %v1608
    %v1610 = vadd.f32 %v1606, %v1609
    %vm1611 = vweird.f32 %v1575
    %vm1612 = vweird.f32 %v1606
    %vm1613 = vmor %vm1611, %vm1612
    %v1614 = vsel %vm1613, %v1606, %v1610
    %v1615 = vand.u32 2147483647, %v1575
    %vm1616 = vcmp.eq.f32.partialorder %v1615, 8.507059e+37
    %v1617 = vand.u32 %v1575, 2147483648
    %v1618 = vor.u32 1.1754944e-38, %v1617
    %v1619 = vsel %vm1616, %v1618, %v1614
    %v1620 = vmul.f32 1.0, %v1619
    %v1621 = vtanh.pop %v1562
    %v1622 = vmul.f32 %v1605, %v1254
    %v1623 = vmul.f32 %v1590, %v1621
    %v1624 = vadd.f32 %v1622, %v1623
    %v1625 = vtanh.pop %v1624
    %v1626 = vmul.f32 %v1620, %v1625
    %1627 = vmatpush.msra.mxu0 %v117
    %1628 = vmatpush.msra.mxu0 %v113
    %1629 = vmatpush.msra.mxu0 %v109
    %1630 = vmatpush.msra.mxu0 %v105
    %1631 = vmatpush.msra.mxu0 %v101
    %1632 = vmatpush.msra.mxu0 %v97
    %1633 = vmatpush.msra.mxu0 %v93
    %1634 = vmatpush.msra.mxu0 %v89
    %1635 = vmatpush.msra.mxu0 %v85
    %1636 = vmatpush.msra.mxu0 %v81
    %1637 = vmatpush.msra.mxu0 %v77
    %1638 = vmatpush.msra.mxu0 %v73
    %1639 = vmatpush.msra.mxu0 %v69
    %1640 = vmatpush.msra.mxu0 %v65
    %1641 = vmatpush.msra.mxu0 %v61
    %1642 = vmatpush.msra.mxu0 %v57
    %1643 = vmatmul.f32.gmra.mxu0 %v1403
    %v1644 = vpop.f32.mrf.mxu0
    %v1645 = vadd.f32 0.0, %v1644
    %1646 = vdwg.mxu0
    %1647 = vmatpush.msra.mxu0 %v118
    %1648 = vmatpush.msra.mxu0 %v114
    %1649 = vmatpush.msra.mxu0 %v110
    %1650 = vmatpush.msra.mxu0 %v106
    %1651 = vmatpush.msra.mxu0 %v102
    %1652 = vmatpush.msra.mxu0 %v98
    %1653 = vmatpush.msra.mxu0 %v94
    %1654 = vmatpush.msra.mxu0 %v90
    %1655 = vmatpush.msra.mxu0 %v86
    %1656 = vmatpush.msra.mxu0 %v82
    %1657 = vmatpush.msra.mxu0 %v78
    %1658 = vmatpush.msra.mxu0 %v74
    %1659 = vmatpush.msra.mxu0 %v70
    %1660 = vmatpush.msra.mxu0 %v66
    %1661 = vmatpush.msra.mxu0 %v62
    %1662 = vmatpush.msra.mxu0 %v58
    %1663 = vmatmul.f32.gmra.mxu0 %v1403
    %v1664 = vpop.f32.mrf.mxu0
    %v1665 = vadd.f32 0.0, %v1664
    %1666 = vdwg.mxu0
    %1667 = vmatpush.msra.mxu0 %v119
    %1668 = vmatpush.msra.mxu0 %v115
    %1669 = vmatpush.msra.mxu0 %v111
    %1670 = vmatpush.msra.mxu0 %v107
    %1671 = vmatpush.msra.mxu0 %v103
    %1672 = vmatpush.msra.mxu0 %v99
    %1673 = vmatpush.msra.mxu0 %v95
    %1674 = vmatpush.msra.mxu0 %v91
    %1675 = vmatpush.msra.mxu0 %v87
    %1676 = vmatpush.msra.mxu0 %v83
    %1677 = vmatpush.msra.mxu0 %v79
    %1678 = vmatpush.msra.mxu0 %v75
    %1679 = vmatpush.msra.mxu0 %v71
    %1680 = vmatpush.msra.mxu0 %v67
    %1681 = vmatpush.msra.mxu0 %v63
    %1682 = vmatpush.msra.mxu0 %v59
    %1683 = vmatmul.f32.gmra.mxu0 %v1403
    %v1684 = vpop.f32.mrf.mxu0
    %v1685 = vadd.f32 0.0, %v1684
    %1686 = vdwg.mxu0
    %1687 = vmatpush.msra.mxu0 %v120
    %1688 = vmatpush.msra.mxu0 %v116
    %1689 = vmatpush.msra.mxu0 %v112
    %1690 = vmatpush.msra.mxu0 %v108
    %1691 = vmatpush.msra.mxu0 %v104
    %1692 = vmatpush.msra.mxu0 %v100
    %1693 = vmatpush.msra.mxu0 %v96
    %1694 = vmatpush.msra.mxu0 %v92
    %1695 = vmatpush.msra.mxu0 %v88
    %1696 = vmatpush.msra.mxu0 %v84
    %1697 = vmatpush.msra.mxu0 %v80
    %1698 = vmatpush.msra.mxu0 %v76
    %1699 = vmatpush.msra.mxu0 %v72
    %1700 = vmatpush.msra.mxu0 %v68
    %1701 = vmatpush.msra.mxu0 %v64
    %1702 = vmatpush.msra.mxu0 %v60
    %1703 = vmatmul.f32.gmra.mxu0 %v1403
    %v1704 = vpop.f32.mrf.mxu0
    %v1705 = vadd.f32 0.0, %v1704
    %1706 = vdwg.mxu0
    %v1707 = vadd.f32 %v371, %v1645
    %v1708 = vadd.f32 %v412, %v1665
    %v1709 = vadd.f32 %v453, %v1685
    %v1710 = vadd.f32 %v494, %v1705
    %v1711 = vxor.u32 %v1707, 2147483648
    %v1712 = vxor.u32 %v1708, 2147483648
    %v1713 = vxor.u32 %v1709, 2147483648
    %v1714 = vmul.f32 %v1711, 1.442695
    %v1715 = vpow.pop %v1714
    %v1716 = vmul.f32 %v1712, 1.442695
    %v1717 = vpow.pop %v1716
    %v1718 = vmul.f32 %v1713, 1.442695
    %v1719 = vpow.pop %v1718
    %v1720 = vadd.f32 %v1715, 1.0
    %v1721 = vadd.f32 %v1717, 1.0
    %v1722 = vadd.f32 %v1719, 1.0
    %v1723 = vrcp.pop %v1720
    %v1724 = vmul.f32 %v1720, %v1723
    %v1725 = vsub.f32 1.0, %v1724
    %v1726 = vmul.f32 %v1723, %v1725
    %v1727 = vadd.f32 %v1723, %v1726
    %vm1728 = vweird.f32 %v1720
    %vm1729 = vweird.f32 %v1723
    %vm1730 = vmor %vm1728, %vm1729
    %v1731 = vsel %vm1730, %v1723, %v1727
    %v1732 = vand.u32 2147483647, %v1720
    %vm1733 = vcmp.eq.f32.partialorder %v1732, 8.507059e+37
    %v1734 = vand.u32 %v1720, 2147483648
    %v1735 = vor.u32 1.1754944e-38, %v1734
    %v1736 = vsel %vm1733, %v1735, %v1731
    %v1737 = vmul.f32 1.0, %v1736
    %v1738 = vrcp.pop %v1721
    %v1739 = vmul.f32 %v1721, %v1738
    %v1740 = vsub.f32 1.0, %v1739
    %v1741 = vmul.f32 %v1738, %v1740
    %v1742 = vadd.f32 %v1738, %v1741
    %vm1743 = vweird.f32 %v1721
    %vm1744 = vweird.f32 %v1738
    %vm1745 = vmor %vm1743, %vm1744
    %v1746 = vsel %vm1745, %v1738, %v1742
    %v1747 = vand.u32 2147483647, %v1721
    %vm1748 = vcmp.eq.f32.partialorder %v1747, 8.507059e+37
    %v1749 = vand.u32 %v1721, 2147483648
    %v1750 = vor.u32 1.1754944e-38, %v1749
    %v1751 = vsel %vm1748, %v1750, %v1746
    %v1752 = vmul.f32 1.0, %v1751
    %v1753 = vrcp.pop %v1722
    %v1754 = vmul.f32 %v1722, %v1753
    %v1755 = vsub.f32 1.0, %v1754
    %v1756 = vmul.f32 %v1753, %v1755
    %v1757 = vadd.f32 %v1753, %v1756
    %vm1758 = vweird.f32 %v1722
    %vm1759 = vweird.f32 %v1753
    %vm1760 = vmor %vm1758, %vm1759
    %v1761 = vsel %vm1760, %v1753, %v1757
    %v1762 = vand.u32 2147483647, %v1722
    %vm1763 = vcmp.eq.f32.partialorder %v1762, 8.507059e+37
    %v1764 = vand.u32 %v1722, 2147483648
    %v1765 = vor.u32 1.1754944e-38, %v1764
    %v1766 = vsel %vm1763, %v1765, %v1761
    %v1767 = vmul.f32 1.0, %v1766
    %v1768 = vtanh.pop %v1710
    %v1769 = vmul.f32 %v1752, %v1401
    %v1770 = vmul.f32 %v1737, %v1768
    %v1771 = vadd.f32 %v1769, %v1770
    %v1772 = vtanh.pop %v1771
    %v1773 = vmul.f32 %v1767, %v1772
    %1774 = vmatpush.msra.mxu0 %v181
    %1775 = vmatpush.msra.mxu0 %v177
    %1776 = vmatpush.msra.mxu0 %v173
    %1777 = vmatpush.msra.mxu0 %v169
    %1778 = vmatpush.msra.mxu0 %v165
    %1779 = vmatpush.msra.mxu0 %v161
    %1780 = vmatpush.msra.mxu0 %v157
    %1781 = vmatpush.msra.mxu0 %v153
    %1782 = vmatpush.msra.mxu0 %v149
    %1783 = vmatpush.msra.mxu0 %v145
    %1784 = vmatpush.msra.mxu0 %v141
    %1785 = vmatpush.msra.mxu0 %v137
    %1786 = vmatpush.msra.mxu0 %v133
    %1787 = vmatpush.msra.mxu0 %v129
    %1788 = vmatpush.msra.mxu0 %v125
    %1789 = vmatpush.msra.mxu0 %v121
    %1790 = vmatmul.f32.gmra.mxu0 %v1773
    %v1791 = vpop.f32.mrf.mxu0
    %v1792 = vadd.f32 %v509, %v1791
    %1793 = vdwg.mxu0
    %1794 = vmatpush.msra.mxu0 %v245
    %1795 = vmatpush.msra.mxu0 %v241
    %1796 = vmatpush.msra.mxu0 %v237
    %1797 = vmatpush.msra.mxu0 %v233
    %1798 = vmatpush.msra.mxu0 %v229
    %1799 = vmatpush.msra.mxu0 %v225
    %1800 = vmatpush.msra.mxu0 %v221
    %1801 = vmatpush.msra.mxu0 %v217
    %1802 = vmatpush.msra.mxu0 %v213
    %1803 = vmatpush.msra.mxu0 %v209
    %1804 = vmatpush.msra.mxu0 %v205
    %1805 = vmatpush.msra.mxu0 %v201
    %1806 = vmatpush.msra.mxu0 %v197
    %1807 = vmatpush.msra.mxu0 %v193
    %1808 = vmatpush.msra.mxu0 %v189
    %1809 = vmatpush.msra.mxu0 %v185
    %1810 = vmatmul.f32.gmra.mxu0 %v1626
    %v1811 = vpop.f32.mrf.mxu0
    %v1812 = vadd.f32 %v1792, %v1811
    %1813 = vdwg.mxu0
    %1814 = vmatpush.msra.mxu0 %v182
    %1815 = vmatpush.msra.mxu0 %v178
    %1816 = vmatpush.msra.mxu0 %v174
    %1817 = vmatpush.msra.mxu0 %v170
    %1818 = vmatpush.msra.mxu0 %v166
    %1819 = vmatpush.msra.mxu0 %v162
    %1820 = vmatpush.msra.mxu0 %v158
    %1821 = vmatpush.msra.mxu0 %v154
    %1822 = vmatpush.msra.mxu0 %v150
    %1823 = vmatpush.msra.mxu0 %v146
    %1824 = vmatpush.msra.mxu0 %v142
    %1825 = vmatpush.msra.mxu0 %v138
    %1826 = vmatpush.msra.mxu0 %v134
    %1827 = vmatpush.msra.mxu0 %v130
    %1828 = vmatpush.msra.mxu0 %v126
    %1829 = vmatpush.msra.mxu0 %v122
    %1830 = vmatmul.f32.gmra.mxu0 %v1773
    %v1831 = vpop.f32.mrf.mxu0
    %v1832 = vadd.f32 %v510, %v1831
    %1833 = vdwg.mxu0
    %1834 = vmatpush.msra.mxu0 %v246
    %1835 = vmatpush.msra.mxu0 %v242
    %1836 = vmatpush.msra.mxu0 %v238
    %1837 = vmatpush.msra.mxu0 %v234
    %1838 = vmatpush.msra.mxu0 %v230
    %1839 = vmatpush.msra.mxu0 %v226
    %1840 = vmatpush.msra.mxu0 %v222
    %1841 = vmatpush.msra.mxu0 %v218
    %1842 = vmatpush.msra.mxu0 %v214
    %1843 = vmatpush.msra.mxu0 %v210
    %1844 = vmatpush.msra.mxu0 %v206
    %1845 = vmatpush.msra.mxu0 %v202
    %1846 = vmatpush.msra.mxu0 %v198
    %1847 = vmatpush.msra.mxu0 %v194
    %1848 = vmatpush.msra.mxu0 %v190
    %1849 = vmatpush.msra.mxu0 %v186
    %1850 = vmatmul.f32.gmra.mxu0 %v1626
    %v1851 = vpop.f32.mrf.mxu0
    %v1852 = vadd.f32 %v1832, %v1851
    %1853 = vdwg.mxu0
    %1854 = vmatpush.msra.mxu0 %v183
    %1855 = vmatpush.msra.mxu0 %v179
    %1856 = vmatpush.msra.mxu0 %v175
    %1857 = vmatpush.msra.mxu0 %v171
    %1858 = vmatpush.msra.mxu0 %v167
    %1859 = vmatpush.msra.mxu0 %v163
    %1860 = vmatpush.msra.mxu0 %v159
    %1861 = vmatpush.msra.mxu0 %v155
    %1862 = vmatpush.msra.mxu0 %v151
    %1863 = vmatpush.msra.mxu0 %v147
    %1864 = vmatpush.msra.mxu0 %v143
    %1865 = vmatpush.msra.mxu0 %v139
    %1866 = vmatpush.msra.mxu0 %v135
    %1867 = vmatpush.msra.mxu0 %v131
    %1868 = vmatpush.msra.mxu0 %v127
    %1869 = vmatpush.msra.mxu0 %v123
    %1870 = vmatmul.f32.gmra.mxu0 %v1773
    %v1871 = vpop.f32.mrf.mxu0
    %v1872 = vadd.f32 %v511, %v1871
    %1873 = vdwg.mxu0
    %1874 = vmatpush.msra.mxu0 %v247
    %1875 = vmatpush.msra.mxu0 %v243
    %1876 = vmatpush.msra.mxu0 %v239
    %1877 = vmatpush.msra.mxu0 %v235
    %1878 = vmatpush.msra.mxu0 %v231
    %1879 = vmatpush.msra.mxu0 %v227
    %1880 = vmatpush.msra.mxu0 %v223
    %1881 = vmatpush.msra.mxu0 %v219
    %1882 = vmatpush.msra.mxu0 %v215
    %1883 = vmatpush.msra.mxu0 %v211
    %1884 = vmatpush.msra.mxu0 %v207
    %1885 = vmatpush.msra.mxu0 %v203
    %1886 = vmatpush.msra.mxu0 %v199
    %1887 = vmatpush.msra.mxu0 %v195
    %1888 = vmatpush.msra.mxu0 %v191
    %1889 = vmatpush.msra.mxu0 %v187
    %1890 = vmatmul.f32.gmra.mxu0 %v1626
    %v1891 = vpop.f32.mrf.mxu0
    %v1892 = vadd.f32 %v1872, %v1891
    %1893 = vdwg.mxu0
    %1894 = vmatpush.msra.mxu0 %v184
    %1895 = vmatpush.msra.mxu0 %v180
    %1896 = vmatpush.msra.mxu0 %v176
    %1897 = vmatpush.msra.mxu0 %v172
    %1898 = vmatpush.msra.mxu0 %v168
    %1899 = vmatpush.msra.mxu0 %v164
    %1900 = vmatpush.msra.mxu0 %v160
    %1901 = vmatpush.msra.mxu0 %v156
    %1902 = vmatpush.msra.mxu0 %v152
    %1903 = vmatpush.msra.mxu0 %v148
    %1904 = vmatpush.msra.mxu0 %v144
    %1905 = vmatpush.msra.mxu0 %v140
    %1906 = vmatpush.msra.mxu0 %v136
    %1907 = vmatpush.msra.mxu0 %v132
    %1908 = vmatpush.msra.mxu0 %v128
    %1909 = vmatpush.msra.mxu0 %v124
    %1910 = vmatmul.f32.gmra.mxu0 %v1773
    %v1911 = vpop.f32.mrf.mxu0
    %v1912 = vadd.f32 %v512, %v1911
    %1913 = vdwg.mxu0
    %1914 = vmatpush.msra.mxu0 %v248
    %1915 = vmatpush.msra.mxu0 %v244
    %1916 = vmatpush.msra.mxu0 %v240
    %1917 = vmatpush.msra.mxu0 %v236
    %1918 = vmatpush.msra.mxu0 %v232
    %1919 = vmatpush.msra.mxu0 %v228
    %1920 = vmatpush.msra.mxu0 %v224
    %1921 = vmatpush.msra.mxu0 %v220
    %1922 = vmatpush.msra.mxu0 %v216
    %1923 = vmatpush.msra.mxu0 %v212
    %1924 = vmatpush.msra.mxu0 %v208
    %1925 = vmatpush.msra.mxu0 %v204
    %1926 = vmatpush.msra.mxu0 %v200
    %1927 = vmatpush.msra.mxu0 %v196
    %1928 = vmatpush.msra.mxu0 %v192
    %1929 = vmatpush.msra.mxu0 %v188
    %1930 = vmatmul.f32.gmra.mxu0 %v1626
    %v1931 = vpop.f32.mrf.mxu0
    %v1932 = vadd.f32 %v1912, %v1931
    %1933 = vdwg.mxu0
    %v1934 = vxor.u32 %v1812, 2147483648
    %v1935 = vxor.u32 %v1852, 2147483648
    %v1936 = vxor.u32 %v1892, 2147483648
    %v1937 = vmul.f32 %v1934, 1.442695
    %v1938 = vpow.pop %v1937
    %v1939 = vmul.f32 %v1935, 1.442695
    %v1940 = vpow.pop %v1939
    %v1941 = vmul.f32 %v1936, 1.442695
    %v1942 = vpow.pop %v1941
    %v1943 = vadd.f32 %v1938, 1.0
    %v1944 = vadd.f32 %v1940, 1.0
    %v1945 = vadd.f32 %v1942, 1.0
    %v1946 = vrcp.pop %v1943
    %v1947 = vmul.f32 %v1943, %v1946
    %v1948 = vsub.f32 1.0, %v1947
    %v1949 = vmul.f32 %v1946, %v1948
    %v1950 = vadd.f32 %v1946, %v1949
    %vm1951 = vweird.f32 %v1943
    %vm1952 = vweird.f32 %v1946
    %vm1953 = vmor %vm1951, %vm1952
    %v1954 = vsel %vm1953, %v1946, %v1950
    %v1955 = vand.u32 2147483647, %v1943
    %vm1956 = vcmp.eq.f32.partialorder %v1955, 8.507059e+37
    %v1957 = vand.u32 %v1943, 2147483648
    %v1958 = vor.u32 1.1754944e-38, %v1957
    %v1959 = vsel %vm1956, %v1958, %v1954
    %v1960 = vmul.f32 1.0, %v1959
    %v1961 = vrcp.pop %v1944
    %v1962 = vmul.f32 %v1944, %v1961
    %v1963 = vsub.f32 1.0, %v1962
    %v1964 = vmul.f32 %v1961, %v1963
    %v1965 = vadd.f32 %v1961, %v1964
    %vm1966 = vweird.f32 %v1944
    %vm1967 = vweird.f32 %v1961
    %vm1968 = vmor %vm1966, %vm1967
    %v1969 = vsel %vm1968, %v1961, %v1965
    %v1970 = vand.u32 2147483647, %v1944
    %vm1971 = vcmp.eq.f32.partialorder %v1970, 8.507059e+37
    %v1972 = vand.u32 %v1944, 2147483648
    %v1973 = vor.u32 1.1754944e-38, %v1972
    %v1974 = vsel %vm1971, %v1973, %v1969
    %v1975 = vmul.f32 1.0, %v1974
    %v1976 = vrcp.pop %v1945
    %v1977 = vmul.f32 %v1945, %v1976
    %v1978 = vsub.f32 1.0, %v1977
    %v1979 = vmul.f32 %v1976, %v1978
    %v1980 = vadd.f32 %v1976, %v1979
    %vm1981 = vweird.f32 %v1945
    %vm1982 = vweird.f32 %v1976
    %vm1983 = vmor %vm1981, %vm1982
    %v1984 = vsel %vm1983, %v1976, %v1980
    %v1985 = vand.u32 2147483647, %v1945
    %vm1986 = vcmp.eq.f32.partialorder %v1985, 8.507059e+37
    %v1987 = vand.u32 %v1945, 2147483648
    %v1988 = vor.u32 1.1754944e-38, %v1987
    %v1989 = vsel %vm1986, %v1988, %v1984
    %v1990 = vmul.f32 1.0, %v1989
    %v1991 = vtanh.pop %v1932
    %v1992 = vmul.f32 %v1975, %v1624
    %v1993 = vmul.f32 %v1960, %v1991
    %v1994 = vadd.f32 %v1992, %v1993
    %v1995 = vtanh.pop %v1994
    %v1996 = vmul.f32 %v1990, %v1995
    %1997 = vmatpush.msra.mxu0 %v117
    %1998 = vmatpush.msra.mxu0 %v113
    %1999 = vmatpush.msra.mxu0 %v109
    %2000 = vmatpush.msra.mxu0 %v105
    %2001 = vmatpush.msra.mxu0 %v101
    %2002 = vmatpush.msra.mxu0 %v97
    %2003 = vmatpush.msra.mxu0 %v93
    %2004 = vmatpush.msra.mxu0 %v89
    %2005 = vmatpush.msra.mxu0 %v85
    %2006 = vmatpush.msra.mxu0 %v81
    %2007 = vmatpush.msra.mxu0 %v77
    %2008 = vmatpush.msra.mxu0 %v73
    %2009 = vmatpush.msra.mxu0 %v69
    %2010 = vmatpush.msra.mxu0 %v65
    %2011 = vmatpush.msra.mxu0 %v61
    %2012 = vmatpush.msra.mxu0 %v57
    %2013 = vmatmul.f32.gmra.mxu0 %v1773
    %v2014 = vpop.f32.mrf.mxu0
    %v2015 = vadd.f32 0.0, %v2014
    %2016 = vdwg.mxu0
    %2017 = vmatpush.msra.mxu0 %v118
    %2018 = vmatpush.msra.mxu0 %v114
    %2019 = vmatpush.msra.mxu0 %v110
    %2020 = vmatpush.msra.mxu0 %v106
    %2021 = vmatpush.msra.mxu0 %v102
    %2022 = vmatpush.msra.mxu0 %v98
    %2023 = vmatpush.msra.mxu0 %v94
    %2024 = vmatpush.msra.mxu0 %v90
    %2025 = vmatpush.msra.mxu0 %v86
    %2026 = vmatpush.msra.mxu0 %v82
    %2027 = vmatpush.msra.mxu0 %v78
    %2028 = vmatpush.msra.mxu0 %v74
    %2029 = vmatpush.msra.mxu0 %v70
    %2030 = vmatpush.msra.mxu0 %v66
    %2031 = vmatpush.msra.mxu0 %v62
    %2032 = vmatpush.msra.mxu0 %v58
    %2033 = vmatmul.f32.gmra.mxu0 %v1773
    %v2034 = vpop.f32.mrf.mxu0
    %v2035 = vadd.f32 0.0, %v2034
    %2036 = vdwg.mxu0
    %2037 = vmatpush.msra.mxu0 %v119
    %2038 = vmatpush.msra.mxu0 %v115
    %2039 = vmatpush.msra.mxu0 %v111
    %2040 = vmatpush.msra.mxu0 %v107
    %2041 = vmatpush.msra.mxu0 %v103
    %2042 = vmatpush.msra.mxu0 %v99
    %2043 = vmatpush.msra.mxu0 %v95
    %2044 = vmatpush.msra.mxu0 %v91
    %2045 = vmatpush.msra.mxu0 %v87
    %2046 = vmatpush.msra.mxu0 %v83
    %2047 = vmatpush.msra.mxu0 %v79
    %2048 = vmatpush.msra.mxu0 %v75
    %2049 = vmatpush.msra.mxu0 %v71
    %2050 = vmatpush.msra.mxu0 %v67
    %2051 = vmatpush.msra.mxu0 %v63
    %2052 = vmatpush.msra.mxu0 %v59
    %2053 = vmatmul.f32.gmra.mxu0 %v1773
    %v2054 = vpop.f32.mrf.mxu0
    %v2055 = vadd.f32 0.0, %v2054
    %2056 = vdwg.mxu0
    %2057 = vmatpush.msra.mxu0 %v120
    %2058 = vmatpush.msra.mxu0 %v116
    %2059 = vmatpush.msra.mxu0 %v112
    %2060 = vmatpush.msra.mxu0 %v108
    %2061 = vmatpush.msra.mxu0 %v104
    %2062 = vmatpush.msra.mxu0 %v100
    %2063 = vmatpush.msra.mxu0 %v96
    %2064 = vmatpush.msra.mxu0 %v92
    %2065 = vmatpush.msra.mxu0 %v88
    %2066 = vmatpush.msra.mxu0 %v84
    %2067 = vmatpush.msra.mxu0 %v80
    %2068 = vmatpush.msra.mxu0 %v76
    %2069 = vmatpush.msra.mxu0 %v72
    %2070 = vmatpush.msra.mxu0 %v68
    %2071 = vmatpush.msra.mxu0 %v64
    %2072 = vmatpush.msra.mxu0 %v60
    %2073 = vmatmul.f32.gmra.mxu0 %v1773
    %v2074 = vpop.f32.mrf.mxu0
    %v2075 = vadd.f32 0.0, %v2074
    %2076 = vdwg.mxu0
    %v2077 = vadd.f32 %v374, %v2015
    %v2078 = vadd.f32 %v415, %v2035
    %v2079 = vadd.f32 %v456, %v2055
    %v2080 = vadd.f32 %v497, %v2075
    %v2081 = vxor.u32 %v2077, 2147483648
    %v2082 = vxor.u32 %v2078, 2147483648
    %v2083 = vxor.u32 %v2079, 2147483648
    %v2084 = vmul.f32 %v2081, 1.442695
    %v2085 = vpow.pop %v2084
    %v2086 = vmul.f32 %v2082, 1.442695
    %v2087 = vpow.pop %v2086
    %v2088 = vmul.f32 %v2083, 1.442695
    %v2089 = vpow.pop %v2088
    %v2090 = vadd.f32 %v2085, 1.0
    %v2091 = vadd.f32 %v2087, 1.0
    %v2092 = vadd.f32 %v2089, 1.0
    %v2093 = vrcp.pop %v2090
    %v2094 = vmul.f32 %v2090, %v2093
    %v2095 = vsub.f32 1.0, %v2094
    %v2096 = vmul.f32 %v2093, %v2095
    %v2097 = vadd.f32 %v2093, %v2096
    %vm2098 = vweird.f32 %v2090
    %vm2099 = vweird.f32 %v2093
    %vm2100 = vmor %vm2098, %vm2099
    %v2101 = vsel %vm2100, %v2093, %v2097
    %v2102 = vand.u32 2147483647, %v2090
    %vm2103 = vcmp.eq.f32.partialorder %v2102, 8.507059e+37
    %v2104 = vand.u32 %v2090, 2147483648
    %v2105 = vor.u32 1.1754944e-38, %v2104
    %v2106 = vsel %vm2103, %v2105, %v2101
    %v2107 = vmul.f32 1.0, %v2106
    %v2108 = vrcp.pop %v2091
    %v2109 = vmul.f32 %v2091, %v2108
    %v2110 = vsub.f32 1.0, %v2109
    %v2111 = vmul.f32 %v2108, %v2110
    %v2112 = vadd.f32 %v2108, %v2111
    %vm2113 = vweird.f32 %v2091
    %vm2114 = vweird.f32 %v2108
    %vm2115 = vmor %vm2113, %vm2114
    %v2116 = vsel %vm2115, %v2108, %v2112
    %v2117 = vand.u32 2147483647, %v2091
    %vm2118 = vcmp.eq.f32.partialorder %v2117, 8.507059e+37
    %v2119 = vand.u32 %v2091, 2147483648
    %v2120 = vor.u32 1.1754944e-38, %v2119
    %v2121 = vsel %vm2118, %v2120, %v2116
    %v2122 = vmul.f32 1.0, %v2121
    %v2123 = vrcp.pop %v2092
    %v2124 = vmul.f32 %v2092, %v2123
    %v2125 = vsub.f32 1.0, %v2124
    %v2126 = vmul.f32 %v2123, %v2125
    %v2127 = vadd.f32 %v2123, %v2126
    %vm2128 = vweird.f32 %v2092
    %vm2129 = vweird.f32 %v2123
    %vm2130 = vmor %vm2128, %vm2129
    %v2131 = vsel %vm2130, %v2123, %v2127
    %v2132 = vand.u32 2147483647, %v2092
    %vm2133 = vcmp.eq.f32.partialorder %v2132, 8.507059e+37
    %v2134 = vand.u32 %v2092, 2147483648
    %v2135 = vor.u32 1.1754944e-38, %v2134
    %v2136 = vsel %vm2133, %v2135, %v2131
    %v2137 = vmul.f32 1.0, %v2136
    %v2138 = vtanh.pop %v2080
    %v2139 = vmul.f32 %v2122, %v1771
    %v2140 = vmul.f32 %v2107, %v2138
    %v2141 = vadd.f32 %v2139, %v2140
    %v2142 = vtanh.pop %v2141
    %v2143 = vmul.f32 %v2137, %v2142
    %2144 = vmatpush.msra.mxu0 %v181
    %2145 = vmatpush.msra.mxu0 %v177
    %2146 = vmatpush.msra.mxu0 %v173
    %2147 = vmatpush.msra.mxu0 %v169
    %2148 = vmatpush.msra.mxu0 %v165
    %2149 = vmatpush.msra.mxu0 %v161
    %2150 = vmatpush.msra.mxu0 %v157
    %2151 = vmatpush.msra.mxu0 %v153
    %2152 = vmatpush.msra.mxu0 %v149
    %2153 = vmatpush.msra.mxu0 %v145
    %2154 = vmatpush.msra.mxu0 %v141
    %2155 = vmatpush.msra.mxu0 %v137
    %2156 = vmatpush.msra.mxu0 %v133
    %2157 = vmatpush.msra.mxu0 %v129
    %2158 = vmatpush.msra.mxu0 %v125
    %2159 = vmatpush.msra.mxu0 %v121
    %2160 = vmatmul.f32.gmra.mxu0 %v2143
    %v2161 = vpop.f32.mrf.mxu0
    %v2162 = vadd.f32 %v509, %v2161
    %2163 = vdwg.mxu0
    %2164 = vmatpush.msra.mxu0 %v245
    %2165 = vmatpush.msra.mxu0 %v241
    %2166 = vmatpush.msra.mxu0 %v237
    %2167 = vmatpush.msra.mxu0 %v233
    %2168 = vmatpush.msra.mxu0 %v229
    %2169 = vmatpush.msra.mxu0 %v225
    %2170 = vmatpush.msra.mxu0 %v221
    %2171 = vmatpush.msra.mxu0 %v217
    %2172 = vmatpush.msra.mxu0 %v213
    %2173 = vmatpush.msra.mxu0 %v209
    %2174 = vmatpush.msra.mxu0 %v205
    %2175 = vmatpush.msra.mxu0 %v201
    %2176 = vmatpush.msra.mxu0 %v197
    %2177 = vmatpush.msra.mxu0 %v193
    %2178 = vmatpush.msra.mxu0 %v189
    %2179 = vmatpush.msra.mxu0 %v185
    %2180 = vmatmul.f32.gmra.mxu0 %v1996
    %v2181 = vpop.f32.mrf.mxu0
    %v2182 = vadd.f32 %v2162, %v2181
    %2183 = vdwg.mxu0
    %2184 = vmatpush.msra.mxu0 %v182
    %2185 = vmatpush.msra.mxu0 %v178
    %2186 = vmatpush.msra.mxu0 %v174
    %2187 = vmatpush.msra.mxu0 %v170
    %2188 = vmatpush.msra.mxu0 %v166
    %2189 = vmatpush.msra.mxu0 %v162
    %2190 = vmatpush.msra.mxu0 %v158
    %2191 = vmatpush.msra.mxu0 %v154
    %2192 = vmatpush.msra.mxu0 %v150
    %2193 = vmatpush.msra.mxu0 %v146
    %2194 = vmatpush.msra.mxu0 %v142
    %2195 = vmatpush.msra.mxu0 %v138
    %2196 = vmatpush.msra.mxu0 %v134
    %2197 = vmatpush.msra.mxu0 %v130
    %2198 = vmatpush.msra.mxu0 %v126
    %2199 = vmatpush.msra.mxu0 %v122
    %2200 = vmatmul.f32.gmra.mxu0 %v2143
    %v2201 = vpop.f32.mrf.mxu0
    %v2202 = vadd.f32 %v510, %v2201
    %2203 = vdwg.mxu0
    %2204 = vmatpush.msra.mxu0 %v246
    %2205 = vmatpush.msra.mxu0 %v242
    %2206 = vmatpush.msra.mxu0 %v238
    %2207 = vmatpush.msra.mxu0 %v234
    %2208 = vmatpush.msra.mxu0 %v230
    %2209 = vmatpush.msra.mxu0 %v226
    %2210 = vmatpush.msra.mxu0 %v222
    %2211 = vmatpush.msra.mxu0 %v218
    %2212 = vmatpush.msra.mxu0 %v214
    %2213 = vmatpush.msra.mxu0 %v210
    %2214 = vmatpush.msra.mxu0 %v206
    %2215 = vmatpush.msra.mxu0 %v202
    %2216 = vmatpush.msra.mxu0 %v198
    %2217 = vmatpush.msra.mxu0 %v194
    %2218 = vmatpush.msra.mxu0 %v190
    %2219 = vmatpush.msra.mxu0 %v186
    %2220 = vmatmul.f32.gmra.mxu0 %v1996
    %v2221 = vpop.f32.mrf.mxu0
    %v2222 = vadd.f32 %v2202, %v2221
    %2223 = vdwg.mxu0
    %2224 = vmatpush.msra.mxu0 %v183
    %2225 = vmatpush.msra.mxu0 %v179
    %2226 = vmatpush.msra.mxu0 %v175
    %2227 = vmatpush.msra.mxu0 %v171
    %2228 = vmatpush.msra.mxu0 %v167
    %2229 = vmatpush.msra.mxu0 %v163
    %2230 = vmatpush.msra.mxu0 %v159
    %2231 = vmatpush.msra.mxu0 %v155
    %2232 = vmatpush.msra.mxu0 %v151
    %2233 = vmatpush.msra.mxu0 %v147
    %2234 = vmatpush.msra.mxu0 %v143
    %2235 = vmatpush.msra.mxu0 %v139
    %2236 = vmatpush.msra.mxu0 %v135
    %2237 = vmatpush.msra.mxu0 %v131
    %2238 = vmatpush.msra.mxu0 %v127
    %2239 = vmatpush.msra.mxu0 %v123
    %2240 = vmatmul.f32.gmra.mxu0 %v2143
    %v2241 = vpop.f32.mrf.mxu0
    %v2242 = vadd.f32 %v511, %v2241
    %2243 = vdwg.mxu0
    %2244 = vmatpush.msra.mxu0 %v247
    %2245 = vmatpush.msra.mxu0 %v243
    %2246 = vmatpush.msra.mxu0 %v239
    %2247 = vmatpush.msra.mxu0 %v235
    %2248 = vmatpush.msra.mxu0 %v231
    %2249 = vmatpush.msra.mxu0 %v227
    %2250 = vmatpush.msra.mxu0 %v223
    %2251 = vmatpush.msra.mxu0 %v219
    %2252 = vmatpush.msra.mxu0 %v215
    %2253 = vmatpush.msra.mxu0 %v211
    %2254 = vmatpush.msra.mxu0 %v207
    %2255 = vmatpush.msra.mxu0 %v203
    %2256 = vmatpush.msra.mxu0 %v199
    %2257 = vmatpush.msra.mxu0 %v195
    %2258 = vmatpush.msra.mxu0 %v191
    %2259 = vmatpush.msra.mxu0 %v187
    %2260 = vmatmul.f32.gmra.mxu0 %v1996
    %v2261 = vpop.f32.mrf.mxu0
    %v2262 = vadd.f32 %v2242, %v2261
    %2263 = vdwg.mxu0
    %2264 = vmatpush.msra.mxu0 %v184
    %2265 = vmatpush.msra.mxu0 %v180
    %2266 = vmatpush.msra.mxu0 %v176
    %2267 = vmatpush.msra.mxu0 %v172
    %2268 = vmatpush.msra.mxu0 %v168
    %2269 = vmatpush.msra.mxu0 %v164
    %2270 = vmatpush.msra.mxu0 %v160
    %2271 = vmatpush.msra.mxu0 %v156
    %2272 = vmatpush.msra.mxu0 %v152
    %2273 = vmatpush.msra.mxu0 %v148
    %2274 = vmatpush.msra.mxu0 %v144
    %2275 = vmatpush.msra.mxu0 %v140
    %2276 = vmatpush.msra.mxu0 %v136
    %2277 = vmatpush.msra.mxu0 %v132
    %2278 = vmatpush.msra.mxu0 %v128
    %2279 = vmatpush.msra.mxu0 %v124
    %2280 = vmatmul.f32.gmra.mxu0 %v2143
    %v2281 = vpop.f32.mrf.mxu0
    %v2282 = vadd.f32 %v512, %v2281
    %2283 = vdwg.mxu0
    %2284 = vmatpush.msra.mxu0 %v248
    %2285 = vmatpush.msra.mxu0 %v244
    %2286 = vmatpush.msra.mxu0 %v240
    %2287 = vmatpush.msra.mxu0 %v236
    %2288 = vmatpush.msra.mxu0 %v232
    %2289 = vmatpush.msra.mxu0 %v228
    %2290 = vmatpush.msra.mxu0 %v224
    %2291 = vmatpush.msra.mxu0 %v220
    %2292 = vmatpush.msra.mxu0 %v216
    %2293 = vmatpush.msra.mxu0 %v212
    %2294 = vmatpush.msra.mxu0 %v208
    %2295 = vmatpush.msra.mxu0 %v204
    %2296 = vmatpush.msra.mxu0 %v200
    %2297 = vmatpush.msra.mxu0 %v196
    %2298 = vmatpush.msra.mxu0 %v192
    %2299 = vmatpush.msra.mxu0 %v188
    %2300 = vmatmul.f32.gmra.mxu0 %v1996
    %v2301 = vpop.f32.mrf.mxu0
    %v2302 = vadd.f32 %v2282, %v2301
    %2303 = vdwg.mxu0
    %v2304 = vxor.u32 %v2182, 2147483648
    %v2305 = vxor.u32 %v2222, 2147483648
    %v2306 = vxor.u32 %v2262, 2147483648
    %v2307 = vmul.f32 %v2304, 1.442695
    %v2308 = vpow.pop %v2307
    %v2309 = vmul.f32 %v2305, 1.442695
    %v2310 = vpow.pop %v2309
    %v2311 = vmul.f32 %v2306, 1.442695
    %v2312 = vpow.pop %v2311
    %v2313 = vadd.f32 %v2308, 1.0
    %v2314 = vadd.f32 %v2310, 1.0
    %v2315 = vadd.f32 %v2312, 1.0
    %v2316 = vrcp.pop %v2313
    %v2317 = vmul.f32 %v2313, %v2316
    %v2318 = vsub.f32 1.0, %v2317
    %v2319 = vmul.f32 %v2316, %v2318
    %v2320 = vadd.f32 %v2316, %v2319
    %vm2321 = vweird.f32 %v2313
    %vm2322 = vweird.f32 %v2316
    %vm2323 = vmor %vm2321, %vm2322
    %v2324 = vsel %vm2323, %v2316, %v2320
    %v2325 = vand.u32 2147483647, %v2313
    %vm2326 = vcmp.eq.f32.partialorder %v2325, 8.507059e+37
    %v2327 = vand.u32 %v2313, 2147483648
    %v2328 = vor.u32 1.1754944e-38, %v2327
    %v2329 = vsel %vm2326, %v2328, %v2324
    %v2330 = vmul.f32 1.0, %v2329
    %v2331 = vrcp.pop %v2314
    %v2332 = vmul.f32 %v2314, %v2331
    %v2333 = vsub.f32 1.0, %v2332
    %v2334 = vmul.f32 %v2331, %v2333
    %v2335 = vadd.f32 %v2331, %v2334
    %vm2336 = vweird.f32 %v2314
    %vm2337 = vweird.f32 %v2331
    %vm2338 = vmor %vm2336, %vm2337
    %v2339 = vsel %vm2338, %v2331, %v2335
    %v2340 = vand.u32 2147483647, %v2314
    %vm2341 = vcmp.eq.f32.partialorder %v2340, 8.507059e+37
    %v2342 = vand.u32 %v2314, 2147483648
    %v2343 = vor.u32 1.1754944e-38, %v2342
    %v2344 = vsel %vm2341, %v2343, %v2339
    %v2345 = vmul.f32 1.0, %v2344
    %v2346 = vrcp.pop %v2315
    %v2347 = vmul.f32 %v2315, %v2346
    %v2348 = vsub.f32 1.0, %v2347
    %v2349 = vmul.f32 %v2346, %v2348
    %v2350 = vadd.f32 %v2346, %v2349
    %vm2351 = vweird.f32 %v2315
    %vm2352 = vweird.f32 %v2346
    %vm2353 = vmor %vm2351, %vm2352
    %v2354 = vsel %vm2353, %v2346, %v2350
    %v2355 = vand.u32 2147483647, %v2315
    %vm2356 = vcmp.eq.f32.partialorder %v2355, 8.507059e+37
    %v2357 = vand.u32 %v2315, 2147483648
    %v2358 = vor.u32 1.1754944e-38, %v2357
    %v2359 = vsel %vm2356, %v2358, %v2354
    %v2360 = vmul.f32 1.0, %v2359
    %v2361 = vtanh.pop %v2302
    %v2362 = vmul.f32 %v2345, %v1994
    %v2363 = vmul.f32 %v2330, %v2361
    %v2364 = vadd.f32 %v2362, %v2363
    %v2365 = vtanh.pop %v2364
    %v2366 = vmul.f32 %v2360, %v2365
    %2367 = vmatpush.msra.mxu0 %v117
    %2368 = vmatpush.msra.mxu0 %v113
    %2369 = vmatpush.msra.mxu0 %v109
    %2370 = vmatpush.msra.mxu0 %v105
    %2371 = vmatpush.msra.mxu0 %v101
    %2372 = vmatpush.msra.mxu0 %v97
    %2373 = vmatpush.msra.mxu0 %v93
    %2374 = vmatpush.msra.mxu0 %v89
    %2375 = vmatpush.msra.mxu0 %v85
    %2376 = vmatpush.msra.mxu0 %v81
    %2377 = vmatpush.msra.mxu0 %v77
    %2378 = vmatpush.msra.mxu0 %v73
    %2379 = vmatpush.msra.mxu0 %v69
    %2380 = vmatpush.msra.mxu0 %v65
    %2381 = vmatpush.msra.mxu0 %v61
    %2382 = vmatpush.msra.mxu0 %v57
    %2383 = vmatmul.f32.gmra.mxu0 %v2143
    %v2384 = vpop.f32.mrf.mxu0
    %v2385 = vadd.f32 0.0, %v2384
    %2386 = vdwg.mxu0
    %2387 = vmatpush.msra.mxu0 %v118
    %2388 = vmatpush.msra.mxu0 %v114
    %2389 = vmatpush.msra.mxu0 %v110
    %2390 = vmatpush.msra.mxu0 %v106
    %2391 = vmatpush.msra.mxu0 %v102
    %2392 = vmatpush.msra.mxu0 %v98
    %2393 = vmatpush.msra.mxu0 %v94
    %2394 = vmatpush.msra.mxu0 %v90
    %2395 = vmatpush.msra.mxu0 %v86
    %2396 = vmatpush.msra.mxu0 %v82
    %2397 = vmatpush.msra.mxu0 %v78
    %2398 = vmatpush.msra.mxu0 %v74
    %2399 = vmatpush.msra.mxu0 %v70
    %2400 = vmatpush.msra.mxu0 %v66
    %2401 = vmatpush.msra.mxu0 %v62
    %2402 = vmatpush.msra.mxu0 %v58
    %2403 = vmatmul.f32.gmra.mxu0 %v2143
    %v2404 = vpop.f32.mrf.mxu0
    %v2405 = vadd.f32 0.0, %v2404
    %2406 = vdwg.mxu0
    %2407 = vmatpush.msra.mxu0 %v119
    %2408 = vmatpush.msra.mxu0 %v115
    %2409 = vmatpush.msra.mxu0 %v111
    %2410 = vmatpush.msra.mxu0 %v107
    %2411 = vmatpush.msra.mxu0 %v103
    %2412 = vmatpush.msra.mxu0 %v99
    %2413 = vmatpush.msra.mxu0 %v95
    %2414 = vmatpush.msra.mxu0 %v91
    %2415 = vmatpush.msra.mxu0 %v87
    %2416 = vmatpush.msra.mxu0 %v83
    %2417 = vmatpush.msra.mxu0 %v79
    %2418 = vmatpush.msra.mxu0 %v75
    %2419 = vmatpush.msra.mxu0 %v71
    %2420 = vmatpush.msra.mxu0 %v67
    %2421 = vmatpush.msra.mxu0 %v63
    %2422 = vmatpush.msra.mxu0 %v59
    %2423 = vmatmul.f32.gmra.mxu0 %v2143
    %v2424 = vpop.f32.mrf.mxu0
    %v2425 = vadd.f32 0.0, %v2424
    %2426 = vdwg.mxu0
    %2427 = vmatpush.msra.mxu0 %v120
    %2428 = vmatpush.msra.mxu0 %v116
    %2429 = vmatpush.msra.mxu0 %v112
    %2430 = vmatpush.msra.mxu0 %v108
    %2431 = vmatpush.msra.mxu0 %v104
    %2432 = vmatpush.msra.mxu0 %v100
    %2433 = vmatpush.msra.mxu0 %v96
    %2434 = vmatpush.msra.mxu0 %v92
    %2435 = vmatpush.msra.mxu0 %v88
    %2436 = vmatpush.msra.mxu0 %v84
    %2437 = vmatpush.msra.mxu0 %v80
    %2438 = vmatpush.msra.mxu0 %v76
    %2439 = vmatpush.msra.mxu0 %v72
    %2440 = vmatpush.msra.mxu0 %v68
    %2441 = vmatpush.msra.mxu0 %v64
    %2442 = vmatpush.msra.mxu0 %v60
    %2443 = vmatmul.f32.gmra.mxu0 %v2143
    %v2444 = vpop.f32.mrf.mxu0
    %v2445 = vadd.f32 0.0, %v2444
    %2446 = vdwg.mxu0
    %v2447 = vadd.f32 %v377, %v2385
    %v2448 = vadd.f32 %v418, %v2405
    %v2449 = vadd.f32 %v459, %v2425
    %v2450 = vadd.f32 %v500, %v2445
    %v2451 = vxor.u32 %v2447, 2147483648
    %v2452 = vxor.u32 %v2448, 2147483648
    %v2453 = vxor.u32 %v2449, 2147483648
    %v2454 = vmul.f32 %v2451, 1.442695
    %v2455 = vpow.pop %v2454
    %v2456 = vmul.f32 %v2452, 1.442695
    %v2457 = vpow.pop %v2456
    %v2458 = vmul.f32 %v2453, 1.442695
    %v2459 = vpow.pop %v2458
    %v2460 = vadd.f32 %v2455, 1.0
    %v2461 = vadd.f32 %v2457, 1.0
    %v2462 = vadd.f32 %v2459, 1.0
    %v2463 = vrcp.pop %v2460
    %v2464 = vmul.f32 %v2460, %v2463
    %v2465 = vsub.f32 1.0, %v2464
    %v2466 = vmul.f32 %v2463, %v2465
    %v2467 = vadd.f32 %v2463, %v2466
    %vm2468 = vweird.f32 %v2460
    %vm2469 = vweird.f32 %v2463
    %vm2470 = vmor %vm2468, %vm2469
    %v2471 = vsel %vm2470, %v2463, %v2467
    %v2472 = vand.u32 2147483647, %v2460
    %vm2473 = vcmp.eq.f32.partialorder %v2472, 8.507059e+37
    %v2474 = vand.u32 %v2460, 2147483648
    %v2475 = vor.u32 1.1754944e-38, %v2474
    %v2476 = vsel %vm2473, %v2475, %v2471
    %v2477 = vmul.f32 1.0, %v2476
    %v2478 = vrcp.pop %v2461
    %v2479 = vmul.f32 %v2461, %v2478
    %v2480 = vsub.f32 1.0, %v2479
    %v2481 = vmul.f32 %v2478, %v2480
    %v2482 = vadd.f32 %v2478, %v2481
    %vm2483 = vweird.f32 %v2461
    %vm2484 = vweird.f32 %v2478
    %vm2485 = vmor %vm2483, %vm2484
    %v2486 = vsel %vm2485, %v2478, %v2482
    %v2487 = vand.u32 2147483647, %v2461
    %vm2488 = vcmp.eq.f32.partialorder %v2487, 8.507059e+37
    %v2489 = vand.u32 %v2461, 2147483648
    %v2490 = vor.u32 1.1754944e-38, %v2489
    %v2491 = vsel %vm2488, %v2490, %v2486
    %v2492 = vmul.f32 1.0, %v2491
    %v2493 = vrcp.pop %v2462
    %v2494 = vmul.f32 %v2462, %v2493
    %v2495 = vsub.f32 1.0, %v2494
    %v2496 = vmul.f32 %v2493, %v2495
    %v2497 = vadd.f32 %v2493, %v2496
    %vm2498 = vweird.f32 %v2462
    %vm2499 = vweird.f32 %v2493
    %vm2500 = vmor %vm2498, %vm2499
    %v2501 = vsel %vm2500, %v2493, %v2497
    %v2502 = vand.u32 2147483647, %v2462
    %vm2503 = vcmp.eq.f32.partialorder %v2502, 8.507059e+37
    %v2504 = vand.u32 %v2462, 2147483648
    %v2505 = vor.u32 1.1754944e-38, %v2504
    %v2506 = vsel %vm2503, %v2505, %v2501
    %v2507 = vmul.f32 1.0, %v2506
    %v2508 = vtanh.pop %v2450
    %v2509 = vmul.f32 %v2492, %v2141
    %v2510 = vmul.f32 %v2477, %v2508
    %v2511 = vadd.f32 %v2509, %v2510
    %v2512 = vtanh.pop %v2511
    %v2513 = vmul.f32 %v2507, %v2512
    %2514 = vmatpush.msra.mxu0 %v181
    %2515 = vmatpush.msra.mxu0 %v177
    %2516 = vmatpush.msra.mxu0 %v173
    %2517 = vmatpush.msra.mxu0 %v169
    %2518 = vmatpush.msra.mxu0 %v165
    %2519 = vmatpush.msra.mxu0 %v161
    %2520 = vmatpush.msra.mxu0 %v157
    %2521 = vmatpush.msra.mxu0 %v153
    %2522 = vmatpush.msra.mxu0 %v149
    %2523 = vmatpush.msra.mxu0 %v145
    %2524 = vmatpush.msra.mxu0 %v141
    %2525 = vmatpush.msra.mxu0 %v137
    %2526 = vmatpush.msra.mxu0 %v133
    %2527 = vmatpush.msra.mxu0 %v129
    %2528 = vmatpush.msra.mxu0 %v125
    %2529 = vmatpush.msra.mxu0 %v121
    %2530 = vmatmul.f32.gmra.mxu0 %v2513
    %v2531 = vpop.f32.mrf.mxu0
    %v2532 = vadd.f32 %v509, %v2531
    %2533 = vdwg.mxu0
    %2534 = vmatpush.msra.mxu0 %v245
    %2535 = vmatpush.msra.mxu0 %v241
    %2536 = vmatpush.msra.mxu0 %v237
    %2537 = vmatpush.msra.mxu0 %v233
    %2538 = vmatpush.msra.mxu0 %v229
    %2539 = vmatpush.msra.mxu0 %v225
    %2540 = vmatpush.msra.mxu0 %v221
    %2541 = vmatpush.msra.mxu0 %v217
    %2542 = vmatpush.msra.mxu0 %v213
    %2543 = vmatpush.msra.mxu0 %v209
    %2544 = vmatpush.msra.mxu0 %v205
    %2545 = vmatpush.msra.mxu0 %v201
    %2546 = vmatpush.msra.mxu0 %v197
    %2547 = vmatpush.msra.mxu0 %v193
    %2548 = vmatpush.msra.mxu0 %v189
    %2549 = vmatpush.msra.mxu0 %v185
    %2550 = vmatmul.f32.gmra.mxu0 %v2366
    %v2551 = vpop.f32.mrf.mxu0
    %v2552 = vadd.f32 %v2532, %v2551
    %2553 = vdwg.mxu0
    %2554 = vmatpush.msra.mxu0 %v182
    %2555 = vmatpush.msra.mxu0 %v178
    %2556 = vmatpush.msra.mxu0 %v174
    %2557 = vmatpush.msra.mxu0 %v170
    %2558 = vmatpush.msra.mxu0 %v166
    %2559 = vmatpush.msra.mxu0 %v162
    %2560 = vmatpush.msra.mxu0 %v158
    %2561 = vmatpush.msra.mxu0 %v154
    %2562 = vmatpush.msra.mxu0 %v150
    %2563 = vmatpush.msra.mxu0 %v146
    %2564 = vmatpush.msra.mxu0 %v142
    %2565 = vmatpush.msra.mxu0 %v138
    %2566 = vmatpush.msra.mxu0 %v134
    %2567 = vmatpush.msra.mxu0 %v130
    %2568 = vmatpush.msra.mxu0 %v126
    %2569 = vmatpush.msra.mxu0 %v122
    %2570 = vmatmul.f32.gmra.mxu0 %v2513
    %v2571 = vpop.f32.mrf.mxu0
    %v2572 = vadd.f32 %v510, %v2571
    %2573 = vdwg.mxu0
    %2574 = vmatpush.msra.mxu0 %v246
    %2575 = vmatpush.msra.mxu0 %v242
    %2576 = vmatpush.msra.mxu0 %v238
    %2577 = vmatpush.msra.mxu0 %v234
    %2578 = vmatpush.msra.mxu0 %v230
    %2579 = vmatpush.msra.mxu0 %v226
    %2580 = vmatpush.msra.mxu0 %v222
    %2581 = vmatpush.msra.mxu0 %v218
    %2582 = vmatpush.msra.mxu0 %v214
    %2583 = vmatpush.msra.mxu0 %v210
    %2584 = vmatpush.msra.mxu0 %v206
    %2585 = vmatpush.msra.mxu0 %v202
    %2586 = vmatpush.msra.mxu0 %v198
    %2587 = vmatpush.msra.mxu0 %v194
    %2588 = vmatpush.msra.mxu0 %v190
    %2589 = vmatpush.msra.mxu0 %v186
    %2590 = vmatmul.f32.gmra.mxu0 %v2366
    %v2591 = vpop.f32.mrf.mxu0
    %v2592 = vadd.f32 %v2572, %v2591
    %2593 = vdwg.mxu0
    %2594 = vmatpush.msra.mxu0 %v183
    %2595 = vmatpush.msra.mxu0 %v179
    %2596 = vmatpush.msra.mxu0 %v175
    %2597 = vmatpush.msra.mxu0 %v171
    %2598 = vmatpush.msra.mxu0 %v167
    %2599 = vmatpush.msra.mxu0 %v163
    %2600 = vmatpush.msra.mxu0 %v159
    %2601 = vmatpush.msra.mxu0 %v155
    %2602 = vmatpush.msra.mxu0 %v151
    %2603 = vmatpush.msra.mxu0 %v147
    %2604 = vmatpush.msra.mxu0 %v143
    %2605 = vmatpush.msra.mxu0 %v139
    %2606 = vmatpush.msra.mxu0 %v135
    %2607 = vmatpush.msra.mxu0 %v131
    %2608 = vmatpush.msra.mxu0 %v127
    %2609 = vmatpush.msra.mxu0 %v123
    %2610 = vmatmul.f32.gmra.mxu0 %v2513
    %v2611 = vpop.f32.mrf.mxu0
    %v2612 = vadd.f32 %v511, %v2611
    %2613 = vdwg.mxu0
    %2614 = vmatpush.msra.mxu0 %v247
    %2615 = vmatpush.msra.mxu0 %v243
    %2616 = vmatpush.msra.mxu0 %v239
    %2617 = vmatpush.msra.mxu0 %v235
    %2618 = vmatpush.msra.mxu0 %v231
    %2619 = vmatpush.msra.mxu0 %v227
    %2620 = vmatpush.msra.mxu0 %v223
    %2621 = vmatpush.msra.mxu0 %v219
    %2622 = vmatpush.msra.mxu0 %v215
    %2623 = vmatpush.msra.mxu0 %v211
    %2624 = vmatpush.msra.mxu0 %v207
    %2625 = vmatpush.msra.mxu0 %v203
    %2626 = vmatpush.msra.mxu0 %v199
    %2627 = vmatpush.msra.mxu0 %v195
    %2628 = vmatpush.msra.mxu0 %v191
    %2629 = vmatpush.msra.mxu0 %v187
    %2630 = vmatmul.f32.gmra.mxu0 %v2366
    %v2631 = vpop.f32.mrf.mxu0
    %v2632 = vadd.f32 %v2612, %v2631
    %2633 = vdwg.mxu0
    %2634 = vmatpush.msra.mxu0 %v184
    %2635 = vmatpush.msra.mxu0 %v180
    %2636 = vmatpush.msra.mxu0 %v176
    %2637 = vmatpush.msra.mxu0 %v172
    %2638 = vmatpush.msra.mxu0 %v168
    %2639 = vmatpush.msra.mxu0 %v164
    %2640 = vmatpush.msra.mxu0 %v160
    %2641 = vmatpush.msra.mxu0 %v156
    %2642 = vmatpush.msra.mxu0 %v152
    %2643 = vmatpush.msra.mxu0 %v148
    %2644 = vmatpush.msra.mxu0 %v144
    %2645 = vmatpush.msra.mxu0 %v140
    %2646 = vmatpush.msra.mxu0 %v136
    %2647 = vmatpush.msra.mxu0 %v132
    %2648 = vmatpush.msra.mxu0 %v128
    %2649 = vmatpush.msra.mxu0 %v124
    %2650 = vmatmul.f32.gmra.mxu0 %v2513
    %v2651 = vpop.f32.mrf.mxu0
    %v2652 = vadd.f32 %v512, %v2651
    %2653 = vdwg.mxu0
    %2654 = vmatpush.msra.mxu0 %v248
    %2655 = vmatpush.msra.mxu0 %v244
    %2656 = vmatpush.msra.mxu0 %v240
    %2657 = vmatpush.msra.mxu0 %v236
    %2658 = vmatpush.msra.mxu0 %v232
    %2659 = vmatpush.msra.mxu0 %v228
    %2660 = vmatpush.msra.mxu0 %v224
    %2661 = vmatpush.msra.mxu0 %v220
    %2662 = vmatpush.msra.mxu0 %v216
    %2663 = vmatpush.msra.mxu0 %v212
    %2664 = vmatpush.msra.mxu0 %v208
    %2665 = vmatpush.msra.mxu0 %v204
    %2666 = vmatpush.msra.mxu0 %v200
    %2667 = vmatpush.msra.mxu0 %v196
    %2668 = vmatpush.msra.mxu0 %v192
    %2669 = vmatpush.msra.mxu0 %v188
    %2670 = vmatmul.f32.gmra.mxu0 %v2366
    %v2671 = vpop.f32.mrf.mxu0
    %v2672 = vadd.f32 %v2652, %v2671
    %2673 = vdwg.mxu0
    %v2674 = vxor.u32 %v2552, 2147483648
    %v2675 = vxor.u32 %v2592, 2147483648
    %v2676 = vxor.u32 %v2632, 2147483648
    %v2677 = vmul.f32 %v2674, 1.442695
    %v2678 = vpow.pop %v2677
    %v2679 = vmul.f32 %v2675, 1.442695
    %v2680 = vpow.pop %v2679
    %v2681 = vmul.f32 %v2676, 1.442695
    %v2682 = vpow.pop %v2681
    %v2683 = vadd.f32 %v2678, 1.0
    %v2684 = vadd.f32 %v2680, 1.0
    %v2685 = vadd.f32 %v2682, 1.0
    %v2686 = vrcp.pop %v2683
    %v2687 = vmul.f32 %v2683, %v2686
    %v2688 = vsub.f32 1.0, %v2687
    %v2689 = vmul.f32 %v2686, %v2688
    %v2690 = vadd.f32 %v2686, %v2689
    %vm2691 = vweird.f32 %v2683
    %vm2692 = vweird.f32 %v2686
    %vm2693 = vmor %vm2691, %vm2692
    %v2694 = vsel %vm2693, %v2686, %v2690
    %v2695 = vand.u32 2147483647, %v2683
    %vm2696 = vcmp.eq.f32.partialorder %v2695, 8.507059e+37
    %v2697 = vand.u32 %v2683, 2147483648
    %v2698 = vor.u32 1.1754944e-38, %v2697
    %v2699 = vsel %vm2696, %v2698, %v2694
    %v2700 = vmul.f32 1.0, %v2699
    %v2701 = vrcp.pop %v2684
    %v2702 = vmul.f32 %v2684, %v2701
    %v2703 = vsub.f32 1.0, %v2702
    %v2704 = vmul.f32 %v2701, %v2703
    %v2705 = vadd.f32 %v2701, %v2704
    %vm2706 = vweird.f32 %v2684
    %vm2707 = vweird.f32 %v2701
    %vm2708 = vmor %vm2706, %vm2707
    %v2709 = vsel %vm2708, %v2701, %v2705
    %v2710 = vand.u32 2147483647, %v2684
    %vm2711 = vcmp.eq.f32.partialorder %v2710, 8.507059e+37
    %v2712 = vand.u32 %v2684, 2147483648
    %v2713 = vor.u32 1.1754944e-38, %v2712
    %v2714 = vsel %vm2711, %v2713, %v2709
    %v2715 = vmul.f32 1.0, %v2714
    %v2716 = vrcp.pop %v2685
    %v2717 = vmul.f32 %v2685, %v2716
    %v2718 = vsub.f32 1.0, %v2717
    %v2719 = vmul.f32 %v2716, %v2718
    %v2720 = vadd.f32 %v2716, %v2719
    %vm2721 = vweird.f32 %v2685
    %vm2722 = vweird.f32 %v2716
    %vm2723 = vmor %vm2721, %vm2722
    %v2724 = vsel %vm2723, %v2716, %v2720
    %v2725 = vand.u32 2147483647, %v2685
    %vm2726 = vcmp.eq.f32.partialorder %v2725, 8.507059e+37
    %v2727 = vand.u32 %v2685, 2147483648
    %v2728 = vor.u32 1.1754944e-38, %v2727
    %v2729 = vsel %vm2726, %v2728, %v2724
    %v2730 = vmul.f32 1.0, %v2729
    %v2731 = vtanh.pop %v2672
    %v2732 = vmul.f32 %v2715, %v2364
    %v2733 = vmul.f32 %v2700, %v2731
    %v2734 = vadd.f32 %v2732, %v2733
    %v2735 = vtanh.pop %v2734
    %v2736 = vmul.f32 %v2730, %v2735
    %2737 = vmatpush.msra.mxu0 %v117
    %2738 = vmatpush.msra.mxu0 %v113
    %2739 = vmatpush.msra.mxu0 %v109
    %2740 = vmatpush.msra.mxu0 %v105
    %2741 = vmatpush.msra.mxu0 %v101
    %2742 = vmatpush.msra.mxu0 %v97
    %2743 = vmatpush.msra.mxu0 %v93
    %2744 = vmatpush.msra.mxu0 %v89
    %2745 = vmatpush.msra.mxu0 %v85
    %2746 = vmatpush.msra.mxu0 %v81
    %2747 = vmatpush.msra.mxu0 %v77
    %2748 = vmatpush.msra.mxu0 %v73
    %2749 = vmatpush.msra.mxu0 %v69
    %2750 = vmatpush.msra.mxu0 %v65
    %2751 = vmatpush.msra.mxu0 %v61
    %2752 = vmatpush.msra.mxu0 %v57
    %2753 = vmatmul.f32.gmra.mxu0 %v2513
    %v2754 = vpop.f32.mrf.mxu0
    %v2755 = vadd.f32 0.0, %v2754
    %2756 = vdwg.mxu0
    %2757 = vmatpush.msra.mxu0 %v118
    %2758 = vmatpush.msra.mxu0 %v114
    %2759 = vmatpush.msra.mxu0 %v110
    %2760 = vmatpush.msra.mxu0 %v106
    %2761 = vmatpush.msra.mxu0 %v102
    %2762 = vmatpush.msra.mxu0 %v98
    %2763 = vmatpush.msra.mxu0 %v94
    %2764 = vmatpush.msra.mxu0 %v90
    %2765 = vmatpush.msra.mxu0 %v86
    %2766 = vmatpush.msra.mxu0 %v82
    %2767 = vmatpush.msra.mxu0 %v78
    %2768 = vmatpush.msra.mxu0 %v74
    %2769 = vmatpush.msra.mxu0 %v70
    %2770 = vmatpush.msra.mxu0 %v66
    %2771 = vmatpush.msra.mxu0 %v62
    %2772 = vmatpush.msra.mxu0 %v58
    %2773 = vmatmul.f32.gmra.mxu0 %v2513
    %v2774 = vpop.f32.mrf.mxu0
    %v2775 = vadd.f32 0.0, %v2774
    %2776 = vdwg.mxu0
    %2777 = vmatpush.msra.mxu0 %v119
    %2778 = vmatpush.msra.mxu0 %v115
    %2779 = vmatpush.msra.mxu0 %v111
    %2780 = vmatpush.msra.mxu0 %v107
    %2781 = vmatpush.msra.mxu0 %v103
    %2782 = vmatpush.msra.mxu0 %v99
    %2783 = vmatpush.msra.mxu0 %v95
    %2784 = vmatpush.msra.mxu0 %v91
    %2785 = vmatpush.msra.mxu0 %v87
    %2786 = vmatpush.msra.mxu0 %v83
    %2787 = vmatpush.msra.mxu0 %v79
    %2788 = vmatpush.msra.mxu0 %v75
    %2789 = vmatpush.msra.mxu0 %v71
    %2790 = vmatpush.msra.mxu0 %v67
    %2791 = vmatpush.msra.mxu0 %v63
    %2792 = vmatpush.msra.mxu0 %v59
    %2793 = vmatmul.f32.gmra.mxu0 %v2513
    %v2794 = vpop.f32.mrf.mxu0
    %v2795 = vadd.f32 0.0, %v2794
    %2796 = vdwg.mxu0
    %2797 = vmatpush.msra.mxu0 %v120
    %2798 = vmatpush.msra.mxu0 %v116
    %2799 = vmatpush.msra.mxu0 %v112
    %2800 = vmatpush.msra.mxu0 %v108
    %2801 = vmatpush.msra.mxu0 %v104
    %2802 = vmatpush.msra.mxu0 %v100
    %2803 = vmatpush.msra.mxu0 %v96
    %2804 = vmatpush.msra.mxu0 %v92
    %2805 = vmatpush.msra.mxu0 %v88
    %2806 = vmatpush.msra.mxu0 %v84
    %2807 = vmatpush.msra.mxu0 %v80
    %2808 = vmatpush.msra.mxu0 %v76
    %2809 = vmatpush.msra.mxu0 %v72
    %2810 = vmatpush.msra.mxu0 %v68
    %2811 = vmatpush.msra.mxu0 %v64
    %2812 = vmatpush.msra.mxu0 %v60
    %2813 = vmatmul.f32.gmra.mxu0 %v2513
    %v2814 = vpop.f32.mrf.mxu0
    %v2815 = vadd.f32 0.0, %v2814
    %2816 = vdwg.mxu0
    %v2817 = vadd.f32 %v380, %v2755
    %v2818 = vadd.f32 %v421, %v2775
    %v2819 = vadd.f32 %v462, %v2795
    %v2820 = vadd.f32 %v503, %v2815
    %v2821 = vxor.u32 %v2817, 2147483648
    %v2822 = vxor.u32 %v2818, 2147483648
    %v2823 = vxor.u32 %v2819, 2147483648
    %v2824 = vmul.f32 %v2821, 1.442695
    %v2825 = vpow.pop %v2824
    %v2826 = vmul.f32 %v2822, 1.442695
    %v2827 = vpow.pop %v2826
    %v2828 = vmul.f32 %v2823, 1.442695
    %v2829 = vpow.pop %v2828
    %v2830 = vadd.f32 %v2825, 1.0
    %v2831 = vadd.f32 %v2827, 1.0
    %v2832 = vadd.f32 %v2829, 1.0
    %v2833 = vrcp.pop %v2830
    %v2834 = vmul.f32 %v2830, %v2833
    %v2835 = vsub.f32 1.0, %v2834
    %v2836 = vmul.f32 %v2833, %v2835
    %v2837 = vadd.f32 %v2833, %v2836
    %vm2838 = vweird.f32 %v2830
    %vm2839 = vweird.f32 %v2833
    %vm2840 = vmor %vm2838, %vm2839
    %v2841 = vsel %vm2840, %v2833, %v2837
    %v2842 = vand.u32 2147483647, %v2830
    %vm2843 = vcmp.eq.f32.partialorder %v2842, 8.507059e+37
    %v2844 = vand.u32 %v2830, 2147483648
    %v2845 = vor.u32 1.1754944e-38, %v2844
    %v2846 = vsel %vm2843, %v2845, %v2841
    %v2847 = vmul.f32 1.0, %v2846
    %v2848 = vrcp.pop %v2831
    %v2849 = vmul.f32 %v2831, %v2848
    %v2850 = vsub.f32 1.0, %v2849
    %v2851 = vmul.f32 %v2848, %v2850
    %v2852 = vadd.f32 %v2848, %v2851
    %vm2853 = vweird.f32 %v2831
    %vm2854 = vweird.f32 %v2848
    %vm2855 = vmor %vm2853, %vm2854
    %v2856 = vsel %vm2855, %v2848, %v2852
    %v2857 = vand.u32 2147483647, %v2831
    %vm2858 = vcmp.eq.f32.partialorder %v2857, 8.507059e+37
    %v2859 = vand.u32 %v2831, 2147483648
    %v2860 = vor.u32 1.1754944e-38, %v2859
    %v2861 = vsel %vm2858, %v2860, %v2856
    %v2862 = vmul.f32 1.0, %v2861
    %v2863 = vrcp.pop %v2832
    %v2864 = vmul.f32 %v2832, %v2863
    %v2865 = vsub.f32 1.0, %v2864
    %v2866 = vmul.f32 %v2863, %v2865
    %v2867 = vadd.f32 %v2863, %v2866
    %vm2868 = vweird.f32 %v2832
    %vm2869 = vweird.f32 %v2863
    %vm2870 = vmor %vm2868, %vm2869
    %v2871 = vsel %vm2870, %v2863, %v2867
    %v2872 = vand.u32 2147483647, %v2832
    %vm2873 = vcmp.eq.f32.partialorder %v2872, 8.507059e+37
    %v2874 = vand.u32 %v2832, 2147483648
    %v2875 = vor.u32 1.1754944e-38, %v2874
    %v2876 = vsel %vm2873, %v2875, %v2871
    %v2877 = vmul.f32 1.0, %v2876
    %v2878 = vtanh.pop %v2820
    %v2879 = vmul.f32 %v2862, %v2511
    %v2880 = vmul.f32 %v2847, %v2878
    %v2881 = vadd.f32 %v2879, %v2880
    %v2882 = vtanh.pop %v2881
    %v2883 = vmul.f32 %v2877, %v2882
    %2884 = vmatpush.msra.mxu0 %v181
    %2885 = vmatpush.msra.mxu0 %v177
    %2886 = vmatpush.msra.mxu0 %v173
    %2887 = vmatpush.msra.mxu0 %v169
    %2888 = vmatpush.msra.mxu0 %v165
    %2889 = vmatpush.msra.mxu0 %v161
    %2890 = vmatpush.msra.mxu0 %v157
    %2891 = vmatpush.msra.mxu0 %v153
    %2892 = vmatpush.msra.mxu0 %v149
    %2893 = vmatpush.msra.mxu0 %v145
    %2894 = vmatpush.msra.mxu0 %v141
    %2895 = vmatpush.msra.mxu0 %v137
    %2896 = vmatpush.msra.mxu0 %v133
    %2897 = vmatpush.msra.mxu0 %v129
    %2898 = vmatpush.msra.mxu0 %v125
    %2899 = vmatpush.msra.mxu0 %v121
    %2900 = vmatmul.f32.gmra.mxu0 %v2883
    %v2901 = vpop.f32.mrf.mxu0
    %v2902 = vadd.f32 %v509, %v2901
    %2903 = vdwg.mxu0
    %2904 = vmatpush.msra.mxu0 %v245
    %2905 = vmatpush.msra.mxu0 %v241
    %2906 = vmatpush.msra.mxu0 %v237
    %2907 = vmatpush.msra.mxu0 %v233
    %2908 = vmatpush.msra.mxu0 %v229
    %2909 = vmatpush.msra.mxu0 %v225
    %2910 = vmatpush.msra.mxu0 %v221
    %2911 = vmatpush.msra.mxu0 %v217
    %2912 = vmatpush.msra.mxu0 %v213
    %2913 = vmatpush.msra.mxu0 %v209
    %2914 = vmatpush.msra.mxu0 %v205
    %2915 = vmatpush.msra.mxu0 %v201
    %2916 = vmatpush.msra.mxu0 %v197
    %2917 = vmatpush.msra.mxu0 %v193
    %2918 = vmatpush.msra.mxu0 %v189
    %2919 = vmatpush.msra.mxu0 %v185
    %2920 = vmatmul.f32.gmra.mxu0 %v2736
    %v2921 = vpop.f32.mrf.mxu0
    %v2922 = vadd.f32 %v2902, %v2921
    %2923 = vdwg.mxu0
    %2924 = vmatpush.msra.mxu0 %v182
    %2925 = vmatpush.msra.mxu0 %v178
    %2926 = vmatpush.msra.mxu0 %v174
    %2927 = vmatpush.msra.mxu0 %v170
    %2928 = vmatpush.msra.mxu0 %v166
    %2929 = vmatpush.msra.mxu0 %v162
    %2930 = vmatpush.msra.mxu0 %v158
    %2931 = vmatpush.msra.mxu0 %v154
    %2932 = vmatpush.msra.mxu0 %v150
    %2933 = vmatpush.msra.mxu0 %v146
    %2934 = vmatpush.msra.mxu0 %v142
    %2935 = vmatpush.msra.mxu0 %v138
    %2936 = vmatpush.msra.mxu0 %v134
    %2937 = vmatpush.msra.mxu0 %v130
    %2938 = vmatpush.msra.mxu0 %v126
    %2939 = vmatpush.msra.mxu0 %v122
    %2940 = vmatmul.f32.gmra.mxu0 %v2883
    %v2941 = vpop.f32.mrf.mxu0
    %v2942 = vadd.f32 %v510, %v2941
    %2943 = vdwg.mxu0
    %2944 = vmatpush.msra.mxu0 %v246
    %2945 = vmatpush.msra.mxu0 %v242
    %2946 = vmatpush.msra.mxu0 %v238
    %2947 = vmatpush.msra.mxu0 %v234
    %2948 = vmatpush.msra.mxu0 %v230
    %2949 = vmatpush.msra.mxu0 %v226
    %2950 = vmatpush.msra.mxu0 %v222
    %2951 = vmatpush.msra.mxu0 %v218
    %2952 = vmatpush.msra.mxu0 %v214
    %2953 = vmatpush.msra.mxu0 %v210
    %2954 = vmatpush.msra.mxu0 %v206
    %2955 = vmatpush.msra.mxu0 %v202
    %2956 = vmatpush.msra.mxu0 %v198
    %2957 = vmatpush.msra.mxu0 %v194
    %2958 = vmatpush.msra.mxu0 %v190
    %2959 = vmatpush.msra.mxu0 %v186
    %2960 = vmatmul.f32.gmra.mxu0 %v2736
    %v2961 = vpop.f32.mrf.mxu0
    %v2962 = vadd.f32 %v2942, %v2961
    %2963 = vdwg.mxu0
    %2964 = vmatpush.msra.mxu0 %v183
    %2965 = vmatpush.msra.mxu0 %v179
    %2966 = vmatpush.msra.mxu0 %v175
    %2967 = vmatpush.msra.mxu0 %v171
    %2968 = vmatpush.msra.mxu0 %v167
    %2969 = vmatpush.msra.mxu0 %v163
    %2970 = vmatpush.msra.mxu0 %v159
    %2971 = vmatpush.msra.mxu0 %v155
    %2972 = vmatpush.msra.mxu0 %v151
    %2973 = vmatpush.msra.mxu0 %v147
    %2974 = vmatpush.msra.mxu0 %v143
    %2975 = vmatpush.msra.mxu0 %v139
    %2976 = vmatpush.msra.mxu0 %v135
    %2977 = vmatpush.msra.mxu0 %v131
    %2978 = vmatpush.msra.mxu0 %v127
    %2979 = vmatpush.msra.mxu0 %v123
    %2980 = vmatmul.f32.gmra.mxu0 %v2883
    %v2981 = vpop.f32.mrf.mxu0
    %v2982 = vadd.f32 %v511, %v2981
    %2983 = vdwg.mxu0
    %2984 = vmatpush.msra.mxu0 %v247
    %2985 = vmatpush.msra.mxu0 %v243
    %2986 = vmatpush.msra.mxu0 %v239
    %2987 = vmatpush.msra.mxu0 %v235
    %2988 = vmatpush.msra.mxu0 %v231
    %2989 = vmatpush.msra.mxu0 %v227
    %2990 = vmatpush.msra.mxu0 %v223
    %2991 = vmatpush.msra.mxu0 %v219
    %2992 = vmatpush.msra.mxu0 %v215
    %2993 = vmatpush.msra.mxu0 %v211
    %2994 = vmatpush.msra.mxu0 %v207
    %2995 = vmatpush.msra.mxu0 %v203
    %2996 = vmatpush.msra.mxu0 %v199
    %2997 = vmatpush.msra.mxu0 %v195
    %2998 = vmatpush.msra.mxu0 %v191
    %2999 = vmatpush.msra.mxu0 %v187
    %3000 = vmatmul.f32.gmra.mxu0 %v2736
    %v3001 = vpop.f32.mrf.mxu0
    %v3002 = vadd.f32 %v2982, %v3001
    %3003 = vdwg.mxu0
    %3004 = vmatpush.msra.mxu0 %v184
    %3005 = vmatpush.msra.mxu0 %v180
    %3006 = vmatpush.msra.mxu0 %v176
    %3007 = vmatpush.msra.mxu0 %v172
    %3008 = vmatpush.msra.mxu0 %v168
    %3009 = vmatpush.msra.mxu0 %v164
    %3010 = vmatpush.msra.mxu0 %v160
    %3011 = vmatpush.msra.mxu0 %v156
    %3012 = vmatpush.msra.mxu0 %v152
    %3013 = vmatpush.msra.mxu0 %v148
    %3014 = vmatpush.msra.mxu0 %v144
    %3015 = vmatpush.msra.mxu0 %v140
    %3016 = vmatpush.msra.mxu0 %v136
    %3017 = vmatpush.msra.mxu0 %v132
    %3018 = vmatpush.msra.mxu0 %v128
    %3019 = vmatpush.msra.mxu0 %v124
    %3020 = vmatmul.f32.gmra.mxu0 %v2883
    %v3021 = vpop.f32.mrf.mxu0
    %v3022 = vadd.f32 %v512, %v3021
    %3023 = vdwg.mxu0
    %3024 = vmatpush.msra.mxu0 %v248
    %3025 = vmatpush.msra.mxu0 %v244
    %3026 = vmatpush.msra.mxu0 %v240
    %3027 = vmatpush.msra.mxu0 %v236
    %3028 = vmatpush.msra.mxu0 %v232
    %3029 = vmatpush.msra.mxu0 %v228
    %3030 = vmatpush.msra.mxu0 %v224
    %3031 = vmatpush.msra.mxu0 %v220
    %3032 = vmatpush.msra.mxu0 %v216
    %3033 = vmatpush.msra.mxu0 %v212
    %3034 = vmatpush.msra.mxu0 %v208
    %3035 = vmatpush.msra.mxu0 %v204
    %3036 = vmatpush.msra.mxu0 %v200
    %3037 = vmatpush.msra.mxu0 %v196
    %3038 = vmatpush.msra.mxu0 %v192
    %3039 = vmatpush.msra.mxu0 %v188
    %3040 = vmatmul.f32.gmra.mxu0 %v2736
    %v3041 = vpop.f32.mrf.mxu0
    %v3042 = vadd.f32 %v3022, %v3041
    %3043 = vdwg.mxu0
    %v3044 = vxor.u32 %v2922, 2147483648
    %v3045 = vxor.u32 %v2962, 2147483648
    %v3046 = vxor.u32 %v3002, 2147483648
    %v3047 = vmul.f32 %v3044, 1.442695
    %v3048 = vpow.pop %v3047
    %v3049 = vmul.f32 %v3045, 1.442695
    %v3050 = vpow.pop %v3049
    %v3051 = vmul.f32 %v3046, 1.442695
    %v3052 = vpow.pop %v3051
    %v3053 = vadd.f32 %v3048, 1.0
    %v3054 = vadd.f32 %v3050, 1.0
    %v3055 = vadd.f32 %v3052, 1.0
    %v3056 = vrcp.pop %v3053
    %v3057 = vmul.f32 %v3053, %v3056
    %v3058 = vsub.f32 1.0, %v3057
    %v3059 = vmul.f32 %v3056, %v3058
    %v3060 = vadd.f32 %v3056, %v3059
    %vm3061 = vweird.f32 %v3053
    %vm3062 = vweird.f32 %v3056
    %vm3063 = vmor %vm3061, %vm3062
    %v3064 = vsel %vm3063, %v3056, %v3060
    %v3065 = vand.u32 2147483647, %v3053
    %vm3066 = vcmp.eq.f32.partialorder %v3065, 8.507059e+37
    %v3067 = vand.u32 %v3053, 2147483648
    %v3068 = vor.u32 1.1754944e-38, %v3067
    %v3069 = vsel %vm3066, %v3068, %v3064
    %v3070 = vmul.f32 1.0, %v3069
    %v3071 = vrcp.pop %v3054
    %v3072 = vmul.f32 %v3054, %v3071
    %v3073 = vsub.f32 1.0, %v3072
    %v3074 = vmul.f32 %v3071, %v3073
    %v3075 = vadd.f32 %v3071, %v3074
    %vm3076 = vweird.f32 %v3054
    %vm3077 = vweird.f32 %v3071
    %vm3078 = vmor %vm3076, %vm3077
    %v3079 = vsel %vm3078, %v3071, %v3075
    %v3080 = vand.u32 2147483647, %v3054
    %vm3081 = vcmp.eq.f32.partialorder %v3080, 8.507059e+37
    %v3082 = vand.u32 %v3054, 2147483648
    %v3083 = vor.u32 1.1754944e-38, %v3082
    %v3084 = vsel %vm3081, %v3083, %v3079
    %v3085 = vmul.f32 1.0, %v3084
    %v3086 = vrcp.pop %v3055
    %v3087 = vmul.f32 %v3055, %v3086
    %v3088 = vsub.f32 1.0, %v3087
    %v3089 = vmul.f32 %v3086, %v3088
    %v3090 = vadd.f32 %v3086, %v3089
    %vm3091 = vweird.f32 %v3055
    %vm3092 = vweird.f32 %v3086
    %vm3093 = vmor %vm3091, %vm3092
    %v3094 = vsel %vm3093, %v3086, %v3090
    %v3095 = vand.u32 2147483647, %v3055
    %vm3096 = vcmp.eq.f32.partialorder %v3095, 8.507059e+37
    %v3097 = vand.u32 %v3055, 2147483648
    %v3098 = vor.u32 1.1754944e-38, %v3097
    %v3099 = vsel %vm3096, %v3098, %v3094
    %v3100 = vmul.f32 1.0, %v3099
    %v3101 = vtanh.pop %v3042
    %v3102 = vmul.f32 %v3085, %v2734
    %v3103 = vmul.f32 %v3070, %v3101
    %v3104 = vadd.f32 %v3102, %v3103
    %v3105 = vtanh.pop %v3104
    %v3106 = vmul.f32 %v3100, %v3105
    %3107 = vmatpush.msra.mxu0 %v117
    %3108 = vmatpush.msra.mxu0 %v113
    %3109 = vmatpush.msra.mxu0 %v109
    %3110 = vmatpush.msra.mxu0 %v105
    %3111 = vmatpush.msra.mxu0 %v101
    %3112 = vmatpush.msra.mxu0 %v97
    %3113 = vmatpush.msra.mxu0 %v93
    %3114 = vmatpush.msra.mxu0 %v89
    %3115 = vmatpush.msra.mxu0 %v85
    %3116 = vmatpush.msra.mxu0 %v81
    %3117 = vmatpush.msra.mxu0 %v77
    %3118 = vmatpush.msra.mxu0 %v73
    %3119 = vmatpush.msra.mxu0 %v69
    %3120 = vmatpush.msra.mxu0 %v65
    %3121 = vmatpush.msra.mxu0 %v61
    %3122 = vmatpush.msra.mxu0 %v57
    %3123 = vmatmul.f32.gmra.mxu0 %v2883
    %v3124 = vpop.f32.mrf.mxu0
    %v3125 = vadd.f32 0.0, %v3124
    %3126 = vdwg.mxu0
    %3127 = vmatpush.msra.mxu0 %v118
    %3128 = vmatpush.msra.mxu0 %v114
    %3129 = vmatpush.msra.mxu0 %v110
    %3130 = vmatpush.msra.mxu0 %v106
    %3131 = vmatpush.msra.mxu0 %v102
    %3132 = vmatpush.msra.mxu0 %v98
    %3133 = vmatpush.msra.mxu0 %v94
    %3134 = vmatpush.msra.mxu0 %v90
    %3135 = vmatpush.msra.mxu0 %v86
    %3136 = vmatpush.msra.mxu0 %v82
    %3137 = vmatpush.msra.mxu0 %v78
    %3138 = vmatpush.msra.mxu0 %v74
    %3139 = vmatpush.msra.mxu0 %v70
    %3140 = vmatpush.msra.mxu0 %v66
    %3141 = vmatpush.msra.mxu0 %v62
    %3142 = vmatpush.msra.mxu0 %v58
    %3143 = vmatmul.f32.gmra.mxu0 %v2883
    %v3144 = vpop.f32.mrf.mxu0
    %v3145 = vadd.f32 0.0, %v3144
    %3146 = vdwg.mxu0
    %3147 = vmatpush.msra.mxu0 %v119
    %3148 = vmatpush.msra.mxu0 %v115
    %3149 = vmatpush.msra.mxu0 %v111
    %3150 = vmatpush.msra.mxu0 %v107
    %3151 = vmatpush.msra.mxu0 %v103
    %3152 = vmatpush.msra.mxu0 %v99
    %3153 = vmatpush.msra.mxu0 %v95
    %3154 = vmatpush.msra.mxu0 %v91
    %3155 = vmatpush.msra.mxu0 %v87
    %3156 = vmatpush.msra.mxu0 %v83
    %3157 = vmatpush.msra.mxu0 %v79
    %3158 = vmatpush.msra.mxu0 %v75
    %3159 = vmatpush.msra.mxu0 %v71
    %3160 = vmatpush.msra.mxu0 %v67
    %3161 = vmatpush.msra.mxu0 %v63
    %3162 = vmatpush.msra.mxu0 %v59
    %3163 = vmatmul.f32.gmra.mxu0 %v2883
    %v3164 = vpop.f32.mrf.mxu0
    %v3165 = vadd.f32 0.0, %v3164
    %3166 = vdwg.mxu0
    %3167 = vmatpush.msra.mxu0 %v120
    %3168 = vmatpush.msra.mxu0 %v116
    %3169 = vmatpush.msra.mxu0 %v112
    %3170 = vmatpush.msra.mxu0 %v108
    %3171 = vmatpush.msra.mxu0 %v104
    %3172 = vmatpush.msra.mxu0 %v100
    %3173 = vmatpush.msra.mxu0 %v96
    %3174 = vmatpush.msra.mxu0 %v92
    %3175 = vmatpush.msra.mxu0 %v88
    %3176 = vmatpush.msra.mxu0 %v84
    %3177 = vmatpush.msra.mxu0 %v80
    %3178 = vmatpush.msra.mxu0 %v76
    %3179 = vmatpush.msra.mxu0 %v72
    %3180 = vmatpush.msra.mxu0 %v68
    %3181 = vmatpush.msra.mxu0 %v64
    %3182 = vmatpush.msra.mxu0 %v60
    %3183 = vmatmul.f32.gmra.mxu0 %v2883
    %v3184 = vpop.f32.mrf.mxu0
    %v3185 = vadd.f32 0.0, %v3184
    %3186 = vdwg.mxu0
    %v3187 = vadd.f32 %v383, %v3125
    %v3188 = vadd.f32 %v424, %v3145
    %v3189 = vadd.f32 %v465, %v3165
    %v3190 = vadd.f32 %v506, %v3185
    %v3191 = vxor.u32 %v3187, 2147483648
    %v3192 = vxor.u32 %v3188, 2147483648
    %v3193 = vxor.u32 %v3189, 2147483648
    %v3194 = vmul.f32 %v3191, 1.442695
    %v3195 = vpow.pop %v3194
    %v3196 = vmul.f32 %v3192, 1.442695
    %v3197 = vpow.pop %v3196
    %v3198 = vmul.f32 %v3193, 1.442695
    %v3199 = vpow.pop %v3198
    %v3200 = vadd.f32 %v3195, 1.0
    %v3201 = vadd.f32 %v3197, 1.0
    %v3202 = vadd.f32 %v3199, 1.0
    %v3203 = vrcp.pop %v3200
    %v3204 = vmul.f32 %v3200, %v3203
    %v3205 = vsub.f32 1.0, %v3204
    %v3206 = vmul.f32 %v3203, %v3205
    %v3207 = vadd.f32 %v3203, %v3206
    %vm3208 = vweird.f32 %v3200
    %vm3209 = vweird.f32 %v3203
    %vm3210 = vmor %vm3208, %vm3209
    %v3211 = vsel %vm3210, %v3203, %v3207
    %v3212 = vand.u32 2147483647, %v3200
    %vm3213 = vcmp.eq.f32.partialorder %v3212, 8.507059e+37
    %v3214 = vand.u32 %v3200, 2147483648
    %v3215 = vor.u32 1.1754944e-38, %v3214
    %v3216 = vsel %vm3213, %v3215, %v3211
    %v3217 = vmul.f32 1.0, %v3216
    %v3218 = vrcp.pop %v3201
    %v3219 = vmul.f32 %v3201, %v3218
    %v3220 = vsub.f32 1.0, %v3219
    %v3221 = vmul.f32 %v3218, %v3220
    %v3222 = vadd.f32 %v3218, %v3221
    %vm3223 = vweird.f32 %v3201
    %vm3224 = vweird.f32 %v3218
    %vm3225 = vmor %vm3223, %vm3224
    %v3226 = vsel %vm3225, %v3218, %v3222
    %v3227 = vand.u32 2147483647, %v3201
    %vm3228 = vcmp.eq.f32.partialorder %v3227, 8.507059e+37
    %v3229 = vand.u32 %v3201, 2147483648
    %v3230 = vor.u32 1.1754944e-38, %v3229
    %v3231 = vsel %vm3228, %v3230, %v3226
    %v3232 = vmul.f32 1.0, %v3231
    %v3233 = vrcp.pop %v3202
    %v3234 = vmul.f32 %v3202, %v3233
    %v3235 = vsub.f32 1.0, %v3234
    %v3236 = vmul.f32 %v3233, %v3235
    %v3237 = vadd.f32 %v3233, %v3236
    %vm3238 = vweird.f32 %v3202
    %vm3239 = vweird.f32 %v3233
    %vm3240 = vmor %vm3238, %vm3239
    %v3241 = vsel %vm3240, %v3233, %v3237
    %v3242 = vand.u32 2147483647, %v3202
    %vm3243 = vcmp.eq.f32.partialorder %v3242, 8.507059e+37
    %v3244 = vand.u32 %v3202, 2147483648
    %v3245 = vor.u32 1.1754944e-38, %v3244
    %v3246 = vsel %vm3243, %v3245, %v3241
    %v3247 = vmul.f32 1.0, %v3246
    %v3248 = vtanh.pop %v3190
    %v3249 = vmul.f32 %v3232, %v2881
    %v3250 = vmul.f32 %v3217, %v3248
    %v3251 = vadd.f32 %v3249, %v3250
    %v3252 = vtanh.pop %v3251
    %v3253 = vmul.f32 %v3247, %v3252
    %3254 = vmatpush.msra.mxu0 %v181
    %3255 = vmatpush.msra.mxu0 %v177
    %3256 = vmatpush.msra.mxu0 %v173
    %3257 = vmatpush.msra.mxu0 %v169
    %3258 = vmatpush.msra.mxu0 %v165
    %3259 = vmatpush.msra.mxu0 %v161
    %3260 = vmatpush.msra.mxu0 %v157
    %3261 = vmatpush.msra.mxu0 %v153
    %3262 = vmatpush.msra.mxu0 %v149
    %3263 = vmatpush.msra.mxu0 %v145
    %3264 = vmatpush.msra.mxu0 %v141
    %3265 = vmatpush.msra.mxu0 %v137
    %3266 = vmatpush.msra.mxu0 %v133
    %3267 = vmatpush.msra.mxu0 %v129
    %3268 = vmatpush.msra.mxu0 %v125
    %3269 = vmatpush.msra.mxu0 %v121
    %3270 = vmatmul.f32.gmra.mxu0 %v3253
    %v3271 = vpop.f32.mrf.mxu0
    %v3272 = vadd.f32 %v509, %v3271
    %3273 = vdwg.mxu0
    %3274 = vmatpush.msra.mxu0 %v245
    %3275 = vmatpush.msra.mxu0 %v241
    %3276 = vmatpush.msra.mxu0 %v237
    %3277 = vmatpush.msra.mxu0 %v233
    %3278 = vmatpush.msra.mxu0 %v229
    %3279 = vmatpush.msra.mxu0 %v225
    %3280 = vmatpush.msra.mxu0 %v221
    %3281 = vmatpush.msra.mxu0 %v217
    %3282 = vmatpush.msra.mxu0 %v213
    %3283 = vmatpush.msra.mxu0 %v209
    %3284 = vmatpush.msra.mxu0 %v205
    %3285 = vmatpush.msra.mxu0 %v201
    %3286 = vmatpush.msra.mxu0 %v197
    %3287 = vmatpush.msra.mxu0 %v193
    %3288 = vmatpush.msra.mxu0 %v189
    %3289 = vmatpush.msra.mxu0 %v185
    %3290 = vmatmul.f32.gmra.mxu0 %v3106
    %v3291 = vpop.f32.mrf.mxu0
    %v3292 = vadd.f32 %v3272, %v3291
    %3293 = vdwg.mxu0
    %3294 = vmatpush.msra.mxu0 %v182
    %3295 = vmatpush.msra.mxu0 %v178
    %3296 = vmatpush.msra.mxu0 %v174
    %3297 = vmatpush.msra.mxu0 %v170
    %3298 = vmatpush.msra.mxu0 %v166
    %3299 = vmatpush.msra.mxu0 %v162
    %3300 = vmatpush.msra.mxu0 %v158
    %3301 = vmatpush.msra.mxu0 %v154
    %3302 = vmatpush.msra.mxu0 %v150
    %3303 = vmatpush.msra.mxu0 %v146
    %3304 = vmatpush.msra.mxu0 %v142
    %3305 = vmatpush.msra.mxu0 %v138
    %3306 = vmatpush.msra.mxu0 %v134
    %3307 = vmatpush.msra.mxu0 %v130
    %3308 = vmatpush.msra.mxu0 %v126
    %3309 = vmatpush.msra.mxu0 %v122
    %3310 = vmatmul.f32.gmra.mxu0 %v3253
    %v3311 = vpop.f32.mrf.mxu0
    %v3312 = vadd.f32 %v510, %v3311
    %3313 = vdwg.mxu0
    %3314 = vmatpush.msra.mxu0 %v246
    %3315 = vmatpush.msra.mxu0 %v242
    %3316 = vmatpush.msra.mxu0 %v238
    %3317 = vmatpush.msra.mxu0 %v234
    %3318 = vmatpush.msra.mxu0 %v230
    %3319 = vmatpush.msra.mxu0 %v226
    %3320 = vmatpush.msra.mxu0 %v222
    %3321 = vmatpush.msra.mxu0 %v218
    %3322 = vmatpush.msra.mxu0 %v214
    %3323 = vmatpush.msra.mxu0 %v210
    %3324 = vmatpush.msra.mxu0 %v206
    %3325 = vmatpush.msra.mxu0 %v202
    %3326 = vmatpush.msra.mxu0 %v198
    %3327 = vmatpush.msra.mxu0 %v194
    %3328 = vmatpush.msra.mxu0 %v190
    %3329 = vmatpush.msra.mxu0 %v186
    %3330 = vmatmul.f32.gmra.mxu0 %v3106
    %v3331 = vpop.f32.mrf.mxu0
    %v3332 = vadd.f32 %v3312, %v3331
    %3333 = vdwg.mxu0
    %3334 = vmatpush.msra.mxu0 %v183
    %3335 = vmatpush.msra.mxu0 %v179
    %3336 = vmatpush.msra.mxu0 %v175
    %3337 = vmatpush.msra.mxu0 %v171
    %3338 = vmatpush.msra.mxu0 %v167
    %3339 = vmatpush.msra.mxu0 %v163
    %3340 = vmatpush.msra.mxu0 %v159
    %3341 = vmatpush.msra.mxu0 %v155
    %3342 = vmatpush.msra.mxu0 %v151
    %3343 = vmatpush.msra.mxu0 %v147
    %3344 = vmatpush.msra.mxu0 %v143
    %3345 = vmatpush.msra.mxu0 %v139
    %3346 = vmatpush.msra.mxu0 %v135
    %3347 = vmatpush.msra.mxu0 %v131
    %3348 = vmatpush.msra.mxu0 %v127
    %3349 = vmatpush.msra.mxu0 %v123
    %3350 = vmatmul.f32.gmra.mxu0 %v3253
    %v3351 = vpop.f32.mrf.mxu0
    %v3352 = vadd.f32 %v511, %v3351
    %3353 = vdwg.mxu0
    %3354 = vmatpush.msra.mxu0 %v247
    %3355 = vmatpush.msra.mxu0 %v243
    %3356 = vmatpush.msra.mxu0 %v239
    %3357 = vmatpush.msra.mxu0 %v235
    %3358 = vmatpush.msra.mxu0 %v231
    %3359 = vmatpush.msra.mxu0 %v227
    %3360 = vmatpush.msra.mxu0 %v223
    %3361 = vmatpush.msra.mxu0 %v219
    %3362 = vmatpush.msra.mxu0 %v215
    %3363 = vmatpush.msra.mxu0 %v211
    %3364 = vmatpush.msra.mxu0 %v207
    %3365 = vmatpush.msra.mxu0 %v203
    %3366 = vmatpush.msra.mxu0 %v199
    %3367 = vmatpush.msra.mxu0 %v195
    %3368 = vmatpush.msra.mxu0 %v191
    %3369 = vmatpush.msra.mxu0 %v187
    %3370 = vmatmul.f32.gmra.mxu0 %v3106
    %v3371 = vpop.f32.mrf.mxu0
    %v3372 = vadd.f32 %v3352, %v3371
    %3373 = vdwg.mxu0
    %3374 = vmatpush.msra.mxu0 %v184
    %3375 = vmatpush.msra.mxu0 %v180
    %3376 = vmatpush.msra.mxu0 %v176
    %3377 = vmatpush.msra.mxu0 %v172
    %3378 = vmatpush.msra.mxu0 %v168
    %3379 = vmatpush.msra.mxu0 %v164
    %3380 = vmatpush.msra.mxu0 %v160
    %3381 = vmatpush.msra.mxu0 %v156
    %3382 = vmatpush.msra.mxu0 %v152
    %3383 = vmatpush.msra.mxu0 %v148
    %3384 = vmatpush.msra.mxu0 %v144
    %3385 = vmatpush.msra.mxu0 %v140
    %3386 = vmatpush.msra.mxu0 %v136
    %3387 = vmatpush.msra.mxu0 %v132
    %3388 = vmatpush.msra.mxu0 %v128
    %3389 = vmatpush.msra.mxu0 %v124
    %3390 = vmatmul.f32.gmra.mxu0 %v3253
    %v3391 = vpop.f32.mrf.mxu0
    %v3392 = vadd.f32 %v512, %v3391
    %3393 = vdwg.mxu0
    %3394 = vmatpush.msra.mxu0 %v248
    %3395 = vmatpush.msra.mxu0 %v244
    %3396 = vmatpush.msra.mxu0 %v240
    %3397 = vmatpush.msra.mxu0 %v236
    %3398 = vmatpush.msra.mxu0 %v232
    %3399 = vmatpush.msra.mxu0 %v228
    %3400 = vmatpush.msra.mxu0 %v224
    %3401 = vmatpush.msra.mxu0 %v220
    %3402 = vmatpush.msra.mxu0 %v216
    %3403 = vmatpush.msra.mxu0 %v212
    %3404 = vmatpush.msra.mxu0 %v208
    %3405 = vmatpush.msra.mxu0 %v204
    %3406 = vmatpush.msra.mxu0 %v200
    %3407 = vmatpush.msra.mxu0 %v196
    %3408 = vmatpush.msra.mxu0 %v192
    %3409 = vmatpush.msra.mxu0 %v188
    %3410 = vmatmul.f32.gmra.mxu0 %v3106
    %v3411 = vpop.f32.mrf.mxu0
    %v3412 = vadd.f32 %v3392, %v3411
    %3413 = vdwg.mxu0
    %v3414 = vxor.u32 %v3292, 2147483648
    %v3415 = vxor.u32 %v3332, 2147483648
    %v3416 = vxor.u32 %v3372, 2147483648
    %v3417 = vmul.f32 %v3414, 1.442695
    %v3418 = vpow.pop %v3417
    %v3419 = vmul.f32 %v3415, 1.442695
    %v3420 = vpow.pop %v3419
    %v3421 = vmul.f32 %v3416, 1.442695
    %v3422 = vpow.pop %v3421
    %v3423 = vadd.f32 %v3418, 1.0
    %v3424 = vadd.f32 %v3420, 1.0
    %v3425 = vadd.f32 %v3422, 1.0
    %v3426 = vrcp.pop %v3423
    %v3427 = vmul.f32 %v3423, %v3426
    %v3428 = vsub.f32 1.0, %v3427
    %v3429 = vmul.f32 %v3426, %v3428
    %v3430 = vadd.f32 %v3426, %v3429
    %vm3431 = vweird.f32 %v3423
    %vm3432 = vweird.f32 %v3426
    %vm3433 = vmor %vm3431, %vm3432
    %v3434 = vsel %vm3433, %v3426, %v3430
    %v3435 = vand.u32 2147483647, %v3423
    %vm3436 = vcmp.eq.f32.partialorder %v3435, 8.507059e+37
    %v3437 = vand.u32 %v3423, 2147483648
    %v3438 = vor.u32 1.1754944e-38, %v3437
    %v3439 = vsel %vm3436, %v3438, %v3434
    %v3440 = vmul.f32 1.0, %v3439
    %v3441 = vrcp.pop %v3424
    %v3442 = vmul.f32 %v3424, %v3441
    %v3443 = vsub.f32 1.0, %v3442
    %v3444 = vmul.f32 %v3441, %v3443
    %v3445 = vadd.f32 %v3441, %v3444
    %vm3446 = vweird.f32 %v3424
    %vm3447 = vweird.f32 %v3441
    %vm3448 = vmor %vm3446, %vm3447
    %v3449 = vsel %vm3448, %v3441, %v3445
    %v3450 = vand.u32 2147483647, %v3424
    %vm3451 = vcmp.eq.f32.partialorder %v3450, 8.507059e+37
    %v3452 = vand.u32 %v3424, 2147483648
    %v3453 = vor.u32 1.1754944e-38, %v3452
    %v3454 = vsel %vm3451, %v3453, %v3449
    %v3455 = vmul.f32 1.0, %v3454
    %v3456 = vrcp.pop %v3425
    %v3457 = vmul.f32 %v3425, %v3456
    %v3458 = vsub.f32 1.0, %v3457
    %v3459 = vmul.f32 %v3456, %v3458
    %v3460 = vadd.f32 %v3456, %v3459
    %vm3461 = vweird.f32 %v3425
    %vm3462 = vweird.f32 %v3456
    %vm3463 = vmor %vm3461, %vm3462
    %v3464 = vsel %vm3463, %v3456, %v3460
    %v3465 = vand.u32 2147483647, %v3425
    %vm3466 = vcmp.eq.f32.partialorder %v3465, 8.507059e+37
    %v3467 = vand.u32 %v3425, 2147483648
    %v3468 = vor.u32 1.1754944e-38, %v3467
    %v3469 = vsel %vm3466, %v3468, %v3464
    %v3470 = vmul.f32 1.0, %v3469
    %v3471 = vtanh.pop %v3412
    %v3472 = vmul.f32 %v3455, %v3104
    %v3473 = vmul.f32 %v3440, %v3471
    %v3474 = vadd.f32 %v3472, %v3473
    %v3475 = vtanh.pop %v3474
    %v3476 = vmul.f32 %v3470, %v3475
    %v3478 = vperm.slane %v299, 0
    %3480 = vmatpush.msra.mxu0 %v264
    %3481 = vmatpush.msra.mxu0 %v263
    %3482 = vmatpush.msra.mxu0 %v262
    %3483 = vmatpush.msra.mxu0 %v261
    %3484 = vmatpush.msra.mxu0 %v260
    %3485 = vmatpush.msra.mxu0 %v259
    %3486 = vmatpush.msra.mxu0 %v258
    %3487 = vmatpush.msra.mxu0 %v257
    %3488 = vmatpush.msra.mxu0 %v256
    %3489 = vmatpush.msra.mxu0 %v255
    %3490 = vmatpush.msra.mxu0 %v254
    %3491 = vmatpush.msra.mxu0 %v253
    %3492 = vmatpush.msra.mxu0 %v252
    %3493 = vmatpush.msra.mxu0 %v251
    %3494 = vmatpush.msra.mxu0 %v250
    %3495 = vmatpush.msra.mxu0 %v249
    %3496 = vmatmul.f32.gmra.mxu0 %v3476
    %v3497 = vpop.f32.mrf.mxu0
    %v3498 = vadd.f32 %v3478, %v3497
    %3499 = vdwg.mxu0
    %v3500 = vmax.f32 %v3498, 0.0
    %v3502 = vperm.slane %v300, 0
    %3504 = vmatpush.msra.mxu0 %v280
    %3505 = vmatpush.msra.mxu0 %v279
    %3506 = vmatpush.msra.mxu0 %v278
    %3507 = vmatpush.msra.mxu0 %v277
    %3508 = vmatpush.msra.mxu0 %v276
    %3509 = vmatpush.msra.mxu0 %v275
    %3510 = vmatpush.msra.mxu0 %v274
    %3511 = vmatpush.msra.mxu0 %v273
    %3512 = vmatpush.msra.mxu0 %v272
    %3513 = vmatpush.msra.mxu0 %v271
    %3514 = vmatpush.msra.mxu0 %v270
    %3515 = vmatpush.msra.mxu0 %v269
    %3516 = vmatpush.msra.mxu0 %v268
    %3517 = vmatpush.msra.mxu0 %v267
    %3518 = vmatpush.msra.mxu0 %v266
    %3519 = vmatpush.msra.mxu0 %v265
    %3520 = vmatmul.f32.gmra.mxu0 %v3500
    %v3521 = vpop.f32.mrf.mxu0
    %v3522 = vadd.f32 %v3502, %v3521
    %3523 = vdwg.mxu0
    %v3524 = vmax.f32 %v3522, 0.0
    %v3526 = vperm.slane %v301, 0
    %3528 = vmatpush.msra.mxu0 %v296
    %3529 = vmatpush.msra.mxu0 %v295
    %3530 = vmatpush.msra.mxu0 %v294
    %3531 = vmatpush.msra.mxu0 %v293
    %3532 = vmatpush.msra.mxu0 %v292
    %3533 = vmatpush.msra.mxu0 %v291
    %3534 = vmatpush.msra.mxu0 %v290
    %3535 = vmatpush.msra.mxu0 %v289
    %3536 = vmatpush.msra.mxu0 %v288
    %3537 = vmatpush.msra.mxu0 %v287
    %3538 = vmatpush.msra.mxu0 %v286
    %3539 = vmatpush.msra.mxu0 %v285
    %3540 = vmatpush.msra.mxu0 %v284
    %3541 = vmatpush.msra.mxu0 %v283
    %3542 = vmatpush.msra.mxu0 %v282
    %3543 = vmatpush.msra.mxu0 %v281
    %3544 = vmatmul.f32.gmra.mxu0 %v3524
    %v3545 = vpop.f32.mrf.mxu0
    %v3546 = vadd.f32 %v3526, %v3545
    %3547 = vdwg.mxu0
    %3548 = vst [vmem:[%s4] sm:$0xff] %v3546
    // Predicated region
    $region26: #{qsteering_forward.1} parent=1 // pred_check
      _
    $region27: #{qsteering_forward.1} parent=1 // pred_check_branch
      %3550 = sbr.rel (0) target = $region29
    $region28: #{qsteering_forward.1} parent=1 // pred_region
      _
    $region29: #{qsteering_forward.1} parent=1 // pred_fallthru
      _
    // Predicated region
    $region30: #{qsteering_forward.1} parent=1 // pred_check
      _
    $region31: #{qsteering_forward.1} parent=1 // pred_check_branch
      %3552 = sbr.rel (0) target = $region33
    $region32: #{qsteering_forward.1} parent=1 // pred_region
      _
    $region33: #{qsteering_forward.1} parent=1 // pred_fallthru
      _
    %3553 = vsyncpa [#allocation3], 1
    %3554 = vsyncpa [#allocation5], 1

</llo_original>
